<compile_context>
chip_gen: v7x
topology: tpu7x:2x2x1
jax: 0.10.0
libtpu: 0.0.40
codegen_flags: <defaults>
</compile_context>

<pallas_src>
import functools

import jax
import jax.numpy as jnp
from jax.experimental import pallas as pl
from jax.experimental.pallas import tpu as pltpu

# GPT-Neo masked_bias.  Plain Python float so it lowers to a literal inside the
# kernels (a jnp.float32 scalar here caused the previous capture error).
MASKED_BIAS = -1e9


def _pick_tile(dim, target):
    """Largest tile <= target that evenly divides dim (keeps grids exact)."""
    t = min(dim, target)
    while dim % t:
        t -= 1
    return t


# ----------------------------- tiled linear ----------------------------------

def _matmul_kernel(x_ref, w_ref, o_ref, acc_ref):
    @pl.when(pl.program_id(2) == 0)
    def _init():
        acc_ref[...] = jnp.zeros_like(acc_ref)

    acc_ref[...] += jnp.dot(x_ref[...], w_ref[...],
                            preferred_element_type=jnp.float32)

    @pl.when(pl.program_id(2) == pl.num_programs(2) - 1)
    def _finalize():
        o_ref[...] = acc_ref[...].astype(o_ref.dtype)


def _matmul_bias_kernel(x_ref, w_ref, b_ref, o_ref, acc_ref):
    @pl.when(pl.program_id(2) == 0)
    def _init():
        acc_ref[...] = jnp.zeros_like(acc_ref)

    acc_ref[...] += jnp.dot(x_ref[...], w_ref[...],
                            preferred_element_type=jnp.float32)

    @pl.when(pl.program_id(2) == pl.num_programs(2) - 1)
    def _finalize():
        o_ref[...] = (acc_ref[...] +
                      b_ref[...].astype(jnp.float32)).astype(o_ref.dtype)


def _tiled_linear(x, w, bias=None, *, tm=256, tn=512, tk=512):
    """x:(M,K) @ w:(K,N) [+ bias] with a pipelined (M,N,K) grid."""
    M, K = x.shape
    K2, N = w.shape
    assert K == K2
    tm = _pick_tile(M, tm)
    tn = _pick_tile(N, tn)
    tk = _pick_tile(K, tk)
    grid = (M // tm, N // tn, K // tk)

    in_specs = [
        pl.BlockSpec((tm, tk), lambda i, j, k: (i, k)),
        pl.BlockSpec((tk, tn), lambda i, j, k: (k, j)),
    ]
    args = [x, w]
    kernel = _matmul_kernel
    if bias is not None:
        in_specs.append(pl.BlockSpec((1, tn), lambda i, j, k: (0, j)))
        args.append(bias.reshape(1, N))
        kernel = _matmul_bias_kernel

    itemsize = jnp.dtype(x.dtype).itemsize
    cost = pl.CostEstimate(
        flops=2 * M * N * K,
        transcendentals=0,
        bytes_accessed=itemsize * (M * K + K * N + M * N),
    )

    return pl.pallas_call(
        kernel,
        out_shape=jax.ShapeDtypeStruct((M, N), x.dtype),
        grid=grid,
        in_specs=in_specs,
        out_specs=pl.BlockSpec((tm, tn), lambda i, j, k: (i, j)),
        scratch_shapes=[pltpu.VMEM((tm, tn), jnp.float32)],
        compiler_params=pltpu.CompilerParams(
            dimension_semantics=("parallel", "parallel", "arbitrary"),
            vmem_limit_bytes=32 * 1024 * 1024,
        ),
        cost_estimate=cost,
    )(*args)


# -------------------------- flash-style attention ----------------------------

def _flash_attn_kernel(q_ref, k_ref, v_ref, o_ref, m_ref, l_ref, acc_ref):
    # One grid step = (batch b, head h, q-tile qi, kv-tile ki).
    # q_ref: (tq, D), k_ref / v_ref: (tkv, D), o_ref: (tq, D)
    tq = q_ref.shape[0]
    tkv = k_ref.shape[0]
    qi = pl.program_id(2)
    ki = pl.program_id(3)

    @pl.when(ki == 0)
    def _init():
        m_ref[...] = jnp.full_like(m_ref, -jnp.inf)
        l_ref[...] = jnp.zeros_like(l_ref)
        acc_ref[...] = jnp.zeros_like(acc_ref)

    q_start = qi * tq
    kv_start = ki * tkv

    # Causal tile skipping: this kv tile only contributes if its first key
    # index is <= the last query index of the q tile.
    @pl.when(kv_start <= q_start + tq - 1)
    def _compute():
        # GPT-Neo: QK^T in float32, NO 1/sqrt(d) scaling.
        q = q_ref[...].astype(jnp.float32)
        k = k_ref[...].astype(jnp.float32)
        # Contract the last dims of both operands -> no explicit k transpose.
        s = jax.lax.dot_general(
            q, k, dimension_numbers=(((1,), (1,)), ((), ())),
            preferred_element_type=jnp.float32)                 # (tq, tkv)

        rows = q_start + jax.lax.broadcasted_iota(jnp.int32, (tq, tkv), 0)
        cols = kv_start + jax.lax.broadcasted_iota(jnp.int32, (tq, tkv), 1)
        s = jnp.where(cols <= rows, s, MASKED_BIAS)

        m_prev = m_ref[...]
        m_new = jnp.maximum(m_prev, jnp.max(s, axis=-1, keepdims=True))
        alpha = jnp.exp(m_prev - m_new)
        p = jnp.exp(s - m_new)                                   # (tq, tkv)
        l_ref[...] = alpha * l_ref[...] + jnp.sum(p, axis=-1, keepdims=True)
        acc_ref[...] = alpha * acc_ref[...] + jnp.dot(
            p, v_ref[...].astype(jnp.float32),
            preferred_element_type=jnp.float32)
        m_ref[...] = m_new

    @pl.when(ki == pl.num_programs(3) - 1)
    def _finalize():
        inv_l = pl.reciprocal(l_ref[...], approx=True)           # EUP vrcp
        o_ref[...] = (acc_ref[...] * inv_l).astype(o_ref.dtype)


def _flash_attention(qkv, *, batch, seq, num_heads, head_dim, out_dtype,
                     tq=128, tkv=128):
    """qkv: (B*S, 3E) fused projection.  Returns (B*S, E) with heads merged."""
    M, three_e = qkv.shape
    H, D = num_heads, head_dim
    E = H * D
    assert three_e == 3 * E and M == batch * seq

    tq = _pick_tile(seq, tq)
    tkv = _pick_tile(seq, tkv)
    nq = seq // tq
    nk = seq // tkv

    # Head h of q / k / v lives in column-block h / H+h / 2H+h (width D) of the
    # fused (B*S, 3E) buffer; rows of batch b start at block b*nq (resp. b*nk).
    # This expresses split_heads/merge_heads purely as index maps (no transposes).
    q_spec = pl.BlockSpec((tq, D), lambda b, h, qi, ki: (b * nq + qi, h))
    k_spec = pl.BlockSpec((tkv, D), lambda b, h, qi, ki: (b * nk + ki, H + h))
    v_spec = pl.BlockSpec((tkv, D), lambda b, h, qi, ki: (b * nk + ki, 2 * H + h))
    o_spec = pl.BlockSpec((tq, D), lambda b, h, qi, ki: (b * nq + qi, h))

    itemsize = jnp.dtype(qkv.dtype).itemsize
    cost = pl.CostEstimate(
        flops=4 * batch * H * seq * seq * D,       # QK^T + PV (upper bound)
        transcendentals=batch * H * seq * seq,     # exp
        bytes_accessed=itemsize * (3 * M * E + M * E),
    )

    return pl.pallas_call(
        _flash_attn_kernel,
        out_shape=jax.ShapeDtypeStruct((M, E), out_dtype),
        grid=(batch, H, nq, nk),
        in_specs=[q_spec, k_spec, v_spec],
        out_specs=o_spec,
        scratch_shapes=[
            pltpu.VMEM((tq, 1), jnp.float32),   # running max  m
            pltpu.VMEM((tq, 1), jnp.float32),   # running sum  l
            pltpu.VMEM((tq, D), jnp.float32),   # output accumulator
        ],
        compiler_params=pltpu.CompilerParams(
            dimension_semantics=("parallel", "parallel", "parallel", "arbitrary"),
            vmem_limit_bytes=32 * 1024 * 1024,
        ),
        cost_estimate=cost,
    )(qkv, qkv, qkv)


# ------------------------------- top level ------------------------------------

def prepare_params(params):
    """One-time (outside jit) weight re-layout: fuse q/k/v and pre-transpose the
    PyTorch (out, in) weights to (in, out) so kernels compute plain x @ w."""
    w_qkv = jnp.concatenate(
        [params["wq"].T, params["wk"].T, params["wv"].T], axis=1)   # (E, 3E)
    return {
        "w_qkv": w_qkv,
        "wo": params["wo"].T,                                        # (E, E)
        "bo": params["bo"].reshape(1, -1),                           # (1, E)
    }


@functools.partial(jax.jit, static_argnames=("num_heads",))
def gpt_neo_self_attention(hidden_states, prepared, *, num_heads):
    """GPTNeoSelfAttention.forward (global attention, eval mode, no cache)."""
    # TODO(synk): layer_past/use_cache, attention_mask, head_mask and
    # output_attentions are not implemented in this kernel path.
    B, S, E = hidden_states.shape
    D = E // num_heads

    x2d = hidden_states.reshape(B * S, E)

    qkv = _tiled_linear(x2d, prepared["w_qkv"])            # (B*S, 3E) fused q/k/v
    attn = _flash_attention(
        qkv, batch=B, seq=S, num_heads=num_heads, head_dim=D,
        out_dtype=hidden_states.dtype)                     # (B*S, E), lane-dense
    out = _tiled_linear(attn, prepared["wo"], bias=prepared["bo"])
    return out.reshape(B, S, E)


# --------------------------------- main ---------------------------------------

def _reference(x, params, num_heads):
    B, S, E = x.shape
    D = E // num_heads
    q = x @ params["wq"].T
    k = x @ params["wk"].T
    v = x @ params["wv"].T

    def split(t):
        return t.reshape(B, S, num_heads, D).transpose(0, 2, 1, 3)

    qh, kh, vh = split(q), split(k), split(v)
    s = jnp.einsum("bhqd,bhkd->bhqk",
                   qh.astype(jnp.float32), kh.astype(jnp.float32))
    causal = jnp.tril(jnp.ones((S, S), dtype=bool))
    s = jnp.where(causal, s, -1e9)
    p = jax.nn.softmax(s, axis=-1)
    o = jnp.einsum("bhqk,bhkd->bhqd", p, vh.astype(jnp.float32))
    o = o.transpose(0, 2, 1, 3).reshape(B, S, E).astype(x.dtype)
    return o @ params["wo"].T + params["bo"]


if __name__ == "__main__":
    # Small but TPU-tile-friendly shapes: head_dim = 128 (lane-aligned) and two
    # q / kv tiles so the online softmax + causal tile skipping are exercised.
    B, S, E, H = 2, 256, 256, 2   # head_dim = 128

    key = jax.random.PRNGKey(0)
    k_x, k_q, k_k, k_v, k_o, k_b = jax.random.split(key, 6)

    hidden_states = jax.random.normal(k_x, (B, S, E), dtype=jnp.float32)
    params = {
        "wq": 0.02 * jax.random.normal(k_q, (E, E), dtype=jnp.float32),
        "wk": 0.02 * jax.random.normal(k_k, (E, E), dtype=jnp.float32),
        "wv": 0.02 * jax.random.normal(k_v, (E, E), dtype=jnp.float32),
        "wo": 0.02 * jax.random.normal(k_o, (E, E), dtype=jnp.float32),
        "bo": 0.02 * jax.random.normal(k_b, (E,), dtype=jnp.float32),
    }

    prepared = prepare_params(params)
    out = gpt_neo_self_attention(hidden_states, prepared, num_heads=H)
    jax.block_until_ready(out)

    expected = _reference(hidden_states, params, H)
    assert out.shape == (B, S, E)
    assert jnp.allclose(out, expected, atol=2e-3, rtol=2e-3), (
        "mismatch vs reference, max abs err = "
        f"{jnp.max(jnp.abs(out - expected))}")

    print("KERNEL_OK")
</pallas_src>

<mosaic_0001>
module attributes {stable_mosaic.version = 11 : i64} {
  func.func @_matmul_bias_kernel(%arg0: i32, %arg1: i32, %arg2: i32, %arg3: memref<256x256xf32, #tpu.memory_space<vmem>>, %arg4: memref<256x256xf32, #tpu.memory_space<vmem>>, %arg5: memref<1x256xf32, #tpu.memory_space<vmem>>, %arg6: memref<256x256xf32, #tpu.memory_space<vmem>>, %arg7: memref<256x256xf32, #tpu.memory_space<vmem>>) attributes {dimension_semantics = [#tpu.dimension_semantics<parallel>, #tpu.dimension_semantics<parallel>, #tpu.dimension_semantics<arbitrary>], iteration_bounds = array<i64: 2, 1, 1>, scalar_prefetch = 0 : i64, scratch_operands = 1 : i64, tpu.core_type = #tpu.core_type<tc>, window_params = [{transform_indices = @transform_0, window_bounds = array<i64: 256, 256>}, {transform_indices = @transform_1, window_bounds = array<i64: 256, 256>}, {transform_indices = @transform_2, window_bounds = array<i64: 1, 256>}, {transform_indices = @transform_3, window_bounds = array<i64: 256, 256>}]} {
    %c0_i32 = arith.constant 0 : i32
    %0 = arith.cmpi eq, %arg2, %c0_i32 : i32
    %1 = arith.extui %0 : i1 to i32
    %c0_i32_0 = arith.constant 0 : i32
    %2 = arith.cmpi ne, %1, %c0_i32_0 : i32
    scf.if %2 {
      %cst_10 = arith.constant 0.000000e+00 : f32
      %12 = vector.broadcast %cst_10 : f32 to vector<256x256xf32>
      %c0_11 = arith.constant 0 : index
      %c0_12 = arith.constant 0 : index
      %13 = vector.load %arg7[%c0_11, %c0_12] : memref<256x256xf32, #tpu.memory_space<vmem>>, vector<256x256xf32>
      tpu.vector_store %arg7[%c0_11, %c0_12], %12 {strides = array<i32>} : memref<256x256xf32, #tpu.memory_space<vmem>>, vector<256x256xf32>,
    } else {
    }
    %c0 = arith.constant 0 : index
    %c0_1 = arith.constant 0 : index
    %3 = vector.load %arg7[%c0, %c0_1] : memref<256x256xf32, #tpu.memory_space<vmem>>, vector<256x256xf32>
    %c0_2 = arith.constant 0 : index
    %c0_3 = arith.constant 0 : index
    %4 = vector.load %arg3[%c0_2, %c0_3] : memref<256x256xf32, #tpu.memory_space<vmem>>, vector<256x256xf32>
    %c0_4 = arith.constant 0 : index
    %c0_5 = arith.constant 0 : index
    %5 = vector.load %arg4[%c0_4, %c0_5] : memref<256x256xf32, #tpu.memory_space<vmem>>, vector<256x256xf32>
    %cst = arith.constant dense<0.000000e+00> : vector<256x256xf32>
    %6 = tpu.matmul %4, %5, %cst {dimension_numbers = #tpu.dot_dimension_numbers<[1], [0], [0], [1], [0, 0, 1, 1], [], []>} : vector<256x256xf32>, vector<256x256xf32>, vector<256x256xf32> -> vector<256x256xf32>
    %7 = arith.addf %3, %6 : vector<256x256xf32>
    %c0_6 = arith.constant 0 : index
    %c0_7 = arith.constant 0 : index
    %8 = vector.load %arg7[%c0_6, %c0_7] : memref<256x256xf32, #tpu.memory_space<vmem>>, vector<256x256xf32>
    tpu.vector_store %arg7[%c0_6, %c0_7], %7 {strides = array<i32>} : memref<256x256xf32, #tpu.memory_space<vmem>>, vector<256x256xf32>,
    %c0_i32_8 = arith.constant 0 : i32
    %9 = arith.cmpi eq, %arg2, %c0_i32_8 : i32
    %10 = arith.extui %9 : i1 to i32
    %c0_i32_9 = arith.constant 0 : i32
    %11 = arith.cmpi ne, %10, %c0_i32_9 : i32
    scf.if %11 {
      %c0_10 = arith.constant 0 : index
      %c0_11 = arith.constant 0 : index
      %12 = vector.load %arg7[%c0_10, %c0_11] : memref<256x256xf32, #tpu.memory_space<vmem>>, vector<256x256xf32>
      %c0_12 = arith.constant 0 : index
      %c0_13 = arith.constant 0 : index
      %13 = vector.load %arg5[%c0_12, %c0_13] : memref<1x256xf32, #tpu.memory_space<vmem>>, vector<1x256xf32>
      %14 = vector.broadcast %13 : vector<1x256xf32> to vector<256x256xf32>
      %15 = arith.addf %12, %14 : vector<256x256xf32>
      %c0_14 = arith.constant 0 : index
      %c0_15 = arith.constant 0 : index
      %16 = vector.load %arg6[%c0_14, %c0_15] : memref<256x256xf32, #tpu.memory_space<vmem>>, vector<256x256xf32>
      tpu.vector_store %arg6[%c0_14, %c0_15], %15 {strides = array<i32>} : memref<256x256xf32, #tpu.memory_space<vmem>>, vector<256x256xf32>,
    } else {
    }
    return
  }
  func.func @transform_0(%arg0: i32, %arg1: i32, %arg2: i32) -> (i32, i32) {
    %c0_i32 = arith.constant 0 : i32
    return %arg0, %arg2 : i32, i32
  }
  func.func @transform_1(%arg0: i32, %arg1: i32, %arg2: i32) -> (i32, i32) {
    %c0_i32 = arith.constant 0 : i32
    return %arg2, %arg1 : i32, i32
  }
  func.func @transform_2(%arg0: i32, %arg1: i32, %arg2: i32) -> (i32, i32) {
    %c0_i32 = arith.constant 0 : i32
    %c0_i32_0 = arith.constant 0 : i32
    return %c0_i32, %arg1 : i32, i32
  }
  func.func @transform_3(%arg0: i32, %arg1: i32, %arg2: i32) -> (i32, i32) {
    %c0_i32 = arith.constant 0 : i32
    return %arg0, %arg1 : i32, i32
  }
}

module attributes {stable_mosaic.version = 11 : i64} {
  func.func @_matmul_kernel(%arg0: i32, %arg1: i32, %arg2: i32, %arg3: memref<256x256xf32, #tpu.memory_space<vmem>>, %arg4: memref<256x384xf32, #tpu.memory_space<vmem>>, %arg5: memref<256x384xf32, #tpu.memory_space<vmem>>, %arg6: memref<256x384xf32, #tpu.memory_space<vmem>>) attributes {dimension_semantics = [#tpu.dimension_semantics<parallel>, #tpu.dimension_semantics<parallel>, #tpu.dimension_semantics<arbitrary>], iteration_bounds = array<i64: 2, 2, 1>, scalar_prefetch = 0 : i64, scratch_operands = 1 : i64, tpu.core_type = #tpu.core_type<tc>, window_params = [{transform_indices = @transform_0, window_bounds = array<i64: 256, 256>}, {transform_indices = @transform_1, window_bounds = array<i64: 256, 384>}, {transform_indices = @transform_2, window_bounds = array<i64: 256, 384>}]} {
    %c0_i32 = arith.constant 0 : i32
    %0 = arith.cmpi eq, %arg2, %c0_i32 : i32
    %1 = arith.extui %0 : i1 to i32
    %c0_i32_0 = arith.constant 0 : i32
    %2 = arith.cmpi ne, %1, %c0_i32_0 : i32
    scf.if %2 {
      %cst_10 = arith.constant 0.000000e+00 : f32
      %12 = vector.broadcast %cst_10 : f32 to vector<256x384xf32>
      %c0_11 = arith.constant 0 : index
      %c0_12 = arith.constant 0 : index
      %13 = vector.load %arg6[%c0_11, %c0_12] : memref<256x384xf32, #tpu.memory_space<vmem>>, vector<256x384xf32>
      tpu.vector_store %arg6[%c0_11, %c0_12], %12 {strides = array<i32>} : memref<256x384xf32, #tpu.memory_space<vmem>>, vector<256x384xf32>,
    } else {
    }
    %c0 = arith.constant 0 : index
    %c0_1 = arith.constant 0 : index
    %3 = vector.load %arg6[%c0, %c0_1] : memref<256x384xf32, #tpu.memory_space<vmem>>, vector<256x384xf32>
    %c0_2 = arith.constant 0 : index
    %c0_3 = arith.constant 0 : index
    %4 = vector.load %arg3[%c0_2, %c0_3] : memref<256x256xf32, #tpu.memory_space<vmem>>, vector<256x256xf32>
    %c0_4 = arith.constant 0 : index
    %c0_5 = arith.constant 0 : index
    %5 = vector.load %arg4[%c0_4, %c0_5] : memref<256x384xf32, #tpu.memory_space<vmem>>, vector<256x384xf32>
    %cst = arith.constant dense<0.000000e+00> : vector<256x384xf32>
    %6 = tpu.matmul %4, %5, %cst {dimension_numbers = #tpu.dot_dimension_numbers<[1], [0], [0], [1], [0, 0, 1, 1], [], []>} : vector<256x256xf32>, vector<256x384xf32>, vector<256x384xf32> -> vector<256x384xf32>
    %7 = arith.addf %3, %6 : vector<256x384xf32>
    %c0_6 = arith.constant 0 : index
    %c0_7 = arith.constant 0 : index
    %8 = vector.load %arg6[%c0_6, %c0_7] : memref<256x384xf32, #tpu.memory_space<vmem>>, vector<256x384xf32>
    tpu.vector_store %arg6[%c0_6, %c0_7], %7 {strides = array<i32>} : memref<256x384xf32, #tpu.memory_space<vmem>>, vector<256x384xf32>,
    %c0_i32_8 = arith.constant 0 : i32
    %9 = arith.cmpi eq, %arg2, %c0_i32_8 : i32
    %10 = arith.extui %9 : i1 to i32
    %c0_i32_9 = arith.constant 0 : i32
    %11 = arith.cmpi ne, %10, %c0_i32_9 : i32
    scf.if %11 {
      %c0_10 = arith.constant 0 : index
      %c0_11 = arith.constant 0 : index
      %12 = vector.load %arg6[%c0_10, %c0_11] : memref<256x384xf32, #tpu.memory_space<vmem>>, vector<256x384xf32>
      %c0_12 = arith.constant 0 : index
      %c0_13 = arith.constant 0 : index
      %13 = vector.load %arg5[%c0_12, %c0_13] : memref<256x384xf32, #tpu.memory_space<vmem>>, vector<256x384xf32>
      tpu.vector_store %arg5[%c0_12, %c0_13], %12 {strides = array<i32>} : memref<256x384xf32, #tpu.memory_space<vmem>>, vector<256x384xf32>,
    } else {
    }
    return
  }
  func.func @transform_0(%arg0: i32, %arg1: i32, %arg2: i32) -> (i32, i32) {
    %c0_i32 = arith.constant 0 : i32
    return %arg0, %arg2 : i32, i32
  }
  func.func @transform_1(%arg0: i32, %arg1: i32, %arg2: i32) -> (i32, i32) {
    %c0_i32 = arith.constant 0 : i32
    return %arg2, %arg1 : i32, i32
  }
  func.func @transform_2(%arg0: i32, %arg1: i32, %arg2: i32) -> (i32, i32) {
    %c0_i32 = arith.constant 0 : i32
    return %arg0, %arg1 : i32, i32
  }
}

module attributes {stable_mosaic.version = 11 : i64} {
  func.func @_flash_attn_kernel(%arg0: i32, %arg1: i32, %arg2: i32, %arg3: i32, %arg4: memref<128x128xf32, #tpu.memory_space<vmem>>, %arg5: memref<128x128xf32, #tpu.memory_space<vmem>>, %arg6: memref<128x128xf32, #tpu.memory_space<vmem>>, %arg7: memref<128x128xf32, #tpu.memory_space<vmem>>, %arg8: memref<128x1xf32, #tpu.memory_space<vmem>>, %arg9: memref<128x1xf32, #tpu.memory_space<vmem>>, %arg10: memref<128x128xf32, #tpu.memory_space<vmem>>) attributes {dimension_semantics = [#tpu.dimension_semantics<parallel>, #tpu.dimension_semantics<parallel>, #tpu.dimension_semantics<parallel>, #tpu.dimension_semantics<arbitrary>], iteration_bounds = array<i64: 2, 2, 2, 2>, scalar_prefetch = 0 : i64, scratch_operands = 3 : i64, tpu.core_type = #tpu.core_type<tc>, window_params = [{transform_indices = @transform_0, window_bounds = array<i64: 128, 128>}, {transform_indices = @transform_1, window_bounds = array<i64: 128, 128>}, {transform_indices = @transform_2, window_bounds = array<i64: 128, 128>}, {transform_indices = @transform_3, window_bounds = array<i64: 128, 128>}]} {
    %c0_i32 = arith.constant 0 : i32
    %0 = arith.cmpi eq, %arg3, %c0_i32 : i32
    %1 = arith.extui %0 : i1 to i32
    %c0_i32_0 = arith.constant 0 : i32
    %2 = arith.cmpi ne, %1, %c0_i32_0 : i32
    scf.if %2 {
      %cst = arith.constant 0xFF800000 : f32
      %13 = vector.broadcast %cst : f32 to vector<128x1xf32>
      %c0 = arith.constant 0 : index
      %c0_6 = arith.constant 0 : index
      %14 = vector.load %arg8[%c0, %c0_6] : memref<128x1xf32, #tpu.memory_space<vmem>>, vector<128x1xf32>
      tpu.vector_store %arg8[%c0, %c0_6], %13 {strides = array<i32>} : memref<128x1xf32, #tpu.memory_space<vmem>>, vector<128x1xf32>,
      %cst_7 = arith.constant 0.000000e+00 : f32
      %15 = vector.broadcast %cst_7 : f32 to vector<128x1xf32>
      %c0_8 = arith.constant 0 : index
      %c0_9 = arith.constant 0 : index
      %16 = vector.load %arg9[%c0_8, %c0_9] : memref<128x1xf32, #tpu.memory_space<vmem>>, vector<128x1xf32>
      tpu.vector_store %arg9[%c0_8, %c0_9], %15 {strides = array<i32>} : memref<128x1xf32, #tpu.memory_space<vmem>>, vector<128x1xf32>,
      %cst_10 = arith.constant 0.000000e+00 : f32
      %17 = vector.broadcast %cst_10 : f32 to vector<128x128xf32>
      %c0_11 = arith.constant 0 : index
      %c0_12 = arith.constant 0 : index
      %18 = vector.load %arg10[%c0_11, %c0_12] : memref<128x128xf32, #tpu.memory_space<vmem>>, vector<128x128xf32>
      tpu.vector_store %arg10[%c0_11, %c0_12], %17 {strides = array<i32>} : memref<128x128xf32, #tpu.memory_space<vmem>>, vector<128x128xf32>,
    } else {
    }
    %c128_i32 = arith.constant 128 : i32
    %3 = arith.muli %arg2, %c128_i32 : i32
    %c128_i32_1 = arith.constant 128 : i32
    %4 = arith.muli %arg3, %c128_i32_1 : i32
    %c128_i32_2 = arith.constant 128 : i32
    %5 = arith.addi %3, %c128_i32_2 : i32
    %c1_i32 = arith.constant 1 : i32
    %6 = arith.subi %5, %c1_i32 : i32
    %7 = arith.cmpi sle, %4, %6 : i32
    %8 = arith.extui %7 : i1 to i32
    %c0_i32_3 = arith.constant 0 : i32
    %9 = arith.cmpi ne, %8, %c0_i32_3 : i32
    scf.if %9 {
      %c0 = arith.constant 0 : index
      %c0_6 = arith.constant 0 : index
      %13 = vector.load %arg4[%c0, %c0_6] : memref<128x128xf32, #tpu.memory_space<vmem>>, vector<128x128xf32>
      %c0_7 = arith.constant 0 : index
      %c0_8 = arith.constant 0 : index
      %14 = vector.load %arg5[%c0_7, %c0_8] : memref<128x128xf32, #tpu.memory_space<vmem>>, vector<128x128xf32>
      %cst = arith.constant dense<0.000000e+00> : vector<128x128xf32>
      %15 = tpu.matmul %13, %14, %cst {dimension_numbers = #tpu.dot_dimension_numbers<[1], [1], [0], [0], [0, 0, 1, 0], [], []>} : vector<128x128xf32>, vector<128x128xf32>, vector<128x128xf32> -> vector<128x128xf32>
      %16 = tpu.iota {dimensions = array<i32: 0>} : vector<128x128xi32>
      %17 = vector.broadcast %3 : i32 to vector<128x128xi32>
      %18 = arith.addi %17, %16 : vector<128x128xi32>
      %19 = tpu.iota {dimensions = array<i32: 1>} : vector<128x128xi32>
      %20 = vector.broadcast %4 : i32 to vector<128x128xi32>
      %21 = arith.addi %20, %19 : vector<128x128xi32>
      %22 = arith.cmpi sle, %21, %18 : vector<128x128xi32>
      %cst_9 = arith.constant -1.000000e+09 : f32
      %23 = vector.broadcast %cst_9 : f32 to vector<128x128xf32>
      %24 = arith.select %22, %15, %23 : vector<128x128xi1>, vector<128x128xf32>
      %c0_10 = arith.constant 0 : index
      %c0_11 = arith.constant 0 : index
      %25 = vector.load %arg8[%c0_10, %c0_11] : memref<128x1xf32, #tpu.memory_space<vmem>>, vector<128x1xf32>
      %cst_12 = arith.constant dense<0xFF800000> : vector<128xf32>
      %26 = vector.multi_reduction <maximumf>, %24, %cst_12 [1] : vector<128x128xf32> to vector<128xf32>
      %27 = vector.shape_cast %26 : vector<128xf32> to vector<128x1xf32>
      %28 = arith.maximumf %25, %27 : vector<128x1xf32>
      %29 = arith.subf %25, %28 : vector<128x1xf32>
      %30 = math.exp %29 : vector<128x1xf32>
      %31 = vector.broadcast %28 : vector<128x1xf32> to vector<128x128xf32>
      %32 = arith.subf %24, %31 : vector<128x128xf32>
      %33 = math.exp %32 : vector<128x128xf32>
      %c0_13 = arith.constant 0 : index
      %c0_14 = arith.constant 0 : index
      %34 = vector.load %arg9[%c0_13, %c0_14] : memref<128x1xf32, #tpu.memory_space<vmem>>, vector<128x1xf32>
      %35 = arith.mulf %30, %34 : vector<128x1xf32>
      %cst_15 = arith.constant dense<0.000000e+00> : vector<128xf32>
      %36 = vector.multi_reduction <add>, %33, %cst_15 [1] : vector<128x128xf32> to vector<128xf32>
      %37 = vector.shape_cast %36 : vector<128xf32> to vector<128x1xf32>
      %38 = arith.addf %35, %37 : vector<128x1xf32>
      %c0_16 = arith.constant 0 : index
      %c0_17 = arith.constant 0 : index
      %39 = vector.load %arg9[%c0_16, %c0_17] : memref<128x1xf32, #tpu.memory_space<vmem>>, vector<128x1xf32>
      tpu.vector_store %arg9[%c0_16, %c0_17], %38 {strides = array<i32>} : memref<128x1xf32, #tpu.memory_space<vmem>>, vector<128x1xf32>,
      %c0_18 = arith.constant 0 : index
      %c0_19 = arith.constant 0 : index
      %40 = vector.load %arg10[%c0_18, %c0_19] : memref<128x128xf32, #tpu.memory_space<vmem>>, vector<128x128xf32>
      %41 = vector.broadcast %30 : vector<128x1xf32> to vector<128x128xf32>
      %42 = arith.mulf %41, %40 : vector<128x128xf32>
      %c0_20 = arith.constant 0 : index
      %c0_21 = arith.constant 0 : index
      %43 = vector.load %arg6[%c0_20, %c0_21] : memref<128x128xf32, #tpu.memory_space<vmem>>, vector<128x128xf32>
      %cst_22 = arith.constant dense<0.000000e+00> : vector<128x128xf32>
      %44 = tpu.matmul %33, %43, %cst_22 {dimension_numbers = #tpu.dot_dimension_numbers<[1], [0], [0], [1], [0, 0, 1, 1], [], []>} : vector<128x128xf32>, vector<128x128xf32>, vector<128x128xf32> -> vector<128x128xf32>
      %45 = arith.addf %42, %44 : vector<128x128xf32>
      %c0_23 = arith.constant 0 : index
      %c0_24 = arith.constant 0 : index
      %46 = vector.load %arg10[%c0_23, %c0_24] : memref<128x128xf32, #tpu.memory_space<vmem>>, vector<128x128xf32>
      tpu.vector_store %arg10[%c0_23, %c0_24], %45 {strides = array<i32>} : memref<128x128xf32, #tpu.memory_space<vmem>>, vector<128x128xf32>,
      %c0_25 = arith.constant 0 : index
      %c0_26 = arith.constant 0 : index
      %47 = vector.load %arg8[%c0_25, %c0_26] : memref<128x1xf32, #tpu.memory_space<vmem>>, vector<128x1xf32>
      tpu.vector_store %arg8[%c0_25, %c0_26], %28 {strides = array<i32>} : memref<128x1xf32, #tpu.memory_space<vmem>>, vector<128x1xf32>,
    } else {
    }
    %c1_i32_4 = arith.constant 1 : i32
    %10 = arith.cmpi eq, %arg3, %c1_i32_4 : i32
    %11 = arith.extui %10 : i1 to i32
    %c0_i32_5 = arith.constant 0 : i32
    %12 = arith.cmpi ne, %11, %c0_i32_5 : i32
    scf.if %12 {
      %c0 = arith.constant 0 : index
      %c0_6 = arith.constant 0 : index
      %13 = vector.load %arg9[%c0, %c0_6] : memref<128x1xf32, #tpu.memory_space<vmem>>, vector<128x1xf32>
      %14 = tpu.reciprocal %13 {approx = true} : vector<128x1xf32> -> vector<128x1xf32>
      %c0_7 = arith.constant 0 : index
      %c0_8 = arith.constant 0 : index
      %15 = vector.load %arg10[%c0_7, %c0_8] : memref<128x128xf32, #tpu.memory_space<vmem>>, vector<128x128xf32>
      %16 = vector.broadcast %14 : vector<128x1xf32> to vector<128x128xf32>
      %17 = arith.mulf %15, %16 : vector<128x128xf32>
      %c0_9 = arith.constant 0 : index
      %c0_10 = arith.constant 0 : index
      %18 = vector.load %arg7[%c0_9, %c0_10] : memref<128x128xf32, #tpu.memory_space<vmem>>, vector<128x128xf32>
      tpu.vector_store %arg7[%c0_9, %c0_10], %17 {strides = array<i32>} : memref<128x128xf32, #tpu.memory_space<vmem>>, vector<128x128xf32>,
    } else {
    }
    return
  }
  func.func @transform_0(%arg0: i32, %arg1: i32, %arg2: i32, %arg3: i32) -> (i32, i32) {
    %c2_i32 = arith.constant 2 : i32
    %0 = arith.muli %arg0, %c2_i32 : i32
    %1 = arith.addi %0, %arg2 : i32
    %c0_i32 = arith.constant 0 : i32
    return %1, %arg1 : i32, i32
  }
  func.func @transform_1(%arg0: i32, %arg1: i32, %arg2: i32, %arg3: i32) -> (i32, i32) {
    %c2_i32 = arith.constant 2 : i32
    %0 = arith.muli %arg0, %c2_i32 : i32
    %1 = arith.addi %0, %arg3 : i32
    %c2_i32_0 = arith.constant 2 : i32
    %2 = arith.addi %c2_i32_0, %arg1 : i32
    %c0_i32 = arith.constant 0 : i32
    return %1, %2 : i32, i32
  }
  func.func @transform_2(%arg0: i32, %arg1: i32, %arg2: i32, %arg3: i32) -> (i32, i32) {
    %c2_i32 = arith.constant 2 : i32
    %0 = arith.muli %arg0, %c2_i32 : i32
    %1 = arith.addi %0, %arg3 : i32
    %c4_i32 = arith.constant 4 : i32
    %2 = arith.addi %c4_i32, %arg1 : i32
    %c0_i32 = arith.constant 0 : i32
    return %1, %2 : i32, i32
  }
  func.func @transform_3(%arg0: i32, %arg1: i32, %arg2: i32, %arg3: i32) -> (i32, i32) {
    %c2_i32 = arith.constant 2 : i32
    %0 = arith.muli %arg0, %c2_i32 : i32
    %1 = arith.addi %0, %arg2 : i32
    %c0_i32 = arith.constant 0 : i32
    return %1, %arg1 : i32, i32
  }
}

</mosaic_0001>

<llo_original>
// kernel: gpt_neo_self_attention.4
$region0: #{gpt_neo_self_attention.4}
  #allocation0 [shape = 'u32[]', space=smem, size = 0x4, offset = 0x4, fixed_abs, tag = 'smem constant byte address 0x4 - core index']
  #allocation1 [shape = 'u32[144,128]{1,0:T(1,128)}', space=vmem, size = 0x12000, scoped, tag = 'internal scratch']
  #allocation2 [shape = 'f32[128,1]{1,0:T(8,128)}', space=vmem, size = 0x10000, scoped, tag = 'scratch operand']
  #allocation3 [shape = 'f32[128,1]{1,0:T(8,128)}', space=vmem, size = 0x10000, scoped, tag = 'scratch operand']
  #allocation4 [shape = 'f32[128,128]{1,0:T(8,128)}', space=vmem, size = 0x10000, scoped, tag = 'scratch operand']
  %s0 = inlined_call_operand.vmem [shape: f32[512,768], index: 0, kind: input, shape index: {}, may-alias: {0,1,2}]
  %s1 = inlined_call_operand.vmem [shape: f32[512,768], index: 1, kind: input, shape index: {}, may-alias: {0,1,2}]
  %s2 = inlined_call_operand.vmem [shape: f32[512,768], index: 2, kind: input, shape index: {}, may-alias: {0,1,2}]
  %s3 = inlined_call_operand.vmem [shape: f32[512,256], index: 3, kind: output, shape index: {}]
  %s4 = sld [smem:[#allocation0]]
  $region205: #{gpt_neo_self_attention.4} parent=0
    _
  %s6 = ssub.s32 1, %s4
  %s7 = scalar_select 0, %s6, %s4
  $region1: #{gpt_neo_self_attention.4} parent=0
    #allocation5 [shape = 'u8[131072]{0}', space=vmem, size = 0x20000, scoped, tag = 'input window, operand 0']
    #allocation6 [shape = 'u8[131072]{0}', space=vmem, size = 0x20000, scoped, tag = 'input window, operand 1']
    #allocation7 [shape = 'u8[131072]{0}', space=vmem, size = 0x20000, scoped, tag = 'input window, operand 2']
    #allocation8 [shape = 'u8[131072]{0}', space=vmem, size = 0x20000, scoped, tag = 'output window, operand 0']
    loop: start=0, step=1, limit=18
    $region2: #{gpt_neo_self_attention.4} parent=1 // loop_pre_header
      _
    $region3: #{gpt_neo_self_attention.4} parent=1 // loop_header
      %s9 = sphi 0, %s13
      %p10 = scmp.ge.s32.totalorder %s9, 18
      %s16 = sphi 0, %s42
      %s17 = sphi 0, %s38
      %s18 = sphi 0, %s34
      %s19 = sphi 0, %s30
      %s20 = sphi 0, %s16
      %s21 = sphi 0, %s17
      %s22 = sphi 0, %s18
      %s23 = sphi 0, %s19
      %s24 = sphi 0, %s20
      %s25 = sphi 0, %s21
      %s26 = sphi 0, %s22
      %s27 = sphi 0, %s23
      %s51 = sphi 0, %s53
      %s54 = sphi 0, %s51
      %s55 = sphi 0, %s54
      %s71 = sphi 0, %s55
      %s85 = sphi 0, %s87
      %s88 = sphi 0, %s85
      %s89 = sphi 0, %s88
      %s105 = sphi 0, %s89
      %s119 = sphi 0, %s121
      %s122 = sphi 0, %s119
      %s123 = sphi 0, %s122
      %s139 = sphi 0, %s123
      %s151 = sphi 0, %s153
      %s154 = sphi 0, %s151
      %s155 = sphi 0, %s154
      %s171 = sphi 0, %s155
    $region4: #{gpt_neo_self_attention.4} parent=1 // loop_header_branch
      %12 = sbr.rel (%p10) target = $region8
    $region5: #{gpt_neo_self_attention.4} parent=1 // loop_body
      %s14 = ssub.s32 %s9, 1
      %s15 = ssub.s32 %s9, 2
      %s28 = sadd.s32 1, %s19
      %p29 = scmp.ge.s32.totalorder %s28, 2
      %s30 = scalar_select %p29, 0, %s28
      %s31 = sadd.s32 1, %s18
      %s32 = scalar_select %p29, %s31, %s18
      %p33 = scmp.ge.s32.totalorder %s32, 2
      %s34 = scalar_select %p33, 0, %s32
      %s35 = sadd.s32 1, %s17
      %s36 = scalar_select %p33, %s35, %s17
      %p37 = scmp.ge.s32.totalorder %s36, 2
      %s38 = scalar_select %p37, 0, %s36
      %s39 = sadd.s32 1, %s16
      %s40 = scalar_select %p37, %s39, %s16
      %p41 = scmp.ge.s32.totalorder %s40, 2
      %s42 = scalar_select %p41, 0, %s40
      %s43 = smul.u32 %s16, 2
      %s44 = sadd.s32 %s43, %s18
      %s45 = smul.u32 %s42, 2
      %s46 = sadd.s32 %s45, %s34
      %s47 = ssub.s32 %s44, %s46
      %s48 = ssub.s32 %s17, %s38
      %s49 = sor.u32 %s47, %s48
      %p50 = scmp.eq.s32.totalorder %s49, 0
      %s52 = sadd.s32 %s51, 1
      %s53 = scalar_select %p50, %s51, %s52
      %p56 = pneg %p50
      %p57 = scmp.eq.s32.totalorder %s9, 15
      %p58 = por %p56, %p57
      %p59 = scmp.ne.s32.totalorder %s51, %s54
      %p60 = scmp.eq.s32.totalorder %s9, 0
      %p61 = por %p59, %p60
      %p62 = scmp.ne.s32.totalorder %s51, %s54
      %p63 = scmp.eq.s32.totalorder %s14, 15
      %p64 = por %p62, %p63
      %p65 = scmp.ne.s32.totalorder %s54, %s55
      %p66 = scmp.eq.s32.totalorder %s14, 0
      %p67 = por %p65, %p66
      %p68 = scmp.ne.s32.totalorder %s54, %s55
      %p69 = scmp.eq.s32.totalorder %s15, 15
      %p70 = por %p68, %p69
      %p72 = scmp.ne.s32.totalorder %s55, %s71
      %p73 = scmp.eq.s32.totalorder %s15, 0
      %p74 = por %p72, %p73
      %s75 = smul.u32 %s16, 2
      %s76 = sadd.s32 %s75, %s19
      %s77 = sadd.s32 %s17, 2
      %s78 = smul.u32 %s42, 2
      %s79 = sadd.s32 %s78, %s30
      %s80 = sadd.s32 %s38, 2
      %s81 = ssub.s32 %s76, %s79
      %s82 = ssub.s32 %s77, %s80
      %s83 = sor.u32 %s81, %s82
      %p84 = scmp.eq.s32.totalorder %s83, 0
      %s86 = sadd.s32 %s85, 1
      %s87 = scalar_select %p84, %s85, %s86
      %p90 = pneg %p84
      %p91 = scmp.eq.s32.totalorder %s9, 15
      %p92 = por %p90, %p91
      %p93 = scmp.ne.s32.totalorder %s85, %s88
      %p94 = scmp.eq.s32.totalorder %s9, 0
      %p95 = por %p93, %p94
      %p96 = scmp.ne.s32.totalorder %s85, %s88
      %p97 = scmp.eq.s32.totalorder %s14, 15
      %p98 = por %p96, %p97
      %p99 = scmp.ne.s32.totalorder %s88, %s89
      %p100 = scmp.eq.s32.totalorder %s14, 0
      %p101 = por %p99, %p100
      %p102 = scmp.ne.s32.totalorder %s88, %s89
      %p103 = scmp.eq.s32.totalorder %s15, 15
      %p104 = por %p102, %p103
      %p106 = scmp.ne.s32.totalorder %s89, %s105
      %p107 = scmp.eq.s32.totalorder %s15, 0
      %p108 = por %p106, %p107
      %s109 = smul.u32 %s16, 2
      %s110 = sadd.s32 %s109, %s19
      %s111 = sadd.s32 %s17, 4
      %s112 = smul.u32 %s42, 2
      %s113 = sadd.s32 %s112, %s30
      %s114 = sadd.s32 %s38, 4
      %s115 = ssub.s32 %s110, %s113
      %s116 = ssub.s32 %s111, %s114
      %s117 = sor.u32 %s115, %s116
      %p118 = scmp.eq.s32.totalorder %s117, 0
      %s120 = sadd.s32 %s119, 1
      %s121 = scalar_select %p118, %s119, %s120
      %p124 = pneg %p118
      %p125 = scmp.eq.s32.totalorder %s9, 15
      %p126 = por %p124, %p125
      %p127 = scmp.ne.s32.totalorder %s119, %s122
      %p128 = scmp.eq.s32.totalorder %s9, 0
      %p129 = por %p127, %p128
      %p130 = scmp.ne.s32.totalorder %s119, %s122
      %p131 = scmp.eq.s32.totalorder %s14, 15
      %p132 = por %p130, %p131
      %p133 = scmp.ne.s32.totalorder %s122, %s123
      %p134 = scmp.eq.s32.totalorder %s14, 0
      %p135 = por %p133, %p134
      %p136 = scmp.ne.s32.totalorder %s122, %s123
      %p137 = scmp.eq.s32.totalorder %s15, 15
      %p138 = por %p136, %p137
      %p140 = scmp.ne.s32.totalorder %s123, %s139
      %p141 = scmp.eq.s32.totalorder %s15, 0
      %p142 = por %p140, %p141
      %s143 = smul.u32 %s16, 2
      %s144 = sadd.s32 %s143, %s18
      %s145 = smul.u32 %s42, 2
      %s146 = sadd.s32 %s145, %s34
      %s147 = ssub.s32 %s144, %s146
      %s148 = ssub.s32 %s17, %s38
      %s149 = sor.u32 %s147, %s148
      %p150 = scmp.eq.s32.totalorder %s149, 0
      %s152 = sadd.s32 %s151, 1
      %s153 = scalar_select %p150, %s151, %s152
      %p156 = pneg %p150
      %p157 = scmp.eq.s32.totalorder %s9, 15
      %p158 = por %p156, %p157
      %p159 = scmp.ne.s32.totalorder %s151, %s154
      %p160 = scmp.eq.s32.totalorder %s9, 0
      %p161 = por %p159, %p160
      %p162 = scmp.ne.s32.totalorder %s151, %s154
      %p163 = scmp.eq.s32.totalorder %s14, 15
      %p164 = por %p162, %p163
      %p165 = scmp.ne.s32.totalorder %s154, %s155
      %p166 = scmp.eq.s32.totalorder %s14, 0
      %p167 = por %p165, %p166
      %p168 = scmp.ne.s32.totalorder %s154, %s155
      %p169 = scmp.eq.s32.totalorder %s15, 15
      %p170 = por %p168, %p169
      %p172 = scmp.ne.s32.totalorder %s155, %s171
      %p173 = scmp.eq.s32.totalorder %s15, 0
      %p174 = por %p172, %p173
      %p175 = scmp.le.s32.totalorder 1, %s9
      %p176 = scmp.lt.s32.totalorder %s9, 17
      %p177 = pnand %p175, %p176
      %p178 = pneg %p177
      // Predicated region
      $region9: #{gpt_neo_self_attention.4} parent=5 // pred_check
        _
      $region10: #{gpt_neo_self_attention.4} parent=5 // pred_check_branch
        %180 = sbr.rel (%p177) target = $region12
      $region11: #{gpt_neo_self_attention.4} parent=5 // pred_region
        %s181 = ssub.s32 %s9, 1
      $region12: #{gpt_neo_self_attention.4} parent=5 // pred_fallthru
        _
      %p182 = scmp.lt.s32.totalorder %s9, 16
      // Predicated region
      $region13: #{gpt_neo_self_attention.4} parent=5 // pred_check
        %p183 = pneg %p182
      $region14: #{gpt_neo_self_attention.4} parent=5 // pred_check_branch
        %185 = sbr.rel (%p183) target = $region16
      $region15: #{gpt_neo_self_attention.4} parent=5 // pred_region
        // Predicated region
        $region17: #{gpt_neo_self_attention.4} parent=15 // pred_check
          %p186 = pneg %p61
        $region18: #{gpt_neo_self_attention.4} parent=15 // pred_check_branch
          %188 = sbr.rel (%p186) target = $region20
        $region19: #{gpt_neo_self_attention.4} parent=15 // pred_region
          %s189 = sand.u32 %s51, 1
          %s190 = sand.u32 %s51, 1
          %s191 = smul.addr %s190, 128
          %s192 = scalar_lea.vmem [#allocation5], %s191
          %s193 = smul.u32 %s16, 2
          %s194 = sadd.s32 %s193, %s18
          %s195 = smul.u32 16, %s194
          %s196 = smul.addr %s195, 6
          %s197 = sadd.s32 %s17, %s196
          %s198 = smul.addr %s197, 8
          %s199 = scalar_lea.vmem %s0, %s198
          // Predicated region
          $region21: #{gpt_neo_self_attention.4} parent=19 // pred_check
            _
          $region22: #{gpt_neo_self_attention.4} parent=19 // pred_check_branch
            %201 = sbr.rel (0) target = $region24
          $region23: #{gpt_neo_self_attention.4} parent=19 // pred_region
            // Predicated region
            $region25: #{gpt_neo_self_attention.4} parent=23 // pred_check
              _
            $region26: #{gpt_neo_self_attention.4} parent=23 // pred_check_branch
              %203 = sbr.rel (0) target = $region28
            $region27: #{gpt_neo_self_attention.4} parent=23 // pred_region
              // Predicated region
              $region40: #{gpt_neo_self_attention.4} parent=27 // pred_check
                _
              $region41: #{gpt_neo_self_attention.4} parent=27 // pred_check_branch
                %248 = sbr.rel (0) target = $region43
              $region42: #{gpt_neo_self_attention.4} parent=27 // pred_region
                loop: start=0, step=1, limit=1
                $region44: #{gpt_neo_self_attention.4} parent=42 // loop_pre_header
                  _
                $region45: #{gpt_neo_self_attention.4} parent=42 // loop_header
                  %s250 = sphi 0, %s254
                  %p251 = scmp.ge.s32.totalorder %s250, 1
                  %s255 = sphi %s199, %s199
                  %s256 = sphi %s192, %s192
                $region46: #{gpt_neo_self_attention.4} parent=42 // loop_header_branch
                  %253 = sbr.rel (%p251) target = $region50
                $region47: #{gpt_neo_self_attention.4} parent=42 // loop_body
                  %v257 = vld [vmem:[%s255] sm:$0xff]
                  %258 = vst [vmem:[%s256] sm:$0xff] %v257
                  %v259 = vld [vmem:[%s255 + $0x30] sm:$0xff]
                  %260 = vst [vmem:[%s256 + $0x8] sm:$0xff] %v259
                  %v261 = vld [vmem:[%s255 + $0x60] sm:$0xff]
                  %262 = vst [vmem:[%s256 + $0x10] sm:$0xff] %v261
                  %v263 = vld [vmem:[%s255 + $0x90] sm:$0xff]
                  %264 = vst [vmem:[%s256 + $0x18] sm:$0xff] %v263
                  %v265 = vld [vmem:[%s255 + $0xc0] sm:$0xff]
                  %266 = vst [vmem:[%s256 + $0x20] sm:$0xff] %v265
                  %v267 = vld [vmem:[%s255 + $0xf0] sm:$0xff]
                  %268 = vst [vmem:[%s256 + $0x28] sm:$0xff] %v267
                  %v269 = vld [vmem:[%s255 + $0x120] sm:$0xff]
                  %270 = vst [vmem:[%s256 + $0x30] sm:$0xff] %v269
                  %v271 = vld [vmem:[%s255 + $0x150] sm:$0xff]
                  %272 = vst [vmem:[%s256 + $0x38] sm:$0xff] %v271
                  %v273 = vld [vmem:[%s255 + $0x180] sm:$0xff]
                  %274 = vst [vmem:[%s256 + $0x40] sm:$0xff] %v273
                  %v275 = vld [vmem:[%s255 + $0x1b0] sm:$0xff]
                  %276 = vst [vmem:[%s256 + $0x48] sm:$0xff] %v275
                  %v277 = vld [vmem:[%s255 + $0x1e0] sm:$0xff]
                  %278 = vst [vmem:[%s256 + $0x50] sm:$0xff] %v277
                  %v279 = vld [vmem:[%s255 + $0x210] sm:$0xff]
                  %280 = vst [vmem:[%s256 + $0x58] sm:$0xff] %v279
                  %v281 = vld [vmem:[%s255 + $0x240] sm:$0xff]
                  %282 = vst [vmem:[%s256 + $0x60] sm:$0xff] %v281
                  %v283 = vld [vmem:[%s255 + $0x270] sm:$0xff]
                  %284 = vst [vmem:[%s256 + $0x68] sm:$0xff] %v283
                  %v285 = vld [vmem:[%s255 + $0x2a0] sm:$0xff]
                  %286 = vst [vmem:[%s256 + $0x70] sm:$0xff] %v285
                  %v287 = vld [vmem:[%s255 + $0x2d0] sm:$0xff]
                  %288 = vst [vmem:[%s256 + $0x78] sm:$0xff] %v287
                $region48: #{gpt_neo_self_attention.4} parent=42 // loop_footer
                  %s254 = sadd.s32 1, %s250
                $region49: #{gpt_neo_self_attention.4} parent=42 // loop_footer_branch
                  %249 = sbr.rel target = $region45
                $region50: #{gpt_neo_self_attention.4} parent=42 // loop_exit
                  _
              $region43: #{gpt_neo_self_attention.4} parent=27 // pred_fallthru
                _
              // Predicated region
              $region51: #{gpt_neo_self_attention.4} parent=27 // pred_check
                _
              $region52: #{gpt_neo_self_attention.4} parent=27 // pred_check_branch
                %290 = sbr.rel target = $region54
              $region53: #{gpt_neo_self_attention.4} parent=27 // pred_region
                _
              $region54: #{gpt_neo_self_attention.4} parent=27 // pred_fallthru
                _
            $region28: #{gpt_neo_self_attention.4} parent=23 // pred_fallthru
              _
            // Predicated region
            $region29: #{gpt_neo_self_attention.4} parent=23 // pred_check
              _
            $region30: #{gpt_neo_self_attention.4} parent=23 // pred_check_branch
              %205 = sbr.rel target = $region32
            $region31: #{gpt_neo_self_attention.4} parent=23 // pred_region
              loop: start=0, step=1, limit=1
              $region33: #{gpt_neo_self_attention.4} parent=31 // loop_pre_header
                _
              $region34: #{gpt_neo_self_attention.4} parent=31 // loop_header
                %s208 = sphi 0, %s212
                %p209 = scmp.ge.s32.totalorder %s208, 1
                %s213 = sphi %s199, %s199
                %s214 = sphi %s192, %s192
              $region35: #{gpt_neo_self_attention.4} parent=31 // loop_header_branch
                %211 = sbr.rel (%p209) target = $region39
              $region36: #{gpt_neo_self_attention.4} parent=31 // loop_body
                %v215 = vld [vmem:[%s213] sm:$0xff]
                %216 = vst [vmem:[%s214] sm:$0xff] %v215
                %v217 = vld [vmem:[%s213 + $0x30] sm:$0xff]
                %218 = vst [vmem:[%s214 + $0x8] sm:$0xff] %v217
                %v219 = vld [vmem:[%s213 + $0x60] sm:$0xff]
                %220 = vst [vmem:[%s214 + $0x10] sm:$0xff] %v219
                %v221 = vld [vmem:[%s213 + $0x90] sm:$0xff]
                %222 = vst [vmem:[%s214 + $0x18] sm:$0xff] %v221
                %v223 = vld [vmem:[%s213 + $0xc0] sm:$0xff]
                %224 = vst [vmem:[%s214 + $0x20] sm:$0xff] %v223
                %v225 = vld [vmem:[%s213 + $0xf0] sm:$0xff]
                %226 = vst [vmem:[%s214 + $0x28] sm:$0xff] %v225
                %v227 = vld [vmem:[%s213 + $0x120] sm:$0xff]
                %228 = vst [vmem:[%s214 + $0x30] sm:$0xff] %v227
                %v229 = vld [vmem:[%s213 + $0x150] sm:$0xff]
                %230 = vst [vmem:[%s214 + $0x38] sm:$0xff] %v229
                %v231 = vld [vmem:[%s213 + $0x180] sm:$0xff]
                %232 = vst [vmem:[%s214 + $0x40] sm:$0xff] %v231
                %v233 = vld [vmem:[%s213 + $0x1b0] sm:$0xff]
                %234 = vst [vmem:[%s214 + $0x48] sm:$0xff] %v233
                %v235 = vld [vmem:[%s213 + $0x1e0] sm:$0xff]
                %236 = vst [vmem:[%s214 + $0x50] sm:$0xff] %v235
                %v237 = vld [vmem:[%s213 + $0x210] sm:$0xff]
                %238 = vst [vmem:[%s214 + $0x58] sm:$0xff] %v237
                %v239 = vld [vmem:[%s213 + $0x240] sm:$0xff]
                %240 = vst [vmem:[%s214 + $0x60] sm:$0xff] %v239
                %v241 = vld [vmem:[%s213 + $0x270] sm:$0xff]
                %242 = vst [vmem:[%s214 + $0x68] sm:$0xff] %v241
                %v243 = vld [vmem:[%s213 + $0x2a0] sm:$0xff]
                %244 = vst [vmem:[%s214 + $0x70] sm:$0xff] %v243
                %v245 = vld [vmem:[%s213 + $0x2d0] sm:$0xff]
                %246 = vst [vmem:[%s214 + $0x78] sm:$0xff] %v245
              $region37: #{gpt_neo_self_attention.4} parent=31 // loop_footer
                %s212 = sadd.s32 1, %s208
              $region38: #{gpt_neo_self_attention.4} parent=31 // loop_footer_branch
                %207 = sbr.rel target = $region34
              $region39: #{gpt_neo_self_attention.4} parent=31 // loop_exit
                _
            $region32: #{gpt_neo_self_attention.4} parent=23 // pred_fallthru
              _
          $region24: #{gpt_neo_self_attention.4} parent=19 // pred_fallthru
            _
          %291 = vnop
        $region20: #{gpt_neo_self_attention.4} parent=15 // pred_fallthru
          _
        // Predicated region
        $region55: #{gpt_neo_self_attention.4} parent=15 // pred_check
          %p292 = pneg %p95
        $region56: #{gpt_neo_self_attention.4} parent=15 // pred_check_branch
          %294 = sbr.rel (%p292) target = $region58
        $region57: #{gpt_neo_self_attention.4} parent=15 // pred_region
          %s295 = sand.u32 %s85, 1
          %s296 = sand.u32 %s85, 1
          %s297 = smul.addr %s296, 128
          %s298 = scalar_lea.vmem [#allocation6], %s297
          %s299 = smul.u32 %s16, 2
          %s300 = sadd.s32 %s299, %s19
          %s301 = sadd.s32 %s17, 2
          %s302 = smul.u32 16, %s300
          %s303 = smul.addr %s302, 6
          %s304 = sadd.s32 %s301, %s303
          %s305 = smul.addr %s304, 8
          %s306 = scalar_lea.vmem %s1, %s305
          // Predicated region
          $region59: #{gpt_neo_self_attention.4} parent=57 // pred_check
            _
          $region60: #{gpt_neo_self_attention.4} parent=57 // pred_check_branch
            %308 = sbr.rel (0) target = $region62
          $region61: #{gpt_neo_self_attention.4} parent=57 // pred_region
            // Predicated region
            $region63: #{gpt_neo_self_attention.4} parent=61 // pred_check
              _
            $region64: #{gpt_neo_self_attention.4} parent=61 // pred_check_branch
              %310 = sbr.rel (0) target = $region66
            $region65: #{gpt_neo_self_attention.4} parent=61 // pred_region
              // Predicated region
              $region78: #{gpt_neo_self_attention.4} parent=65 // pred_check
                _
              $region79: #{gpt_neo_self_attention.4} parent=65 // pred_check_branch
                %355 = sbr.rel (0) target = $region81
              $region80: #{gpt_neo_self_attention.4} parent=65 // pred_region
                loop: start=0, step=1, limit=1
                $region82: #{gpt_neo_self_attention.4} parent=80 // loop_pre_header
                  _
                $region83: #{gpt_neo_self_attention.4} parent=80 // loop_header
                  %s357 = sphi 0, %s361
                  %p358 = scmp.ge.s32.totalorder %s357, 1
                  %s362 = sphi %s306, %s306
                  %s363 = sphi %s298, %s298
                $region84: #{gpt_neo_self_attention.4} parent=80 // loop_header_branch
                  %360 = sbr.rel (%p358) target = $region88
                $region85: #{gpt_neo_self_attention.4} parent=80 // loop_body
                  %v364 = vld [vmem:[%s362] sm:$0xff]
                  %365 = vst [vmem:[%s363] sm:$0xff] %v364
                  %v366 = vld [vmem:[%s362 + $0x30] sm:$0xff]
                  %367 = vst [vmem:[%s363 + $0x8] sm:$0xff] %v366
                  %v368 = vld [vmem:[%s362 + $0x60] sm:$0xff]
                  %369 = vst [vmem:[%s363 + $0x10] sm:$0xff] %v368
                  %v370 = vld [vmem:[%s362 + $0x90] sm:$0xff]
                  %371 = vst [vmem:[%s363 + $0x18] sm:$0xff] %v370
                  %v372 = vld [vmem:[%s362 + $0xc0] sm:$0xff]
                  %373 = vst [vmem:[%s363 + $0x20] sm:$0xff] %v372
                  %v374 = vld [vmem:[%s362 + $0xf0] sm:$0xff]
                  %375 = vst [vmem:[%s363 + $0x28] sm:$0xff] %v374
                  %v376 = vld [vmem:[%s362 + $0x120] sm:$0xff]
                  %377 = vst [vmem:[%s363 + $0x30] sm:$0xff] %v376
                  %v378 = vld [vmem:[%s362 + $0x150] sm:$0xff]
                  %379 = vst [vmem:[%s363 + $0x38] sm:$0xff] %v378
                  %v380 = vld [vmem:[%s362 + $0x180] sm:$0xff]
                  %381 = vst [vmem:[%s363 + $0x40] sm:$0xff] %v380
                  %v382 = vld [vmem:[%s362 + $0x1b0] sm:$0xff]
                  %383 = vst [vmem:[%s363 + $0x48] sm:$0xff] %v382
                  %v384 = vld [vmem:[%s362 + $0x1e0] sm:$0xff]
                  %385 = vst [vmem:[%s363 + $0x50] sm:$0xff] %v384
                  %v386 = vld [vmem:[%s362 + $0x210] sm:$0xff]
                  %387 = vst [vmem:[%s363 + $0x58] sm:$0xff] %v386
                  %v388 = vld [vmem:[%s362 + $0x240] sm:$0xff]
                  %389 = vst [vmem:[%s363 + $0x60] sm:$0xff] %v388
                  %v390 = vld [vmem:[%s362 + $0x270] sm:$0xff]
                  %391 = vst [vmem:[%s363 + $0x68] sm:$0xff] %v390
                  %v392 = vld [vmem:[%s362 + $0x2a0] sm:$0xff]
                  %393 = vst [vmem:[%s363 + $0x70] sm:$0xff] %v392
                  %v394 = vld [vmem:[%s362 + $0x2d0] sm:$0xff]
                  %395 = vst [vmem:[%s363 + $0x78] sm:$0xff] %v394
                $region86: #{gpt_neo_self_attention.4} parent=80 // loop_footer
                  %s361 = sadd.s32 1, %s357
                $region87: #{gpt_neo_self_attention.4} parent=80 // loop_footer_branch
                  %356 = sbr.rel target = $region83
                $region88: #{gpt_neo_self_attention.4} parent=80 // loop_exit
                  _
              $region81: #{gpt_neo_self_attention.4} parent=65 // pred_fallthru
                _
              // Predicated region
              $region89: #{gpt_neo_self_attention.4} parent=65 // pred_check
                _
              $region90: #{gpt_neo_self_attention.4} parent=65 // pred_check_branch
                %397 = sbr.rel target = $region92
              $region91: #{gpt_neo_self_attention.4} parent=65 // pred_region
                _
              $region92: #{gpt_neo_self_attention.4} parent=65 // pred_fallthru
                _
            $region66: #{gpt_neo_self_attention.4} parent=61 // pred_fallthru
              _
            // Predicated region
            $region67: #{gpt_neo_self_attention.4} parent=61 // pred_check
              _
            $region68: #{gpt_neo_self_attention.4} parent=61 // pred_check_branch
              %312 = sbr.rel target = $region70
            $region69: #{gpt_neo_self_attention.4} parent=61 // pred_region
              loop: start=0, step=1, limit=1
              $region71: #{gpt_neo_self_attention.4} parent=69 // loop_pre_header
                _
              $region72: #{gpt_neo_self_attention.4} parent=69 // loop_header
                %s315 = sphi 0, %s319
                %p316 = scmp.ge.s32.totalorder %s315, 1
                %s320 = sphi %s306, %s306
                %s321 = sphi %s298, %s298
              $region73: #{gpt_neo_self_attention.4} parent=69 // loop_header_branch
                %318 = sbr.rel (%p316) target = $region77
              $region74: #{gpt_neo_self_attention.4} parent=69 // loop_body
                %v322 = vld [vmem:[%s320] sm:$0xff]
                %323 = vst [vmem:[%s321] sm:$0xff] %v322
                %v324 = vld [vmem:[%s320 + $0x30] sm:$0xff]
                %325 = vst [vmem:[%s321 + $0x8] sm:$0xff] %v324
                %v326 = vld [vmem:[%s320 + $0x60] sm:$0xff]
                %327 = vst [vmem:[%s321 + $0x10] sm:$0xff] %v326
                %v328 = vld [vmem:[%s320 + $0x90] sm:$0xff]
                %329 = vst [vmem:[%s321 + $0x18] sm:$0xff] %v328
                %v330 = vld [vmem:[%s320 + $0xc0] sm:$0xff]
                %331 = vst [vmem:[%s321 + $0x20] sm:$0xff] %v330
                %v332 = vld [vmem:[%s320 + $0xf0] sm:$0xff]
                %333 = vst [vmem:[%s321 + $0x28] sm:$0xff] %v332
                %v334 = vld [vmem:[%s320 + $0x120] sm:$0xff]
                %335 = vst [vmem:[%s321 + $0x30] sm:$0xff] %v334
                %v336 = vld [vmem:[%s320 + $0x150] sm:$0xff]
                %337 = vst [vmem:[%s321 + $0x38] sm:$0xff] %v336
                %v338 = vld [vmem:[%s320 + $0x180] sm:$0xff]
                %339 = vst [vmem:[%s321 + $0x40] sm:$0xff] %v338
                %v340 = vld [vmem:[%s320 + $0x1b0] sm:$0xff]
                %341 = vst [vmem:[%s321 + $0x48] sm:$0xff] %v340
                %v342 = vld [vmem:[%s320 + $0x1e0] sm:$0xff]
                %343 = vst [vmem:[%s321 + $0x50] sm:$0xff] %v342
                %v344 = vld [vmem:[%s320 + $0x210] sm:$0xff]
                %345 = vst [vmem:[%s321 + $0x58] sm:$0xff] %v344
                %v346 = vld [vmem:[%s320 + $0x240] sm:$0xff]
                %347 = vst [vmem:[%s321 + $0x60] sm:$0xff] %v346
                %v348 = vld [vmem:[%s320 + $0x270] sm:$0xff]
                %349 = vst [vmem:[%s321 + $0x68] sm:$0xff] %v348
                %v350 = vld [vmem:[%s320 + $0x2a0] sm:$0xff]
                %351 = vst [vmem:[%s321 + $0x70] sm:$0xff] %v350
                %v352 = vld [vmem:[%s320 + $0x2d0] sm:$0xff]
                %353 = vst [vmem:[%s321 + $0x78] sm:$0xff] %v352
              $region75: #{gpt_neo_self_attention.4} parent=69 // loop_footer
                %s319 = sadd.s32 1, %s315
              $region76: #{gpt_neo_self_attention.4} parent=69 // loop_footer_branch
                %314 = sbr.rel target = $region72
              $region77: #{gpt_neo_self_attention.4} parent=69 // loop_exit
                _
            $region70: #{gpt_neo_self_attention.4} parent=61 // pred_fallthru
              _
          $region62: #{gpt_neo_self_attention.4} parent=57 // pred_fallthru
            _
          %398 = vnop
        $region58: #{gpt_neo_self_attention.4} parent=15 // pred_fallthru
          _
        // Predicated region
        $region93: #{gpt_neo_self_attention.4} parent=15 // pred_check
          %p399 = pneg %p129
        $region94: #{gpt_neo_self_attention.4} parent=15 // pred_check_branch
          %401 = sbr.rel (%p399) target = $region96
        $region95: #{gpt_neo_self_attention.4} parent=15 // pred_region
          %s402 = sand.u32 %s119, 1
          %s403 = sand.u32 %s119, 1
          %s404 = smul.addr %s403, 128
          %s405 = scalar_lea.vmem [#allocation7], %s404
          %s406 = smul.u32 %s16, 2
          %s407 = sadd.s32 %s406, %s19
          %s408 = sadd.s32 %s17, 4
          %s409 = smul.u32 16, %s407
          %s410 = smul.addr %s409, 6
          %s411 = sadd.s32 %s408, %s410
          %s412 = smul.addr %s411, 8
          %s413 = scalar_lea.vmem %s2, %s412
          // Predicated region
          $region97: #{gpt_neo_self_attention.4} parent=95 // pred_check
            _
          $region98: #{gpt_neo_self_attention.4} parent=95 // pred_check_branch
            %415 = sbr.rel (0) target = $region100
          $region99: #{gpt_neo_self_attention.4} parent=95 // pred_region
            // Predicated region
            $region101: #{gpt_neo_self_attention.4} parent=99 // pred_check
              _
            $region102: #{gpt_neo_self_attention.4} parent=99 // pred_check_branch
              %417 = sbr.rel (0) target = $region104
            $region103: #{gpt_neo_self_attention.4} parent=99 // pred_region
              // Predicated region
              $region116: #{gpt_neo_self_attention.4} parent=103 // pred_check
                _
              $region117: #{gpt_neo_self_attention.4} parent=103 // pred_check_branch
                %462 = sbr.rel (0) target = $region119
              $region118: #{gpt_neo_self_attention.4} parent=103 // pred_region
                loop: start=0, step=1, limit=1
                $region120: #{gpt_neo_self_attention.4} parent=118 // loop_pre_header
                  _
                $region121: #{gpt_neo_self_attention.4} parent=118 // loop_header
                  %s464 = sphi 0, %s468
                  %p465 = scmp.ge.s32.totalorder %s464, 1
                  %s469 = sphi %s413, %s413
                  %s470 = sphi %s405, %s405
                $region122: #{gpt_neo_self_attention.4} parent=118 // loop_header_branch
                  %467 = sbr.rel (%p465) target = $region126
                $region123: #{gpt_neo_self_attention.4} parent=118 // loop_body
                  %v471 = vld [vmem:[%s469] sm:$0xff]
                  %472 = vst [vmem:[%s470] sm:$0xff] %v471
                  %v473 = vld [vmem:[%s469 + $0x30] sm:$0xff]
                  %474 = vst [vmem:[%s470 + $0x8] sm:$0xff] %v473
                  %v475 = vld [vmem:[%s469 + $0x60] sm:$0xff]
                  %476 = vst [vmem:[%s470 + $0x10] sm:$0xff] %v475
                  %v477 = vld [vmem:[%s469 + $0x90] sm:$0xff]
                  %478 = vst [vmem:[%s470 + $0x18] sm:$0xff] %v477
                  %v479 = vld [vmem:[%s469 + $0xc0] sm:$0xff]
                  %480 = vst [vmem:[%s470 + $0x20] sm:$0xff] %v479
                  %v481 = vld [vmem:[%s469 + $0xf0] sm:$0xff]
                  %482 = vst [vmem:[%s470 + $0x28] sm:$0xff] %v481
                  %v483 = vld [vmem:[%s469 + $0x120] sm:$0xff]
                  %484 = vst [vmem:[%s470 + $0x30] sm:$0xff] %v483
                  %v485 = vld [vmem:[%s469 + $0x150] sm:$0xff]
                  %486 = vst [vmem:[%s470 + $0x38] sm:$0xff] %v485
                  %v487 = vld [vmem:[%s469 + $0x180] sm:$0xff]
                  %488 = vst [vmem:[%s470 + $0x40] sm:$0xff] %v487
                  %v489 = vld [vmem:[%s469 + $0x1b0] sm:$0xff]
                  %490 = vst [vmem:[%s470 + $0x48] sm:$0xff] %v489
                  %v491 = vld [vmem:[%s469 + $0x1e0] sm:$0xff]
                  %492 = vst [vmem:[%s470 + $0x50] sm:$0xff] %v491
                  %v493 = vld [vmem:[%s469 + $0x210] sm:$0xff]
                  %494 = vst [vmem:[%s470 + $0x58] sm:$0xff] %v493
                  %v495 = vld [vmem:[%s469 + $0x240] sm:$0xff]
                  %496 = vst [vmem:[%s470 + $0x60] sm:$0xff] %v495
                  %v497 = vld [vmem:[%s469 + $0x270] sm:$0xff]
                  %498 = vst [vmem:[%s470 + $0x68] sm:$0xff] %v497
                  %v499 = vld [vmem:[%s469 + $0x2a0] sm:$0xff]
                  %500 = vst [vmem:[%s470 + $0x70] sm:$0xff] %v499
                  %v501 = vld [vmem:[%s469 + $0x2d0] sm:$0xff]
                  %502 = vst [vmem:[%s470 + $0x78] sm:$0xff] %v501
                $region124: #{gpt_neo_self_attention.4} parent=118 // loop_footer
                  %s468 = sadd.s32 1, %s464
                $region125: #{gpt_neo_self_attention.4} parent=118 // loop_footer_branch
                  %463 = sbr.rel target = $region121
                $region126: #{gpt_neo_self_attention.4} parent=118 // loop_exit
                  _
              $region119: #{gpt_neo_self_attention.4} parent=103 // pred_fallthru
                _
              // Predicated region
              $region127: #{gpt_neo_self_attention.4} parent=103 // pred_check
                _
              $region128: #{gpt_neo_self_attention.4} parent=103 // pred_check_branch
                %504 = sbr.rel target = $region130
              $region129: #{gpt_neo_self_attention.4} parent=103 // pred_region
                _
              $region130: #{gpt_neo_self_attention.4} parent=103 // pred_fallthru
                _
            $region104: #{gpt_neo_self_attention.4} parent=99 // pred_fallthru
              _
            // Predicated region
            $region105: #{gpt_neo_self_attention.4} parent=99 // pred_check
              _
            $region106: #{gpt_neo_self_attention.4} parent=99 // pred_check_branch
              %419 = sbr.rel target = $region108
            $region107: #{gpt_neo_self_attention.4} parent=99 // pred_region
              loop: start=0, step=1, limit=1
              $region109: #{gpt_neo_self_attention.4} parent=107 // loop_pre_header
                _
              $region110: #{gpt_neo_self_attention.4} parent=107 // loop_header
                %s422 = sphi 0, %s426
                %p423 = scmp.ge.s32.totalorder %s422, 1
                %s427 = sphi %s413, %s413
                %s428 = sphi %s405, %s405
              $region111: #{gpt_neo_self_attention.4} parent=107 // loop_header_branch
                %425 = sbr.rel (%p423) target = $region115
              $region112: #{gpt_neo_self_attention.4} parent=107 // loop_body
                %v429 = vld [vmem:[%s427] sm:$0xff]
                %430 = vst [vmem:[%s428] sm:$0xff] %v429
                %v431 = vld [vmem:[%s427 + $0x30] sm:$0xff]
                %432 = vst [vmem:[%s428 + $0x8] sm:$0xff] %v431
                %v433 = vld [vmem:[%s427 + $0x60] sm:$0xff]
                %434 = vst [vmem:[%s428 + $0x10] sm:$0xff] %v433
                %v435 = vld [vmem:[%s427 + $0x90] sm:$0xff]
                %436 = vst [vmem:[%s428 + $0x18] sm:$0xff] %v435
                %v437 = vld [vmem:[%s427 + $0xc0] sm:$0xff]
                %438 = vst [vmem:[%s428 + $0x20] sm:$0xff] %v437
                %v439 = vld [vmem:[%s427 + $0xf0] sm:$0xff]
                %440 = vst [vmem:[%s428 + $0x28] sm:$0xff] %v439
                %v441 = vld [vmem:[%s427 + $0x120] sm:$0xff]
                %442 = vst [vmem:[%s428 + $0x30] sm:$0xff] %v441
                %v443 = vld [vmem:[%s427 + $0x150] sm:$0xff]
                %444 = vst [vmem:[%s428 + $0x38] sm:$0xff] %v443
                %v445 = vld [vmem:[%s427 + $0x180] sm:$0xff]
                %446 = vst [vmem:[%s428 + $0x40] sm:$0xff] %v445
                %v447 = vld [vmem:[%s427 + $0x1b0] sm:$0xff]
                %448 = vst [vmem:[%s428 + $0x48] sm:$0xff] %v447
                %v449 = vld [vmem:[%s427 + $0x1e0] sm:$0xff]
                %450 = vst [vmem:[%s428 + $0x50] sm:$0xff] %v449
                %v451 = vld [vmem:[%s427 + $0x210] sm:$0xff]
                %452 = vst [vmem:[%s428 + $0x58] sm:$0xff] %v451
                %v453 = vld [vmem:[%s427 + $0x240] sm:$0xff]
                %454 = vst [vmem:[%s428 + $0x60] sm:$0xff] %v453
                %v455 = vld [vmem:[%s427 + $0x270] sm:$0xff]
                %456 = vst [vmem:[%s428 + $0x68] sm:$0xff] %v455
                %v457 = vld [vmem:[%s427 + $0x2a0] sm:$0xff]
                %458 = vst [vmem:[%s428 + $0x70] sm:$0xff] %v457
                %v459 = vld [vmem:[%s427 + $0x2d0] sm:$0xff]
                %460 = vst [vmem:[%s428 + $0x78] sm:$0xff] %v459
              $region113: #{gpt_neo_self_attention.4} parent=107 // loop_footer
                %s426 = sadd.s32 1, %s422
              $region114: #{gpt_neo_self_attention.4} parent=107 // loop_footer_branch
                %421 = sbr.rel target = $region110
              $region115: #{gpt_neo_self_attention.4} parent=107 // loop_exit
                _
            $region108: #{gpt_neo_self_attention.4} parent=99 // pred_fallthru
              _
          $region100: #{gpt_neo_self_attention.4} parent=95 // pred_fallthru
            _
          %505 = vnop
        $region96: #{gpt_neo_self_attention.4} parent=15 // pred_fallthru
          _
      $region16: #{gpt_neo_self_attention.4} parent=5 // pred_fallthru
        _
      %p506 = scmp.le.s32.totalorder 1, %s9
      %p507 = scmp.lt.s32.totalorder %s9, 17
      %p508 = pnand %p506, %p507
      %p509 = pneg %p508
      // Predicated region
      $region131: #{gpt_neo_self_attention.4} parent=5 // pred_check
        _
      $region132: #{gpt_neo_self_attention.4} parent=5 // pred_check_branch
        %511 = sbr.rel (%p508) target = $region134
      $region133: #{gpt_neo_self_attention.4} parent=5 // pred_region
        %s512 = ssub.s32 %s9, 1
        %s513 = sand.u32 %s54, 1
        %s514 = sand.u32 %s54, 1
        %s515 = smul.addr %s514, 128
        %s516 = scalar_lea.vmem [#allocation5], %s515
        // Predicated region
        $region135: #{gpt_neo_self_attention.4} parent=133 // pred_check
          %p517 = pneg %p67
        $region136: #{gpt_neo_self_attention.4} parent=133 // pred_check_branch
          %519 = sbr.rel (%p517) target = $region138
        $region137: #{gpt_neo_self_attention.4} parent=133 // pred_region
          _
        $region138: #{gpt_neo_self_attention.4} parent=133 // pred_fallthru
          _
        %s520 = sand.u32 %s88, 1
        %s521 = sand.u32 %s88, 1
        %s522 = smul.addr %s521, 128
        %s523 = scalar_lea.vmem [#allocation6], %s522
        // Predicated region
        $region139: #{gpt_neo_self_attention.4} parent=133 // pred_check
          %p524 = pneg %p101
        $region140: #{gpt_neo_self_attention.4} parent=133 // pred_check_branch
          %526 = sbr.rel (%p524) target = $region142
        $region141: #{gpt_neo_self_attention.4} parent=133 // pred_region
          _
        $region142: #{gpt_neo_self_attention.4} parent=133 // pred_fallthru
          _
        %s527 = sand.u32 %s122, 1
        %s528 = sand.u32 %s122, 1
        %s529 = smul.addr %s528, 128
        %s530 = scalar_lea.vmem [#allocation7], %s529
        // Predicated region
        $region143: #{gpt_neo_self_attention.4} parent=133 // pred_check
          %p531 = pneg %p135
        $region144: #{gpt_neo_self_attention.4} parent=133 // pred_check_branch
          %533 = sbr.rel (%p531) target = $region146
        $region145: #{gpt_neo_self_attention.4} parent=133 // pred_region
          _
        $region146: #{gpt_neo_self_attention.4} parent=133 // pred_fallthru
          _
        %s534 = sand.u32 %s54, 1
        %s535 = sand.u32 %s54, 1
        %s536 = smul.addr %s535, 128
        %s537 = scalar_lea.vmem [#allocation5], %s536
        %p538 = pneg %p67
        %p539 = pneg %p64
        %s540 = sand.u32 %s88, 1
        %s541 = sand.u32 %s88, 1
        %s542 = smul.addr %s541, 128
        %s543 = scalar_lea.vmem [#allocation6], %s542
        %p544 = pneg %p101
        %p545 = pneg %p98
        %s546 = sand.u32 %s122, 1
        %s547 = sand.u32 %s122, 1
        %s548 = smul.addr %s547, 128
        %s549 = scalar_lea.vmem [#allocation7], %s548
        %p550 = pneg %p135
        %p551 = pneg %p132
        %p552 = pneg %p167
        %p553 = pneg %p164
        %s554 = sand.u32 %s154, 1
        %s555 = sand.u32 %s154, 1
        %s556 = smul.addr %s555, 128
        %s557 = scalar_lea.vmem [#allocation8], %s556
        %s558 = smul.u32 %s20, 2
        %s559 = sadd.s32 %s558, %s22
        %s560 = smul.u32 16, %s559
        %s561 = smul.u32 %s20, 2
        %s562 = sadd.s32 %s561, %s23
        %s563 = sadd.s32 %s21, 2
        %s564 = smul.u32 16, %s562
        %s565 = smul.u32 %s20, 2
        %s566 = sadd.s32 %s565, %s23
        %s567 = sadd.s32 %s21, 4
        %s568 = smul.u32 16, %s566
        %s569 = smul.u32 %s20, 2
        %s570 = sadd.s32 %s569, %s22
        %s571 = smul.u32 16, %s570
        %p572 = scmp.eq.s32.totalorder %s23, 0
        // Predicated region
        $region147: #{gpt_neo_self_attention.4} parent=133 // pred_check
          %p573 = pneg %p572
        $region148: #{gpt_neo_self_attention.4} parent=133 // pred_check_branch
          %575 = sbr.rel (%p573) target = $region150
        $region149: #{gpt_neo_self_attention.4} parent=133 // pred_region
          %vm576 = vcmask 7168
          %577 = vst.msk [vmem:[#allocation2] sm:$0xff] %vm576, -inf
          %578 = vst.msk [vmem:[#allocation2 + $0x8] sm:$0xff] %vm576, -inf
          %579 = vst.msk [vmem:[#allocation2 + $0x10] sm:$0xff] %vm576, -inf
          %580 = vst.msk [vmem:[#allocation2 + $0x18] sm:$0xff] %vm576, -inf
          %581 = vst.msk [vmem:[#allocation2 + $0x20] sm:$0xff] %vm576, -inf
          %582 = vst.msk [vmem:[#allocation2 + $0x28] sm:$0xff] %vm576, -inf
          %583 = vst.msk [vmem:[#allocation2 + $0x30] sm:$0xff] %vm576, -inf
          %584 = vst.msk [vmem:[#allocation2 + $0x38] sm:$0xff] %vm576, -inf
          %585 = vst.msk [vmem:[#allocation2 + $0x40] sm:$0xff] %vm576, -inf
          %586 = vst.msk [vmem:[#allocation2 + $0x48] sm:$0xff] %vm576, -inf
          %587 = vst.msk [vmem:[#allocation2 + $0x50] sm:$0xff] %vm576, -inf
          %588 = vst.msk [vmem:[#allocation2 + $0x58] sm:$0xff] %vm576, -inf
          %589 = vst.msk [vmem:[#allocation2 + $0x60] sm:$0xff] %vm576, -inf
          %590 = vst.msk [vmem:[#allocation2 + $0x68] sm:$0xff] %vm576, -inf
          %591 = vst.msk [vmem:[#allocation2 + $0x70] sm:$0xff] %vm576, -inf
          %592 = vst.msk [vmem:[#allocation2 + $0x78] sm:$0xff] %vm576, -inf
          %593 = vst.msk [vmem:[#allocation3] sm:$0xff] %vm576, 0.0
          %594 = vst.msk [vmem:[#allocation3 + $0x8] sm:$0xff] %vm576, 0.0
          %595 = vst.msk [vmem:[#allocation3 + $0x10] sm:$0xff] %vm576, 0.0
          %596 = vst.msk [vmem:[#allocation3 + $0x18] sm:$0xff] %vm576, 0.0
          %597 = vst.msk [vmem:[#allocation3 + $0x20] sm:$0xff] %vm576, 0.0
          %598 = vst.msk [vmem:[#allocation3 + $0x28] sm:$0xff] %vm576, 0.0
          %599 = vst.msk [vmem:[#allocation3 + $0x30] sm:$0xff] %vm576, 0.0
          %600 = vst.msk [vmem:[#allocation3 + $0x38] sm:$0xff] %vm576, 0.0
          %601 = vst.msk [vmem:[#allocation3 + $0x40] sm:$0xff] %vm576, 0.0
          %602 = vst.msk [vmem:[#allocation3 + $0x48] sm:$0xff] %vm576, 0.0
          %603 = vst.msk [vmem:[#allocation3 + $0x50] sm:$0xff] %vm576, 0.0
          %604 = vst.msk [vmem:[#allocation3 + $0x58] sm:$0xff] %vm576, 0.0
          %605 = vst.msk [vmem:[#allocation3 + $0x60] sm:$0xff] %vm576, 0.0
          %606 = vst.msk [vmem:[#allocation3 + $0x68] sm:$0xff] %vm576, 0.0
          %607 = vst.msk [vmem:[#allocation3 + $0x70] sm:$0xff] %vm576, 0.0
          %608 = vst.msk [vmem:[#allocation3 + $0x78] sm:$0xff] %vm576, 0.0
          %609 = vst [vmem:[#allocation4] sm:$0xff] 0.0
          %610 = vst [vmem:[#allocation4 + $0x8] sm:$0xff] 0.0
          %611 = vst [vmem:[#allocation4 + $0x10] sm:$0xff] 0.0
          %612 = vst [vmem:[#allocation4 + $0x18] sm:$0xff] 0.0
          %613 = vst [vmem:[#allocation4 + $0x20] sm:$0xff] 0.0
          %614 = vst [vmem:[#allocation4 + $0x28] sm:$0xff] 0.0
          %615 = vst [vmem:[#allocation4 + $0x30] sm:$0xff] 0.0
          %616 = vst [vmem:[#allocation4 + $0x38] sm:$0xff] 0.0
          %617 = vst [vmem:[#allocation4 + $0x40] sm:$0xff] 0.0
          %618 = vst [vmem:[#allocation4 + $0x48] sm:$0xff] 0.0
          %619 = vst [vmem:[#allocation4 + $0x50] sm:$0xff] 0.0
          %620 = vst [vmem:[#allocation4 + $0x58] sm:$0xff] 0.0
          %621 = vst [vmem:[#allocation4 + $0x60] sm:$0xff] 0.0
          %622 = vst [vmem:[#allocation4 + $0x68] sm:$0xff] 0.0
          %623 = vst [vmem:[#allocation4 + $0x70] sm:$0xff] 0.0
          %624 = vst [vmem:[#allocation4 + $0x78] sm:$0xff] 0.0
        $region150: #{gpt_neo_self_attention.4} parent=133 // pred_fallthru
          _
        %s625 = smul.u32 %s22, 128
        %s626 = smul.u32 %s23, 128
        %s627 = sadd.s32 %s625, 127
        %p628 = scmp.le.s32.totalorder %s626, %s627
        // Predicated region
        $region151: #{gpt_neo_self_attention.4} parent=133 // pred_check
          %p629 = pneg %p628
        $region152: #{gpt_neo_self_attention.4} parent=133 // pred_check_branch
          %631 = sbr.rel (%p629) target = $region154
        $region153: #{gpt_neo_self_attention.4} parent=133 // pred_region
          %v632 = vld [vmem:[%s516] sm:$0xff]
          %v633 = vld [vmem:[%s516 + $0x8] sm:$0xff]
          %v634 = vld [vmem:[%s516 + $0x10] sm:$0xff]
          %v635 = vld [vmem:[%s516 + $0x18] sm:$0xff]
          %v636 = vld [vmem:[%s516 + $0x20] sm:$0xff]
          %v637 = vld [vmem:[%s516 + $0x28] sm:$0xff]
          %v638 = vld [vmem:[%s516 + $0x30] sm:$0xff]
          %v639 = vld [vmem:[%s516 + $0x38] sm:$0xff]
          %v640 = vld [vmem:[%s516 + $0x40] sm:$0xff]
          %v641 = vld [vmem:[%s516 + $0x48] sm:$0xff]
          %v642 = vld [vmem:[%s516 + $0x50] sm:$0xff]
          %v643 = vld [vmem:[%s516 + $0x58] sm:$0xff]
          %v644 = vld [vmem:[%s516 + $0x60] sm:$0xff]
          %v645 = vld [vmem:[%s516 + $0x68] sm:$0xff]
          %v646 = vld [vmem:[%s516 + $0x70] sm:$0xff]
          %v647 = vld [vmem:[%s516 + $0x78] sm:$0xff]
          %v648 = vld [vmem:[%s523] sm:$0xff]
          %v649 = vld [vmem:[%s523 + $0x8] sm:$0xff]
          %v650 = vld [vmem:[%s523 + $0x10] sm:$0xff]
          %v651 = vld [vmem:[%s523 + $0x18] sm:$0xff]
          %v652 = vld [vmem:[%s523 + $0x20] sm:$0xff]
          %v653 = vld [vmem:[%s523 + $0x28] sm:$0xff]
          %v654 = vld [vmem:[%s523 + $0x30] sm:$0xff]
          %v655 = vld [vmem:[%s523 + $0x38] sm:$0xff]
          %v656 = vld [vmem:[%s523 + $0x40] sm:$0xff]
          %v657 = vld [vmem:[%s523 + $0x48] sm:$0xff]
          %v658 = vld [vmem:[%s523 + $0x50] sm:$0xff]
          %v659 = vld [vmem:[%s523 + $0x58] sm:$0xff]
          %v660 = vld [vmem:[%s523 + $0x60] sm:$0xff]
          %v661 = vld [vmem:[%s523 + $0x68] sm:$0xff]
          %v662 = vld [vmem:[%s523 + $0x70] sm:$0xff]
          %v663 = vld [vmem:[%s523 + $0x78] sm:$0xff]
          %664 = vmatprep.subr.mxu0 0.0
          %665 = vmatpush1.xpose.msra.mxu0 %v648
          %666 = vmatprep.subr.mxu0 0.0
          %667 = vmatpush1.xpose.msra.mxu0 %v649
          %668 = vmatprep.subr.mxu0 0.0
          %669 = vmatpush1.xpose.msra.mxu0 %v650
          %670 = vmatprep.subr.mxu0 0.0
          %671 = vmatpush1.xpose.msra.mxu0 %v651
          %672 = vmatprep.subr.mxu0 0.0
          %673 = vmatpush1.xpose.msra.mxu0 %v652
          %674 = vmatprep.subr.mxu0 0.0
          %675 = vmatpush1.xpose.msra.mxu0 %v653
          %676 = vmatprep.subr.mxu0 0.0
          %677 = vmatpush1.xpose.msra.mxu0 %v654
          %678 = vmatprep.subr.mxu0 0.0
          %679 = vmatpush1.xpose.msra.mxu0 %v655
          %680 = vmatprep.subr.mxu0 0.0
          %681 = vmatpush1.xpose.msra.mxu0 %v656
          %682 = vmatprep.subr.mxu0 0.0
          %683 = vmatpush1.xpose.msra.mxu0 %v657
          %684 = vmatprep.subr.mxu0 0.0
          %685 = vmatpush1.xpose.msra.mxu0 %v658
          %686 = vmatprep.subr.mxu0 0.0
          %687 = vmatpush1.xpose.msra.mxu0 %v659
          %688 = vmatprep.subr.mxu0 0.0
          %689 = vmatpush1.xpose.msra.mxu0 %v660
          %690 = vmatprep.subr.mxu0 0.0
          %691 = vmatpush1.xpose.msra.mxu0 %v661
          %692 = vmatprep.subr.mxu0 0.0
          %693 = vmatpush1.xpose.msra.mxu0 %v662
          %694 = vmatprep.subr.mxu0 0.0
          %695 = vmatpush1.xpose.msra.mxu0 %v663
          %696 = vmatprep.subr.mxu0 0.0
          %697 = vmatpush1.xpose.msra.mxu0 0.0
          %698 = vmatprep.subr.mxu0 0.0
          %699 = vmatpush1.xpose.msra.mxu0 0.0
          %700 = vmatprep.subr.mxu0 0.0
          %701 = vmatpush1.xpose.msra.mxu0 0.0
          %702 = vmatprep.subr.mxu0 0.0
          %703 = vmatpush1.xpose.msra.mxu0 0.0
          %704 = vmatprep.subr.mxu0 0.0
          %705 = vmatpush1.xpose.msra.mxu0 0.0
          %706 = vmatprep.subr.mxu0 0.0
          %707 = vmatpush1.xpose.msra.mxu0 0.0
          %708 = vmatprep.subr.mxu0 0.0
          %709 = vmatpush1.xpose.msra.mxu0 0.0
          %710 = vmatprep.subr.mxu0 0.0
          %711 = vmatpush1.xpose.msra.mxu0 0.0
          %712 = vmatprep.subr.mxu0 0.0
          %713 = vmatpush1.xpose.msra.mxu0 0.0
          %714 = vmatprep.subr.mxu0 0.0
          %715 = vmatpush1.xpose.msra.mxu0 0.0
          %716 = vmatprep.subr.mxu0 0.0
          %717 = vmatpush1.xpose.msra.mxu0 0.0
          %718 = vmatprep.subr.mxu0 0.0
          %719 = vmatpush1.xpose.msra.mxu0 0.0
          %720 = vmatprep.subr.mxu0 0.0
          %721 = vmatpush1.xpose.msra.mxu0 0.0
          %722 = vmatprep.subr.mxu0 0.0
          %723 = vmatpush1.xpose.msra.mxu0 0.0
          %724 = vmatprep.subr.mxu0 0.0
          %725 = vmatpush1.xpose.msra.mxu0 0.0
          %726 = vmatprep.subr.mxu0 0.0
          %727 = vmatpush1.xpose.msra.mxu0 0.0
          %728 = vmatprep.mubr.f32.mxu0 0.0
          %729 = vmatmul.mubr.f32.gmra.mrb[0].mxu0 %v632
          %v730 = vpop.f32.mrb[0].mxu0
          %v731 = vadd.f32 0.0, %v730
          %v732 = vpop.f32.mrb[0].mxu0
          %733 = vmatprep.mubr.f32.mxu0 0.0
          %734 = vmatmul.mubr.f32.gmra.mrb[0].mxu0 %v633
          %v735 = vpop.f32.mrb[0].mxu0
          %v736 = vadd.f32 0.0, %v735
          %v737 = vpop.f32.mrb[0].mxu0
          %738 = vmatprep.mubr.f32.mxu0 0.0
          %739 = vmatmul.mubr.f32.gmra.mrb[0].mxu0 %v634
          %v740 = vpop.f32.mrb[0].mxu0
          %v741 = vadd.f32 0.0, %v740
          %v742 = vpop.f32.mrb[0].mxu0
          %743 = vmatprep.mubr.f32.mxu0 0.0
          %744 = vmatmul.mubr.f32.gmra.mrb[0].mxu0 %v635
          %v745 = vpop.f32.mrb[0].mxu0
          %v746 = vadd.f32 0.0, %v745
          %v747 = vpop.f32.mrb[0].mxu0
          %748 = vmatprep.mubr.f32.mxu0 0.0
          %749 = vmatmul.mubr.f32.gmra.mrb[0].mxu0 %v636
          %v750 = vpop.f32.mrb[0].mxu0
          %v751 = vadd.f32 0.0, %v750
          %v752 = vpop.f32.mrb[0].mxu0
          %753 = vmatprep.mubr.f32.mxu0 0.0
          %754 = vmatmul.mubr.f32.gmra.mrb[0].mxu0 %v637
          %v755 = vpop.f32.mrb[0].mxu0
          %v756 = vadd.f32 0.0, %v755
          %v757 = vpop.f32.mrb[0].mxu0
          %758 = vmatprep.mubr.f32.mxu0 0.0
          %759 = vmatmul.mubr.f32.gmra.mrb[0].mxu0 %v638
          %v760 = vpop.f32.mrb[0].mxu0
          %v761 = vadd.f32 0.0, %v760
          %v762 = vpop.f32.mrb[0].mxu0
          %763 = vmatprep.mubr.f32.mxu0 0.0
          %764 = vmatmul.mubr.f32.gmra.mrb[0].mxu0 %v639
          %v765 = vpop.f32.mrb[0].mxu0
          %v766 = vadd.f32 0.0, %v765
          %v767 = vpop.f32.mrb[0].mxu0
          %768 = vmatprep.mubr.f32.mxu0 0.0
          %769 = vmatmul.mubr.f32.gmra.mrb[0].mxu0 %v640
          %v770 = vpop.f32.mrb[0].mxu0
          %v771 = vadd.f32 0.0, %v770
          %v772 = vpop.f32.mrb[0].mxu0
          %773 = vmatprep.mubr.f32.mxu0 0.0
          %774 = vmatmul.mubr.f32.gmra.mrb[0].mxu0 %v641
          %v775 = vpop.f32.mrb[0].mxu0
          %v776 = vadd.f32 0.0, %v775
          %v777 = vpop.f32.mrb[0].mxu0
          %778 = vmatprep.mubr.f32.mxu0 0.0
          %779 = vmatmul.mubr.f32.gmra.mrb[0].mxu0 %v642
          %v780 = vpop.f32.mrb[0].mxu0
          %v781 = vadd.f32 0.0, %v780
          %v782 = vpop.f32.mrb[0].mxu0
          %783 = vmatprep.mubr.f32.mxu0 0.0
          %784 = vmatmul.mubr.f32.gmra.mrb[0].mxu0 %v643
          %v785 = vpop.f32.mrb[0].mxu0
          %v786 = vadd.f32 0.0, %v785
          %v787 = vpop.f32.mrb[0].mxu0
          %788 = vmatprep.mubr.f32.mxu0 0.0
          %789 = vmatmul.mubr.f32.gmra.mrb[0].mxu0 %v644
          %v790 = vpop.f32.mrb[0].mxu0
          %v791 = vadd.f32 0.0, %v790
          %v792 = vpop.f32.mrb[0].mxu0
          %793 = vmatprep.mubr.f32.mxu0 0.0
          %794 = vmatmul.mubr.f32.gmra.mrb[0].mxu0 %v645
          %v795 = vpop.f32.mrb[0].mxu0
          %v796 = vadd.f32 0.0, %v795
          %v797 = vpop.f32.mrb[0].mxu0
          %798 = vmatprep.mubr.f32.mxu0 0.0
          %799 = vmatmul.mubr.f32.gmra.mrb[0].mxu0 %v646
          %v800 = vpop.f32.mrb[0].mxu0
          %v801 = vadd.f32 0.0, %v800
          %v802 = vpop.f32.mrb[0].mxu0
          %803 = vmatprep.mubr.f32.mxu0 0.0
          %804 = vmatmul.mubr.f32.gmra.mrb[0].mxu0 %v647
          %v805 = vpop.f32.mrb[0].mxu0
          %v806 = vadd.f32 0.0, %v805
          %v807 = vpop.f32.mrb[0].mxu0
          %808 = vdwg.mxu0
          %v809 = vlaneseq
          %v810 = vshrl.u32 %v809, 7
          %v811 = vadd.s32 %v810, 8
          %v812 = vadd.s32 %v810, 16
          %v813 = vadd.s32 %v810, 24
          %v814 = vadd.s32 %v810, 32
          %v815 = vadd.s32 %v810, 40
          %v816 = vadd.s32 %v810, 48
          %v817 = vadd.s32 %v810, 56
          %v818 = vadd.s32 %v810, 64
          %v819 = vadd.s32 %v810, 72
          %v820 = vadd.s32 %v810, 80
          %v821 = vadd.s32 %v810, 88
          %v822 = vadd.s32 %v810, 96
          %v823 = vadd.s32 %v810, 104
          %v824 = vadd.s32 %v810, 112
          %v825 = vadd.s32 %v810, 120
          %v826 = vstv %s625
          %v827 = vadd.s32 %v826, %v810
          %v828 = vadd.s32 %v826, %v811
          %v829 = vadd.s32 %v826, %v812
          %v830 = vadd.s32 %v826, %v813
          %v831 = vadd.s32 %v826, %v814
          %v832 = vadd.s32 %v826, %v815
          %v833 = vadd.s32 %v826, %v816
          %v834 = vadd.s32 %v826, %v817
          %v835 = vadd.s32 %v826, %v818
          %v836 = vadd.s32 %v826, %v819
          %v837 = vadd.s32 %v826, %v820
          %v838 = vadd.s32 %v826, %v821
          %v839 = vadd.s32 %v826, %v822
          %v840 = vadd.s32 %v826, %v823
          %v841 = vadd.s32 %v826, %v824
          %v842 = vadd.s32 %v826, %v825
          %v843 = vlaneseq
          %v844 = vand.u32 %v843, 127
          %v845 = vstv %s626
          %v846 = vadd.s32 %v845, %v844
          %vm847 = vcmp.le.s32.totalorder %v846, %v827
          %vm848 = vcmp.le.s32.totalorder %v846, %v828
          %vm849 = vcmp.le.s32.totalorder %v846, %v829
          %vm850 = vcmp.le.s32.totalorder %v846, %v830
          %vm851 = vcmp.le.s32.totalorder %v846, %v831
          %vm852 = vcmp.le.s32.totalorder %v846, %v832
          %vm853 = vcmp.le.s32.totalorder %v846, %v833
          %vm854 = vcmp.le.s32.totalorder %v846, %v834
          %vm855 = vcmp.le.s32.totalorder %v846, %v835
          %vm856 = vcmp.le.s32.totalorder %v846, %v836
          %vm857 = vcmp.le.s32.totalorder %v846, %v837
          %vm858 = vcmp.le.s32.totalorder %v846, %v838
          %vm859 = vcmp.le.s32.totalorder %v846, %v839
          %vm860 = vcmp.le.s32.totalorder %v846, %v840
          %vm861 = vcmp.le.s32.totalorder %v846, %v841
          %vm862 = vcmp.le.s32.totalorder %v846, %v842
          %v863 = vsel %vm847, %v731, -1e+09
          %v864 = vsel %vm848, %v736, -1e+09
          %v865 = vsel %vm849, %v741, -1e+09
          %v866 = vsel %vm850, %v746, -1e+09
          %v867 = vsel %vm851, %v751, -1e+09
          %v868 = vsel %vm852, %v756, -1e+09
          %v869 = vsel %vm853, %v761, -1e+09
          %v870 = vsel %vm854, %v766, -1e+09
          %v871 = vsel %vm855, %v771, -1e+09
          %v872 = vsel %vm856, %v776, -1e+09
          %v873 = vsel %vm857, %v781, -1e+09
          %v874 = vsel %vm858, %v786, -1e+09
          %v875 = vsel %vm859, %v791, -1e+09
          %v876 = vsel %vm860, %v796, -1e+09
          %v877 = vsel %vm861, %v801, -1e+09
          %v878 = vsel %vm862, %v806, -1e+09
          %v879 = vld [vmem:[#allocation2] sm:$0xff]
          %v880 = vld [vmem:[#allocation2 + $0x8] sm:$0xff]
          %v881 = vld [vmem:[#allocation2 + $0x10] sm:$0xff]
          %v882 = vld [vmem:[#allocation2 + $0x18] sm:$0xff]
          %v883 = vld [vmem:[#allocation2 + $0x20] sm:$0xff]
          %v884 = vld [vmem:[#allocation2 + $0x28] sm:$0xff]
          %v885 = vld [vmem:[#allocation2 + $0x30] sm:$0xff]
          %v886 = vld [vmem:[#allocation2 + $0x38] sm:$0xff]
          %v887 = vld [vmem:[#allocation2 + $0x40] sm:$0xff]
          %v888 = vld [vmem:[#allocation2 + $0x48] sm:$0xff]
          %v889 = vld [vmem:[#allocation2 + $0x50] sm:$0xff]
          %v890 = vld [vmem:[#allocation2 + $0x58] sm:$0xff]
          %v891 = vld [vmem:[#allocation2 + $0x60] sm:$0xff]
          %v892 = vld [vmem:[#allocation2 + $0x68] sm:$0xff]
          %v893 = vld [vmem:[#allocation2 + $0x70] sm:$0xff]
          %v894 = vld [vmem:[#allocation2 + $0x78] sm:$0xff]
          %895 = vmax.xlane.f32.xlu0 %v863
          %v896 = vpop.xlane.xlu0 %895
          %897 = vmax.xlane.f32.xlu0 %v864
          %v898 = vpop.xlane.xlu0 %897
          %899 = vmax.xlane.f32.xlu0 %v865
          %v900 = vpop.xlane.xlu0 %899
          %901 = vmax.xlane.f32.xlu0 %v866
          %v902 = vpop.xlane.xlu0 %901
          %903 = vmax.xlane.f32.xlu0 %v867
          %v904 = vpop.xlane.xlu0 %903
          %905 = vmax.xlane.f32.xlu0 %v868
          %v906 = vpop.xlane.xlu0 %905
          %907 = vmax.xlane.f32.xlu0 %v869
          %v908 = vpop.xlane.xlu0 %907
          %909 = vmax.xlane.f32.xlu0 %v870
          %v910 = vpop.xlane.xlu0 %909
          %911 = vmax.xlane.f32.xlu0 %v871
          %v912 = vpop.xlane.xlu0 %911
          %913 = vmax.xlane.f32.xlu0 %v872
          %v914 = vpop.xlane.xlu0 %913
          %915 = vmax.xlane.f32.xlu0 %v873
          %v916 = vpop.xlane.xlu0 %915
          %917 = vmax.xlane.f32.xlu0 %v874
          %v918 = vpop.xlane.xlu0 %917
          %919 = vmax.xlane.f32.xlu0 %v875
          %v920 = vpop.xlane.xlu0 %919
          %921 = vmax.xlane.f32.xlu0 %v876
          %v922 = vpop.xlane.xlu0 %921
          %923 = vmax.xlane.f32.xlu0 %v877
          %v924 = vpop.xlane.xlu0 %923
          %925 = vmax.xlane.f32.xlu0 %v878
          %v926 = vpop.xlane.xlu0 %925
          %v927 = vmax.f32 %v879, %v896
          %v928 = vmax.f32 %v880, %v898
          %v929 = vmax.f32 %v881, %v900
          %v930 = vmax.f32 %v882, %v902
          %v931 = vmax.f32 %v883, %v904
          %v932 = vmax.f32 %v884, %v906
          %v933 = vmax.f32 %v885, %v908
          %v934 = vmax.f32 %v886, %v910
          %v935 = vmax.f32 %v887, %v912
          %v936 = vmax.f32 %v888, %v914
          %v937 = vmax.f32 %v889, %v916
          %v938 = vmax.f32 %v890, %v918
          %v939 = vmax.f32 %v891, %v920
          %v940 = vmax.f32 %v892, %v922
          %v941 = vmax.f32 %v893, %v924
          %v942 = vmax.f32 %v894, %v926
          %v943 = vsub.f32 %v879, %v927
          %v944 = vsub.f32 %v880, %v928
          %v945 = vsub.f32 %v881, %v929
          %v946 = vsub.f32 %v882, %v930
          %v947 = vsub.f32 %v883, %v931
          %v948 = vsub.f32 %v884, %v932
          %v949 = vsub.f32 %v885, %v933
          %v950 = vsub.f32 %v886, %v934
          %v951 = vsub.f32 %v887, %v935
          %v952 = vsub.f32 %v888, %v936
          %v953 = vsub.f32 %v889, %v937
          %v954 = vsub.f32 %v890, %v938
          %v955 = vsub.f32 %v891, %v939
          %v956 = vsub.f32 %v892, %v940
          %v957 = vsub.f32 %v893, %v941
          %v958 = vsub.f32 %v894, %v942
          %v959 = vmul.f32 %v943, 1.442695
          %v960 = vpow.pop %v959
          %v961 = vmul.f32 %v944, 1.442695
          %v962 = vpow.pop %v961
          %v963 = vmul.f32 %v945, 1.442695
          %v964 = vpow.pop %v963
          %v965 = vmul.f32 %v946, 1.442695
          %v966 = vpow.pop %v965
          %v967 = vmul.f32 %v947, 1.442695
          %v968 = vpow.pop %v967
          %v969 = vmul.f32 %v948, 1.442695
          %v970 = vpow.pop %v969
          %v971 = vmul.f32 %v949, 1.442695
          %v972 = vpow.pop %v971
          %v973 = vmul.f32 %v950, 1.442695
          %v974 = vpow.pop %v973
          %v975 = vmul.f32 %v951, 1.442695
          %v976 = vpow.pop %v975
          %v977 = vmul.f32 %v952, 1.442695
          %v978 = vpow.pop %v977
          %v979 = vmul.f32 %v953, 1.442695
          %v980 = vpow.pop %v979
          %v981 = vmul.f32 %v954, 1.442695
          %v982 = vpow.pop %v981
          %v983 = vmul.f32 %v955, 1.442695
          %v984 = vpow.pop %v983
          %v985 = vmul.f32 %v956, 1.442695
          %v986 = vpow.pop %v985
          %v987 = vmul.f32 %v957, 1.442695
          %v988 = vpow.pop %v987
          %v989 = vmul.f32 %v958, 1.442695
          %v990 = vpow.pop %v989
          %992 = vset.pattern.permute.xlu0 0
          %993 = vperm.xlu0 %992, %v927
          %v994 = vpop.permute.xlu0 %993
          %997 = vset.pattern.permute.xlu0 0
          %998 = vperm.xlu0 %997, %v928
          %v999 = vpop.permute.xlu0 %998
          %1002 = vset.pattern.permute.xlu0 0
          %1003 = vperm.xlu0 %1002, %v929
          %v1004 = vpop.permute.xlu0 %1003
          %1007 = vset.pattern.permute.xlu0 0
          %1008 = vperm.xlu0 %1007, %v930
          %v1009 = vpop.permute.xlu0 %1008
          %1012 = vset.pattern.permute.xlu0 0
          %1013 = vperm.xlu0 %1012, %v931
          %v1014 = vpop.permute.xlu0 %1013
          %1017 = vset.pattern.permute.xlu0 0
          %1018 = vperm.xlu0 %1017, %v932
          %v1019 = vpop.permute.xlu0 %1018
          %1022 = vset.pattern.permute.xlu0 0
          %1023 = vperm.xlu0 %1022, %v933
          %v1024 = vpop.permute.xlu0 %1023
          %1027 = vset.pattern.permute.xlu0 0
          %1028 = vperm.xlu0 %1027, %v934
          %v1029 = vpop.permute.xlu0 %1028
          %1032 = vset.pattern.permute.xlu0 0
          %1033 = vperm.xlu0 %1032, %v935
          %v1034 = vpop.permute.xlu0 %1033
          %1037 = vset.pattern.permute.xlu0 0
          %1038 = vperm.xlu0 %1037, %v936
          %v1039 = vpop.permute.xlu0 %1038
          %1042 = vset.pattern.permute.xlu0 0
          %1043 = vperm.xlu0 %1042, %v937
          %v1044 = vpop.permute.xlu0 %1043
          %1047 = vset.pattern.permute.xlu0 0
          %1048 = vperm.xlu0 %1047, %v938
          %v1049 = vpop.permute.xlu0 %1048
          %1052 = vset.pattern.permute.xlu0 0
          %1053 = vperm.xlu0 %1052, %v939
          %v1054 = vpop.permute.xlu0 %1053
          %1057 = vset.pattern.permute.xlu0 0
          %1058 = vperm.xlu0 %1057, %v940
          %v1059 = vpop.permute.xlu0 %1058
          %1062 = vset.pattern.permute.xlu0 0
          %1063 = vperm.xlu0 %1062, %v941
          %v1064 = vpop.permute.xlu0 %1063
          %1067 = vset.pattern.permute.xlu0 0
          %1068 = vperm.xlu0 %1067, %v942
          %v1069 = vpop.permute.xlu0 %1068
          %v1071 = vsub.f32 %v863, %v994
          %v1072 = vsub.f32 %v864, %v999
          %v1073 = vsub.f32 %v865, %v1004
          %v1074 = vsub.f32 %v866, %v1009
          %v1075 = vsub.f32 %v867, %v1014
          %v1076 = vsub.f32 %v868, %v1019
          %v1077 = vsub.f32 %v869, %v1024
          %v1078 = vsub.f32 %v870, %v1029
          %v1079 = vsub.f32 %v871, %v1034
          %v1080 = vsub.f32 %v872, %v1039
          %v1081 = vsub.f32 %v873, %v1044
          %v1082 = vsub.f32 %v874, %v1049
          %v1083 = vsub.f32 %v875, %v1054
          %v1084 = vsub.f32 %v876, %v1059
          %v1085 = vsub.f32 %v877, %v1064
          %v1086 = vsub.f32 %v878, %v1069
          %v1087 = vmul.f32 %v1071, 1.442695
          %v1088 = vpow.pop %v1087
          %v1089 = vmul.f32 %v1072, 1.442695
          %v1090 = vpow.pop %v1089
          %v1091 = vmul.f32 %v1073, 1.442695
          %v1092 = vpow.pop %v1091
          %v1093 = vmul.f32 %v1074, 1.442695
          %v1094 = vpow.pop %v1093
          %v1095 = vmul.f32 %v1075, 1.442695
          %v1096 = vpow.pop %v1095
          %v1097 = vmul.f32 %v1076, 1.442695
          %v1098 = vpow.pop %v1097
          %v1099 = vmul.f32 %v1077, 1.442695
          %v1100 = vpow.pop %v1099
          %v1101 = vmul.f32 %v1078, 1.442695
          %v1102 = vpow.pop %v1101
          %v1103 = vmul.f32 %v1079, 1.442695
          %v1104 = vpow.pop %v1103
          %v1105 = vmul.f32 %v1080, 1.442695
          %v1106 = vpow.pop %v1105
          %v1107 = vmul.f32 %v1081, 1.442695
          %v1108 = vpow.pop %v1107
          %v1109 = vmul.f32 %v1082, 1.442695
          %v1110 = vpow.pop %v1109
          %v1111 = vmul.f32 %v1083, 1.442695
          %v1112 = vpow.pop %v1111
          %v1113 = vmul.f32 %v1084, 1.442695
          %v1114 = vpow.pop %v1113
          %v1115 = vmul.f32 %v1085, 1.442695
          %v1116 = vpow.pop %v1115
          %v1117 = vmul.f32 %v1086, 1.442695
          %v1118 = vpow.pop %v1117
          %v1119 = vld [vmem:[#allocation3] sm:$0xff]
          %v1120 = vld [vmem:[#allocation3 + $0x8] sm:$0xff]
          %v1121 = vld [vmem:[#allocation3 + $0x10] sm:$0xff]
          %v1122 = vld [vmem:[#allocation3 + $0x18] sm:$0xff]
          %v1123 = vld [vmem:[#allocation3 + $0x20] sm:$0xff]
          %v1124 = vld [vmem:[#allocation3 + $0x28] sm:$0xff]
          %v1125 = vld [vmem:[#allocation3 + $0x30] sm:$0xff]
          %v1126 = vld [vmem:[#allocation3 + $0x38] sm:$0xff]
          %v1127 = vld [vmem:[#allocation3 + $0x40] sm:$0xff]
          %v1128 = vld [vmem:[#allocation3 + $0x48] sm:$0xff]
          %v1129 = vld [vmem:[#allocation3 + $0x50] sm:$0xff]
          %v1130 = vld [vmem:[#allocation3 + $0x58] sm:$0xff]
          %v1131 = vld [vmem:[#allocation3 + $0x60] sm:$0xff]
          %v1132 = vld [vmem:[#allocation3 + $0x68] sm:$0xff]
          %v1133 = vld [vmem:[#allocation3 + $0x70] sm:$0xff]
          %v1134 = vld [vmem:[#allocation3 + $0x78] sm:$0xff]
          %v1135 = vmul.f32 %v960, %v1119
          %v1136 = vmul.f32 %v962, %v1120
          %v1137 = vmul.f32 %v964, %v1121
          %v1138 = vmul.f32 %v966, %v1122
          %v1139 = vmul.f32 %v968, %v1123
          %v1140 = vmul.f32 %v970, %v1124
          %v1141 = vmul.f32 %v972, %v1125
          %v1142 = vmul.f32 %v974, %v1126
          %v1143 = vmul.f32 %v976, %v1127
          %v1144 = vmul.f32 %v978, %v1128
          %v1145 = vmul.f32 %v980, %v1129
          %v1146 = vmul.f32 %v982, %v1130
          %v1147 = vmul.f32 %v984, %v1131
          %v1148 = vmul.f32 %v986, %v1132
          %v1149 = vmul.f32 %v988, %v1133
          %v1150 = vmul.f32 %v990, %v1134
          %1151 = vadd.xlane.f32.xlu0 %v1088
          %v1152 = vpop.xlane.xlu0 %1151
          %1153 = vadd.xlane.f32.xlu0 %v1090
          %v1154 = vpop.xlane.xlu0 %1153
          %1155 = vadd.xlane.f32.xlu0 %v1092
          %v1156 = vpop.xlane.xlu0 %1155
          %1157 = vadd.xlane.f32.xlu0 %v1094
          %v1158 = vpop.xlane.xlu0 %1157
          %1159 = vadd.xlane.f32.xlu0 %v1096
          %v1160 = vpop.xlane.xlu0 %1159
          %1161 = vadd.xlane.f32.xlu0 %v1098
          %v1162 = vpop.xlane.xlu0 %1161
          %1163 = vadd.xlane.f32.xlu0 %v1100
          %v1164 = vpop.xlane.xlu0 %1163
          %1165 = vadd.xlane.f32.xlu0 %v1102
          %v1166 = vpop.xlane.xlu0 %1165
          %1167 = vadd.xlane.f32.xlu0 %v1104
          %v1168 = vpop.xlane.xlu0 %1167
          %1169 = vadd.xlane.f32.xlu0 %v1106
          %v1170 = vpop.xlane.xlu0 %1169
          %1171 = vadd.xlane.f32.xlu0 %v1108
          %v1172 = vpop.xlane.xlu0 %1171
          %1173 = vadd.xlane.f32.xlu0 %v1110
          %v1174 = vpop.xlane.xlu0 %1173
          %1175 = vadd.xlane.f32.xlu0 %v1112
          %v1176 = vpop.xlane.xlu0 %1175
          %1177 = vadd.xlane.f32.xlu0 %v1114
          %v1178 = vpop.xlane.xlu0 %1177
          %1179 = vadd.xlane.f32.xlu0 %v1116
          %v1180 = vpop.xlane.xlu0 %1179
          %1181 = vadd.xlane.f32.xlu0 %v1118
          %v1182 = vpop.xlane.xlu0 %1181
          %v1183 = vadd.f32 %v1135, %v1152
          %v1184 = vadd.f32 %v1136, %v1154
          %v1185 = vadd.f32 %v1137, %v1156
          %v1186 = vadd.f32 %v1138, %v1158
          %v1187 = vadd.f32 %v1139, %v1160
          %v1188 = vadd.f32 %v1140, %v1162
          %v1189 = vadd.f32 %v1141, %v1164
          %v1190 = vadd.f32 %v1142, %v1166
          %v1191 = vadd.f32 %v1143, %v1168
          %v1192 = vadd.f32 %v1144, %v1170
          %v1193 = vadd.f32 %v1145, %v1172
          %v1194 = vadd.f32 %v1146, %v1174
          %v1195 = vadd.f32 %v1147, %v1176
          %v1196 = vadd.f32 %v1148, %v1178
          %v1197 = vadd.f32 %v1149, %v1180
          %v1198 = vadd.f32 %v1150, %v1182
          %vm1199 = vcmask 7168
          %1200 = vst.msk [vmem:[#allocation3] sm:$0xff] %vm1199, %v1183
          %1201 = vst.msk [vmem:[#allocation3 + $0x8] sm:$0xff] %vm1199, %v1184
          %1202 = vst.msk [vmem:[#allocation3 + $0x10] sm:$0xff] %vm1199, %v1185
          %1203 = vst.msk [vmem:[#allocation3 + $0x18] sm:$0xff] %vm1199, %v1186
          %1204 = vst.msk [vmem:[#allocation3 + $0x20] sm:$0xff] %vm1199, %v1187
          %1205 = vst.msk [vmem:[#allocation3 + $0x28] sm:$0xff] %vm1199, %v1188
          %1206 = vst.msk [vmem:[#allocation3 + $0x30] sm:$0xff] %vm1199, %v1189
          %1207 = vst.msk [vmem:[#allocation3 + $0x38] sm:$0xff] %vm1199, %v1190
          %1208 = vst.msk [vmem:[#allocation3 + $0x40] sm:$0xff] %vm1199, %v1191
          %1209 = vst.msk [vmem:[#allocation3 + $0x48] sm:$0xff] %vm1199, %v1192
          %1210 = vst.msk [vmem:[#allocation3 + $0x50] sm:$0xff] %vm1199, %v1193
          %1211 = vst.msk [vmem:[#allocation3 + $0x58] sm:$0xff] %vm1199, %v1194
          %1212 = vst.msk [vmem:[#allocation3 + $0x60] sm:$0xff] %vm1199, %v1195
          %1213 = vst.msk [vmem:[#allocation3 + $0x68] sm:$0xff] %vm1199, %v1196
          %1214 = vst.msk [vmem:[#allocation3 + $0x70] sm:$0xff] %vm1199, %v1197
          %1215 = vst.msk [vmem:[#allocation3 + $0x78] sm:$0xff] %vm1199, %v1198
          %v1216 = vld [vmem:[#allocation4] sm:$0xff]
          %v1217 = vld [vmem:[#allocation4 + $0x8] sm:$0xff]
          %v1218 = vld [vmem:[#allocation4 + $0x10] sm:$0xff]
          %v1219 = vld [vmem:[#allocation4 + $0x18] sm:$0xff]
          %v1220 = vld [vmem:[#allocation4 + $0x20] sm:$0xff]
          %v1221 = vld [vmem:[#allocation4 + $0x28] sm:$0xff]
          %v1222 = vld [vmem:[#allocation4 + $0x30] sm:$0xff]
          %v1223 = vld [vmem:[#allocation4 + $0x38] sm:$0xff]
          %v1224 = vld [vmem:[#allocation4 + $0x40] sm:$0xff]
          %v1225 = vld [vmem:[#allocation4 + $0x48] sm:$0xff]
          %v1226 = vld [vmem:[#allocation4 + $0x50] sm:$0xff]
          %v1227 = vld [vmem:[#allocation4 + $0x58] sm:$0xff]
          %v1228 = vld [vmem:[#allocation4 + $0x60] sm:$0xff]
          %v1229 = vld [vmem:[#allocation4 + $0x68] sm:$0xff]
          %v1230 = vld [vmem:[#allocation4 + $0x70] sm:$0xff]
          %v1231 = vld [vmem:[#allocation4 + $0x78] sm:$0xff]
          %1233 = vset.pattern.permute.xlu0 0
          %1234 = vperm.xlu0 %1233, %v960
          %v1235 = vpop.permute.xlu0 %1234
          %1238 = vset.pattern.permute.xlu0 0
          %1239 = vperm.xlu0 %1238, %v962
          %v1240 = vpop.permute.xlu0 %1239
          %1243 = vset.pattern.permute.xlu0 0
          %1244 = vperm.xlu0 %1243, %v964
          %v1245 = vpop.permute.xlu0 %1244
          %1248 = vset.pattern.permute.xlu0 0
          %1249 = vperm.xlu0 %1248, %v966
          %v1250 = vpop.permute.xlu0 %1249
          %1253 = vset.pattern.permute.xlu0 0
          %1254 = vperm.xlu0 %1253, %v968
          %v1255 = vpop.permute.xlu0 %1254
          %1258 = vset.pattern.permute.xlu0 0
          %1259 = vperm.xlu0 %1258, %v970
          %v1260 = vpop.permute.xlu0 %1259
          %1263 = vset.pattern.permute.xlu0 0
          %1264 = vperm.xlu0 %1263, %v972
          %v1265 = vpop.permute.xlu0 %1264
          %1268 = vset.pattern.permute.xlu0 0
          %1269 = vperm.xlu0 %1268, %v974
          %v1270 = vpop.permute.xlu0 %1269
          %1273 = vset.pattern.permute.xlu0 0
          %1274 = vperm.xlu0 %1273, %v976
          %v1275 = vpop.permute.xlu0 %1274
          %1278 = vset.pattern.permute.xlu0 0
          %1279 = vperm.xlu0 %1278, %v978
          %v1280 = vpop.permute.xlu0 %1279
          %1283 = vset.pattern.permute.xlu0 0
          %1284 = vperm.xlu0 %1283, %v980
          %v1285 = vpop.permute.xlu0 %1284
          %1288 = vset.pattern.permute.xlu0 0
          %1289 = vperm.xlu0 %1288, %v982
          %v1290 = vpop.permute.xlu0 %1289
          %1293 = vset.pattern.permute.xlu0 0
          %1294 = vperm.xlu0 %1293, %v984
          %v1295 = vpop.permute.xlu0 %1294
          %1298 = vset.pattern.permute.xlu0 0
          %1299 = vperm.xlu0 %1298, %v986
          %v1300 = vpop.permute.xlu0 %1299
          %1303 = vset.pattern.permute.xlu0 0
          %1304 = vperm.xlu0 %1303, %v988
          %v1305 = vpop.permute.xlu0 %1304
          %1308 = vset.pattern.permute.xlu0 0
          %1309 = vperm.xlu0 %1308, %v990
          %v1310 = vpop.permute.xlu0 %1309
          %v1312 = vmul.f32 %v1235, %v1216
          %v1313 = vmul.f32 %v1240, %v1217
          %v1314 = vmul.f32 %v1245, %v1218
          %v1315 = vmul.f32 %v1250, %v1219
          %v1316 = vmul.f32 %v1255, %v1220
          %v1317 = vmul.f32 %v1260, %v1221
          %v1318 = vmul.f32 %v1265, %v1222
          %v1319 = vmul.f32 %v1270, %v1223
          %v1320 = vmul.f32 %v1275, %v1224
          %v1321 = vmul.f32 %v1280, %v1225
          %v1322 = vmul.f32 %v1285, %v1226
          %v1323 = vmul.f32 %v1290, %v1227
          %v1324 = vmul.f32 %v1295, %v1228
          %v1325 = vmul.f32 %v1300, %v1229
          %v1326 = vmul.f32 %v1305, %v1230
          %v1327 = vmul.f32 %v1310, %v1231
          %v1328 = vld [vmem:[%s530] sm:$0xff]
          %v1329 = vld [vmem:[%s530 + $0x8] sm:$0xff]
          %v1330 = vld [vmem:[%s530 + $0x10] sm:$0xff]
          %v1331 = vld [vmem:[%s530 + $0x18] sm:$0xff]
          %v1332 = vld [vmem:[%s530 + $0x20] sm:$0xff]
          %v1333 = vld [vmem:[%s530 + $0x28] sm:$0xff]
          %v1334 = vld [vmem:[%s530 + $0x30] sm:$0xff]
          %v1335 = vld [vmem:[%s530 + $0x38] sm:$0xff]
          %v1336 = vld [vmem:[%s530 + $0x40] sm:$0xff]
          %v1337 = vld [vmem:[%s530 + $0x48] sm:$0xff]
          %v1338 = vld [vmem:[%s530 + $0x50] sm:$0xff]
          %v1339 = vld [vmem:[%s530 + $0x58] sm:$0xff]
          %v1340 = vld [vmem:[%s530 + $0x60] sm:$0xff]
          %v1341 = vld [vmem:[%s530 + $0x68] sm:$0xff]
          %v1342 = vld [vmem:[%s530 + $0x70] sm:$0xff]
          %v1343 = vld [vmem:[%s530 + $0x78] sm:$0xff]
          %1344 = vmatprep.subr.mxu0 0.0
          %1345 = vmatpush1.msra.mxu0 %v1328
          %1346 = vmatprep.subr.mxu0 0.0
          %1347 = vmatpush1.msra.mxu0 %v1329
          %1348 = vmatprep.subr.mxu0 0.0
          %1349 = vmatpush1.msra.mxu0 %v1330
          %1350 = vmatprep.subr.mxu0 0.0
          %1351 = vmatpush1.msra.mxu0 %v1331
          %1352 = vmatprep.subr.mxu0 0.0
          %1353 = vmatpush1.msra.mxu0 %v1332
          %1354 = vmatprep.subr.mxu0 0.0
          %1355 = vmatpush1.msra.mxu0 %v1333
          %1356 = vmatprep.subr.mxu0 0.0
          %1357 = vmatpush1.msra.mxu0 %v1334
          %1358 = vmatprep.subr.mxu0 0.0
          %1359 = vmatpush1.msra.mxu0 %v1335
          %1360 = vmatprep.subr.mxu0 0.0
          %1361 = vmatpush1.msra.mxu0 %v1336
          %1362 = vmatprep.subr.mxu0 0.0
          %1363 = vmatpush1.msra.mxu0 %v1337
          %1364 = vmatprep.subr.mxu0 0.0
          %1365 = vmatpush1.msra.mxu0 %v1338
          %1366 = vmatprep.subr.mxu0 0.0
          %1367 = vmatpush1.msra.mxu0 %v1339
          %1368 = vmatprep.subr.mxu0 0.0
          %1369 = vmatpush1.msra.mxu0 %v1340
          %1370 = vmatprep.subr.mxu0 0.0
          %1371 = vmatpush1.msra.mxu0 %v1341
          %1372 = vmatprep.subr.mxu0 0.0
          %1373 = vmatpush1.msra.mxu0 %v1342
          %1374 = vmatprep.subr.mxu0 0.0
          %1375 = vmatpush1.msra.mxu0 %v1343
          %1376 = vmatprep.subr.mxu0 0.0
          %1377 = vmatpush1.msra.mxu0 0.0
          %1378 = vmatprep.subr.mxu0 0.0
          %1379 = vmatpush1.msra.mxu0 0.0
          %1380 = vmatprep.subr.mxu0 0.0
          %1381 = vmatpush1.msra.mxu0 0.0
          %1382 = vmatprep.subr.mxu0 0.0
          %1383 = vmatpush1.msra.mxu0 0.0
          %1384 = vmatprep.subr.mxu0 0.0
          %1385 = vmatpush1.msra.mxu0 0.0
          %1386 = vmatprep.subr.mxu0 0.0
          %1387 = vmatpush1.msra.mxu0 0.0
          %1388 = vmatprep.subr.mxu0 0.0
          %1389 = vmatpush1.msra.mxu0 0.0
          %1390 = vmatprep.subr.mxu0 0.0
          %1391 = vmatpush1.msra.mxu0 0.0
          %1392 = vmatprep.subr.mxu0 0.0
          %1393 = vmatpush1.msra.mxu0 0.0
          %1394 = vmatprep.subr.mxu0 0.0
          %1395 = vmatpush1.msra.mxu0 0.0
          %1396 = vmatprep.subr.mxu0 0.0
          %1397 = vmatpush1.msra.mxu0 0.0
          %1398 = vmatprep.subr.mxu0 0.0
          %1399 = vmatpush1.msra.mxu0 0.0
          %1400 = vmatprep.subr.mxu0 0.0
          %1401 = vmatpush1.msra.mxu0 0.0
          %1402 = vmatprep.subr.mxu0 0.0
          %1403 = vmatpush1.msra.mxu0 0.0
          %1404 = vmatprep.subr.mxu0 0.0
          %1405 = vmatpush1.msra.mxu0 0.0
          %1406 = vmatprep.subr.mxu0 0.0
          %1407 = vmatpush1.msra.mxu0 0.0
          %1408 = vmatprep.mubr.f32.mxu0 0.0
          %1409 = vmatmul.mubr.f32.gmra.mrb[0].mxu0 %v1088
          %v1410 = vpop.f32.mrb[0].mxu0
          %v1411 = vadd.f32 0.0, %v1410
          %v1412 = vpop.f32.mrb[0].mxu0
          %1413 = vmatprep.mubr.f32.mxu0 0.0
          %1414 = vmatmul.mubr.f32.gmra.mrb[0].mxu0 %v1090
          %v1415 = vpop.f32.mrb[0].mxu0
          %v1416 = vadd.f32 0.0, %v1415
          %v1417 = vpop.f32.mrb[0].mxu0
          %1418 = vmatprep.mubr.f32.mxu0 0.0
          %1419 = vmatmul.mubr.f32.gmra.mrb[0].mxu0 %v1092
          %v1420 = vpop.f32.mrb[0].mxu0
          %v1421 = vadd.f32 0.0, %v1420
          %v1422 = vpop.f32.mrb[0].mxu0
          %1423 = vmatprep.mubr.f32.mxu0 0.0
          %1424 = vmatmul.mubr.f32.gmra.mrb[0].mxu0 %v1094
          %v1425 = vpop.f32.mrb[0].mxu0
          %v1426 = vadd.f32 0.0, %v1425
          %v1427 = vpop.f32.mrb[0].mxu0
          %1428 = vmatprep.mubr.f32.mxu0 0.0
          %1429 = vmatmul.mubr.f32.gmra.mrb[0].mxu0 %v1096
          %v1430 = vpop.f32.mrb[0].mxu0
          %v1431 = vadd.f32 0.0, %v1430
          %v1432 = vpop.f32.mrb[0].mxu0
          %1433 = vmatprep.mubr.f32.mxu0 0.0
          %1434 = vmatmul.mubr.f32.gmra.mrb[0].mxu0 %v1098
          %v1435 = vpop.f32.mrb[0].mxu0
          %v1436 = vadd.f32 0.0, %v1435
          %v1437 = vpop.f32.mrb[0].mxu0
          %1438 = vmatprep.mubr.f32.mxu0 0.0
          %1439 = vmatmul.mubr.f32.gmra.mrb[0].mxu0 %v1100
          %v1440 = vpop.f32.mrb[0].mxu0
          %v1441 = vadd.f32 0.0, %v1440
          %v1442 = vpop.f32.mrb[0].mxu0
          %1443 = vmatprep.mubr.f32.mxu0 0.0
          %1444 = vmatmul.mubr.f32.gmra.mrb[0].mxu0 %v1102
          %v1445 = vpop.f32.mrb[0].mxu0
          %v1446 = vadd.f32 0.0, %v1445
          %v1447 = vpop.f32.mrb[0].mxu0
          %1448 = vmatprep.mubr.f32.mxu0 0.0
          %1449 = vmatmul.mubr.f32.gmra.mrb[0].mxu0 %v1104
          %v1450 = vpop.f32.mrb[0].mxu0
          %v1451 = vadd.f32 0.0, %v1450
          %v1452 = vpop.f32.mrb[0].mxu0
          %1453 = vmatprep.mubr.f32.mxu0 0.0
          %1454 = vmatmul.mubr.f32.gmra.mrb[0].mxu0 %v1106
          %v1455 = vpop.f32.mrb[0].mxu0
          %v1456 = vadd.f32 0.0, %v1455
          %v1457 = vpop.f32.mrb[0].mxu0
          %1458 = vmatprep.mubr.f32.mxu0 0.0
          %1459 = vmatmul.mubr.f32.gmra.mrb[0].mxu0 %v1108
          %v1460 = vpop.f32.mrb[0].mxu0
          %v1461 = vadd.f32 0.0, %v1460
          %v1462 = vpop.f32.mrb[0].mxu0
          %1463 = vmatprep.mubr.f32.mxu0 0.0
          %1464 = vmatmul.mubr.f32.gmra.mrb[0].mxu0 %v1110
          %v1465 = vpop.f32.mrb[0].mxu0
          %v1466 = vadd.f32 0.0, %v1465
          %v1467 = vpop.f32.mrb[0].mxu0
          %1468 = vmatprep.mubr.f32.mxu0 0.0
          %1469 = vmatmul.mubr.f32.gmra.mrb[0].mxu0 %v1112
          %v1470 = vpop.f32.mrb[0].mxu0
          %v1471 = vadd.f32 0.0, %v1470
          %v1472 = vpop.f32.mrb[0].mxu0
          %1473 = vmatprep.mubr.f32.mxu0 0.0
          %1474 = vmatmul.mubr.f32.gmra.mrb[0].mxu0 %v1114
          %v1475 = vpop.f32.mrb[0].mxu0
          %v1476 = vadd.f32 0.0, %v1475
          %v1477 = vpop.f32.mrb[0].mxu0
          %1478 = vmatprep.mubr.f32.mxu0 0.0
          %1479 = vmatmul.mubr.f32.gmra.mrb[0].mxu0 %v1116
          %v1480 = vpop.f32.mrb[0].mxu0
          %v1481 = vadd.f32 0.0, %v1480
          %v1482 = vpop.f32.mrb[0].mxu0
          %1483 = vmatprep.mubr.f32.mxu0 0.0
          %1484 = vmatmul.mubr.f32.gmra.mrb[0].mxu0 %v1118
          %v1485 = vpop.f32.mrb[0].mxu0
          %v1486 = vadd.f32 0.0, %v1485
          %v1487 = vpop.f32.mrb[0].mxu0
          %1488 = vdwg.mxu0
          %v1489 = vadd.f32 %v1312, %v1411
          %v1490 = vadd.f32 %v1313, %v1416
          %v1491 = vadd.f32 %v1314, %v1421
          %v1492 = vadd.f32 %v1315, %v1426
          %v1493 = vadd.f32 %v1316, %v1431
          %v1494 = vadd.f32 %v1317, %v1436
          %v1495 = vadd.f32 %v1318, %v1441
          %v1496 = vadd.f32 %v1319, %v1446
          %v1497 = vadd.f32 %v1320, %v1451
          %v1498 = vadd.f32 %v1321, %v1456
          %v1499 = vadd.f32 %v1322, %v1461
          %v1500 = vadd.f32 %v1323, %v1466
          %v1501 = vadd.f32 %v1324, %v1471
          %v1502 = vadd.f32 %v1325, %v1476
          %v1503 = vadd.f32 %v1326, %v1481
          %v1504 = vadd.f32 %v1327, %v1486
          %1505 = vst [vmem:[#allocation4] sm:$0xff] %v1489
          %1506 = vst [vmem:[#allocation4 + $0x8] sm:$0xff] %v1490
          %1507 = vst [vmem:[#allocation4 + $0x10] sm:$0xff] %v1491
          %1508 = vst [vmem:[#allocation4 + $0x18] sm:$0xff] %v1492
          %1509 = vst [vmem:[#allocation4 + $0x20] sm:$0xff] %v1493
          %1510 = vst [vmem:[#allocation4 + $0x28] sm:$0xff] %v1494
          %1511 = vst [vmem:[#allocation4 + $0x30] sm:$0xff] %v1495
          %1512 = vst [vmem:[#allocation4 + $0x38] sm:$0xff] %v1496
          %1513 = vst [vmem:[#allocation4 + $0x40] sm:$0xff] %v1497
          %1514 = vst [vmem:[#allocation4 + $0x48] sm:$0xff] %v1498
          %1515 = vst [vmem:[#allocation4 + $0x50] sm:$0xff] %v1499
          %1516 = vst [vmem:[#allocation4 + $0x58] sm:$0xff] %v1500
          %1517 = vst [vmem:[#allocation4 + $0x60] sm:$0xff] %v1501
          %1518 = vst [vmem:[#allocation4 + $0x68] sm:$0xff] %v1502
          %1519 = vst [vmem:[#allocation4 + $0x70] sm:$0xff] %v1503
          %1520 = vst [vmem:[#allocation4 + $0x78] sm:$0xff] %v1504
          %1521 = vst.msk [vmem:[#allocation2] sm:$0xff] %vm1199, %v927
          %1522 = vst.msk [vmem:[#allocation2 + $0x8] sm:$0xff] %vm1199, %v928
          %1523 = vst.msk [vmem:[#allocation2 + $0x10] sm:$0xff] %vm1199, %v929
          %1524 = vst.msk [vmem:[#allocation2 + $0x18] sm:$0xff] %vm1199, %v930
          %1525 = vst.msk [vmem:[#allocation2 + $0x20] sm:$0xff] %vm1199, %v931
          %1526 = vst.msk [vmem:[#allocation2 + $0x28] sm:$0xff] %vm1199, %v932
          %1527 = vst.msk [vmem:[#allocation2 + $0x30] sm:$0xff] %vm1199, %v933
          %1528 = vst.msk [vmem:[#allocation2 + $0x38] sm:$0xff] %vm1199, %v934
          %1529 = vst.msk [vmem:[#allocation2 + $0x40] sm:$0xff] %vm1199, %v935
          %1530 = vst.msk [vmem:[#allocation2 + $0x48] sm:$0xff] %vm1199, %v936
          %1531 = vst.msk [vmem:[#allocation2 + $0x50] sm:$0xff] %vm1199, %v937
          %1532 = vst.msk [vmem:[#allocation2 + $0x58] sm:$0xff] %vm1199, %v938
          %1533 = vst.msk [vmem:[#allocation2 + $0x60] sm:$0xff] %vm1199, %v939
          %1534 = vst.msk [vmem:[#allocation2 + $0x68] sm:$0xff] %vm1199, %v940
          %1535 = vst.msk [vmem:[#allocation2 + $0x70] sm:$0xff] %vm1199, %v941
          %1536 = vst.msk [vmem:[#allocation2 + $0x78] sm:$0xff] %vm1199, %v942
        $region154: #{gpt_neo_self_attention.4} parent=133 // pred_fallthru
          _
        %p1537 = scmp.eq.s32.totalorder %s23, 1
        // Predicated region
        $region155: #{gpt_neo_self_attention.4} parent=133 // pred_check
          %p1538 = pneg %p1537
        $region156: #{gpt_neo_self_attention.4} parent=133 // pred_check_branch
          %1540 = sbr.rel (%p1538) target = $region158
        $region157: #{gpt_neo_self_attention.4} parent=133 // pred_region
          %v1541 = vld [vmem:[#allocation3] sm:$0xff]
          %v1542 = vld [vmem:[#allocation3 + $0x8] sm:$0xff]
          %v1543 = vld [vmem:[#allocation3 + $0x10] sm:$0xff]
          %v1544 = vld [vmem:[#allocation3 + $0x18] sm:$0xff]
          %v1545 = vld [vmem:[#allocation3 + $0x20] sm:$0xff]
          %v1546 = vld [vmem:[#allocation3 + $0x28] sm:$0xff]
          %v1547 = vld [vmem:[#allocation3 + $0x30] sm:$0xff]
          %v1548 = vld [vmem:[#allocation3 + $0x38] sm:$0xff]
          %v1549 = vld [vmem:[#allocation3 + $0x40] sm:$0xff]
          %v1550 = vld [vmem:[#allocation3 + $0x48] sm:$0xff]
          %v1551 = vld [vmem:[#allocation3 + $0x50] sm:$0xff]
          %v1552 = vld [vmem:[#allocation3 + $0x58] sm:$0xff]
          %v1553 = vld [vmem:[#allocation3 + $0x60] sm:$0xff]
          %v1554 = vld [vmem:[#allocation3 + $0x68] sm:$0xff]
          %v1555 = vld [vmem:[#allocation3 + $0x70] sm:$0xff]
          %v1556 = vld [vmem:[#allocation3 + $0x78] sm:$0xff]
          %v1557 = vrcp.pop %v1541
          %v1558 = vrcp.pop %v1542
          %v1559 = vrcp.pop %v1543
          %v1560 = vrcp.pop %v1544
          %v1561 = vrcp.pop %v1545
          %v1562 = vrcp.pop %v1546
          %v1563 = vrcp.pop %v1547
          %v1564 = vrcp.pop %v1548
          %v1565 = vrcp.pop %v1549
          %v1566 = vrcp.pop %v1550
          %v1567 = vrcp.pop %v1551
          %v1568 = vrcp.pop %v1552
          %v1569 = vrcp.pop %v1553
          %v1570 = vrcp.pop %v1554
          %v1571 = vrcp.pop %v1555
          %v1572 = vrcp.pop %v1556
          %v1573 = vld [vmem:[#allocation4] sm:$0xff]
          %v1574 = vld [vmem:[#allocation4 + $0x8] sm:$0xff]
          %v1575 = vld [vmem:[#allocation4 + $0x10] sm:$0xff]
          %v1576 = vld [vmem:[#allocation4 + $0x18] sm:$0xff]
          %v1577 = vld [vmem:[#allocation4 + $0x20] sm:$0xff]
          %v1578 = vld [vmem:[#allocation4 + $0x28] sm:$0xff]
          %v1579 = vld [vmem:[#allocation4 + $0x30] sm:$0xff]
          %v1580 = vld [vmem:[#allocation4 + $0x38] sm:$0xff]
          %v1581 = vld [vmem:[#allocation4 + $0x40] sm:$0xff]
          %v1582 = vld [vmem:[#allocation4 + $0x48] sm:$0xff]
          %v1583 = vld [vmem:[#allocation4 + $0x50] sm:$0xff]
          %v1584 = vld [vmem:[#allocation4 + $0x58] sm:$0xff]
          %v1585 = vld [vmem:[#allocation4 + $0x60] sm:$0xff]
          %v1586 = vld [vmem:[#allocation4 + $0x68] sm:$0xff]
          %v1587 = vld [vmem:[#allocation4 + $0x70] sm:$0xff]
          %v1588 = vld [vmem:[#allocation4 + $0x78] sm:$0xff]
          %1590 = vset.pattern.permute.xlu0 0
          %1591 = vperm.xlu0 %1590, %v1557
          %v1592 = vpop.permute.xlu0 %1591
          %1595 = vset.pattern.permute.xlu0 0
          %1596 = vperm.xlu0 %1595, %v1558
          %v1597 = vpop.permute.xlu0 %1596
          %1600 = vset.pattern.permute.xlu0 0
          %1601 = vperm.xlu0 %1600, %v1559
          %v1602 = vpop.permute.xlu0 %1601
          %1605 = vset.pattern.permute.xlu0 0
          %1606 = vperm.xlu0 %1605, %v1560
          %v1607 = vpop.permute.xlu0 %1606
          %1610 = vset.pattern.permute.xlu0 0
          %1611 = vperm.xlu0 %1610, %v1561
          %v1612 = vpop.permute.xlu0 %1611
          %1615 = vset.pattern.permute.xlu0 0
          %1616 = vperm.xlu0 %1615, %v1562
          %v1617 = vpop.permute.xlu0 %1616
          %1620 = vset.pattern.permute.xlu0 0
          %1621 = vperm.xlu0 %1620, %v1563
          %v1622 = vpop.permute.xlu0 %1621
          %1625 = vset.pattern.permute.xlu0 0
          %1626 = vperm.xlu0 %1625, %v1564
          %v1627 = vpop.permute.xlu0 %1626
          %1630 = vset.pattern.permute.xlu0 0
          %1631 = vperm.xlu0 %1630, %v1565
          %v1632 = vpop.permute.xlu0 %1631
          %1635 = vset.pattern.permute.xlu0 0
          %1636 = vperm.xlu0 %1635, %v1566
          %v1637 = vpop.permute.xlu0 %1636
          %1640 = vset.pattern.permute.xlu0 0
          %1641 = vperm.xlu0 %1640, %v1567
          %v1642 = vpop.permute.xlu0 %1641
          %1645 = vset.pattern.permute.xlu0 0
          %1646 = vperm.xlu0 %1645, %v1568
          %v1647 = vpop.permute.xlu0 %1646
          %1650 = vset.pattern.permute.xlu0 0
          %1651 = vperm.xlu0 %1650, %v1569
          %v1652 = vpop.permute.xlu0 %1651
          %1655 = vset.pattern.permute.xlu0 0
          %1656 = vperm.xlu0 %1655, %v1570
          %v1657 = vpop.permute.xlu0 %1656
          %1660 = vset.pattern.permute.xlu0 0
          %1661 = vperm.xlu0 %1660, %v1571
          %v1662 = vpop.permute.xlu0 %1661
          %1665 = vset.pattern.permute.xlu0 0
          %1666 = vperm.xlu0 %1665, %v1572
          %v1667 = vpop.permute.xlu0 %1666
          %v1669 = vmul.f32 %v1573, %v1592
          %v1670 = vmul.f32 %v1574, %v1597
          %v1671 = vmul.f32 %v1575, %v1602
          %v1672 = vmul.f32 %v1576, %v1607
          %v1673 = vmul.f32 %v1577, %v1612
          %v1674 = vmul.f32 %v1578, %v1617
          %v1675 = vmul.f32 %v1579, %v1622
          %v1676 = vmul.f32 %v1580, %v1627
          %v1677 = vmul.f32 %v1581, %v1632
          %v1678 = vmul.f32 %v1582, %v1637
          %v1679 = vmul.f32 %v1583, %v1642
          %v1680 = vmul.f32 %v1584, %v1647
          %v1681 = vmul.f32 %v1585, %v1652
          %v1682 = vmul.f32 %v1586, %v1657
          %v1683 = vmul.f32 %v1587, %v1662
          %v1684 = vmul.f32 %v1588, %v1667
          %1685 = vst [vmem:[%s557] sm:$0xff] %v1669
          %1686 = vst [vmem:[%s557 + $0x8] sm:$0xff] %v1670
          %1687 = vst [vmem:[%s557 + $0x10] sm:$0xff] %v1671
          %1688 = vst [vmem:[%s557 + $0x18] sm:$0xff] %v1672
          %1689 = vst [vmem:[%s557 + $0x20] sm:$0xff] %v1673
          %1690 = vst [vmem:[%s557 + $0x28] sm:$0xff] %v1674
          %1691 = vst [vmem:[%s557 + $0x30] sm:$0xff] %v1675
          %1692 = vst [vmem:[%s557 + $0x38] sm:$0xff] %v1676
          %1693 = vst [vmem:[%s557 + $0x40] sm:$0xff] %v1677
          %1694 = vst [vmem:[%s557 + $0x48] sm:$0xff] %v1678
          %1695 = vst [vmem:[%s557 + $0x50] sm:$0xff] %v1679
          %1696 = vst [vmem:[%s557 + $0x58] sm:$0xff] %v1680
          %1697 = vst [vmem:[%s557 + $0x60] sm:$0xff] %v1681
          %1698 = vst [vmem:[%s557 + $0x68] sm:$0xff] %v1682
          %1699 = vst [vmem:[%s557 + $0x70] sm:$0xff] %v1683
          %1700 = vst [vmem:[%s557 + $0x78] sm:$0xff] %v1684
        $region158: #{gpt_neo_self_attention.4} parent=133 // pred_fallthru
          _
        %s1701 = sand.u32 %s154, 1
        %s1702 = sand.u32 %s154, 1
        %s1703 = smul.addr %s1702, 128
        %s1704 = scalar_lea.vmem [#allocation8], %s1703
        // Predicated region
        $region159: #{gpt_neo_self_attention.4} parent=133 // pred_check
          %p1705 = pneg %p164
        $region160: #{gpt_neo_self_attention.4} parent=133 // pred_check_branch
          %1707 = sbr.rel (%p1705) target = $region162
        $region161: #{gpt_neo_self_attention.4} parent=133 // pred_region
          %s1708 = smul.u32 %s20, 2
          %s1709 = sadd.s32 %s1708, %s22
          %s1710 = smul.u32 16, %s1709
          %s1711 = smul.addr %s1710, 2
          %s1712 = sadd.s32 %s21, %s1711
          %s1713 = smul.addr %s1712, 8
          %s1714 = scalar_lea.vmem %s3, %s1713
          // Predicated region
          $region163: #{gpt_neo_self_attention.4} parent=161 // pred_check
            _
          $region164: #{gpt_neo_self_attention.4} parent=161 // pred_check_branch
            %1716 = sbr.rel (0) target = $region166
          $region165: #{gpt_neo_self_attention.4} parent=161 // pred_region
            // Predicated region
            $region167: #{gpt_neo_self_attention.4} parent=165 // pred_check
              _
            $region168: #{gpt_neo_self_attention.4} parent=165 // pred_check_branch
              %1718 = sbr.rel (0) target = $region170
            $region169: #{gpt_neo_self_attention.4} parent=165 // pred_region
              // Predicated region
              $region182: #{gpt_neo_self_attention.4} parent=169 // pred_check
                _
              $region183: #{gpt_neo_self_attention.4} parent=169 // pred_check_branch
                %1763 = sbr.rel (0) target = $region185
              $region184: #{gpt_neo_self_attention.4} parent=169 // pred_region
                loop: start=0, step=1, limit=1
                $region186: #{gpt_neo_self_attention.4} parent=184 // loop_pre_header
                  _
                $region187: #{gpt_neo_self_attention.4} parent=184 // loop_header
                  %s1765 = sphi 0, %s1769
                  %p1766 = scmp.ge.s32.totalorder %s1765, 1
                  %s1770 = sphi %s1704, %s1704
                  %s1771 = sphi %s1714, %s1714
                $region188: #{gpt_neo_self_attention.4} parent=184 // loop_header_branch
                  %1768 = sbr.rel (%p1766) target = $region192
                $region189: #{gpt_neo_self_attention.4} parent=184 // loop_body
                  %v1772 = vld [vmem:[%s1770] sm:$0xff]
                  %1773 = vst [vmem:[%s1771] sm:$0xff] %v1772
                  %v1774 = vld [vmem:[%s1770 + $0x8] sm:$0xff]
                  %1775 = vst [vmem:[%s1771 + $0x10] sm:$0xff] %v1774
                  %v1776 = vld [vmem:[%s1770 + $0x10] sm:$0xff]
                  %1777 = vst [vmem:[%s1771 + $0x20] sm:$0xff] %v1776
                  %v1778 = vld [vmem:[%s1770 + $0x18] sm:$0xff]
                  %1779 = vst [vmem:[%s1771 + $0x30] sm:$0xff] %v1778
                  %v1780 = vld [vmem:[%s1770 + $0x20] sm:$0xff]
                  %1781 = vst [vmem:[%s1771 + $0x40] sm:$0xff] %v1780
                  %v1782 = vld [vmem:[%s1770 + $0x28] sm:$0xff]
                  %1783 = vst [vmem:[%s1771 + $0x50] sm:$0xff] %v1782
                  %v1784 = vld [vmem:[%s1770 + $0x30] sm:$0xff]
                  %1785 = vst [vmem:[%s1771 + $0x60] sm:$0xff] %v1784
                  %v1786 = vld [vmem:[%s1770 + $0x38] sm:$0xff]
                  %1787 = vst [vmem:[%s1771 + $0x70] sm:$0xff] %v1786
                  %v1788 = vld [vmem:[%s1770 + $0x40] sm:$0xff]
                  %1789 = vst [vmem:[%s1771 + $0x80] sm:$0xff] %v1788
                  %v1790 = vld [vmem:[%s1770 + $0x48] sm:$0xff]
                  %1791 = vst [vmem:[%s1771 + $0x90] sm:$0xff] %v1790
                  %v1792 = vld [vmem:[%s1770 + $0x50] sm:$0xff]
                  %1793 = vst [vmem:[%s1771 + $0xa0] sm:$0xff] %v1792
                  %v1794 = vld [vmem:[%s1770 + $0x58] sm:$0xff]
                  %1795 = vst [vmem:[%s1771 + $0xb0] sm:$0xff] %v1794
                  %v1796 = vld [vmem:[%s1770 + $0x60] sm:$0xff]
                  %1797 = vst [vmem:[%s1771 + $0xc0] sm:$0xff] %v1796
                  %v1798 = vld [vmem:[%s1770 + $0x68] sm:$0xff]
                  %1799 = vst [vmem:[%s1771 + $0xd0] sm:$0xff] %v1798
                  %v1800 = vld [vmem:[%s1770 + $0x70] sm:$0xff]
                  %1801 = vst [vmem:[%s1771 + $0xe0] sm:$0xff] %v1800
                  %v1802 = vld [vmem:[%s1770 + $0x78] sm:$0xff]
                  %1803 = vst [vmem:[%s1771 + $0xf0] sm:$0xff] %v1802
                $region190: #{gpt_neo_self_attention.4} parent=184 // loop_footer
                  %s1769 = sadd.s32 1, %s1765
                $region191: #{gpt_neo_self_attention.4} parent=184 // loop_footer_branch
                  %1764 = sbr.rel target = $region187
                $region192: #{gpt_neo_self_attention.4} parent=184 // loop_exit
                  _
              $region185: #{gpt_neo_self_attention.4} parent=169 // pred_fallthru
                _
              // Predicated region
              $region193: #{gpt_neo_self_attention.4} parent=169 // pred_check
                _
              $region194: #{gpt_neo_self_attention.4} parent=169 // pred_check_branch
                %1805 = sbr.rel target = $region196
              $region195: #{gpt_neo_self_attention.4} parent=169 // pred_region
                _
              $region196: #{gpt_neo_self_attention.4} parent=169 // pred_fallthru
                _
            $region170: #{gpt_neo_self_attention.4} parent=165 // pred_fallthru
              _
            // Predicated region
            $region171: #{gpt_neo_self_attention.4} parent=165 // pred_check
              _
            $region172: #{gpt_neo_self_attention.4} parent=165 // pred_check_branch
              %1720 = sbr.rel target = $region174
            $region173: #{gpt_neo_self_attention.4} parent=165 // pred_region
              loop: start=0, step=1, limit=1
              $region175: #{gpt_neo_self_attention.4} parent=173 // loop_pre_header
                _
              $region176: #{gpt_neo_self_attention.4} parent=173 // loop_header
                %s1723 = sphi 0, %s1727
                %p1724 = scmp.ge.s32.totalorder %s1723, 1
                %s1728 = sphi %s1704, %s1704
                %s1729 = sphi %s1714, %s1714
              $region177: #{gpt_neo_self_attention.4} parent=173 // loop_header_branch
                %1726 = sbr.rel (%p1724) target = $region181
              $region178: #{gpt_neo_self_attention.4} parent=173 // loop_body
                %v1730 = vld [vmem:[%s1728] sm:$0xff]
                %1731 = vst [vmem:[%s1729] sm:$0xff] %v1730
                %v1732 = vld [vmem:[%s1728 + $0x8] sm:$0xff]
                %1733 = vst [vmem:[%s1729 + $0x10] sm:$0xff] %v1732
                %v1734 = vld [vmem:[%s1728 + $0x10] sm:$0xff]
                %1735 = vst [vmem:[%s1729 + $0x20] sm:$0xff] %v1734
                %v1736 = vld [vmem:[%s1728 + $0x18] sm:$0xff]
                %1737 = vst [vmem:[%s1729 + $0x30] sm:$0xff] %v1736
                %v1738 = vld [vmem:[%s1728 + $0x20] sm:$0xff]
                %1739 = vst [vmem:[%s1729 + $0x40] sm:$0xff] %v1738
                %v1740 = vld [vmem:[%s1728 + $0x28] sm:$0xff]
                %1741 = vst [vmem:[%s1729 + $0x50] sm:$0xff] %v1740
                %v1742 = vld [vmem:[%s1728 + $0x30] sm:$0xff]
                %1743 = vst [vmem:[%s1729 + $0x60] sm:$0xff] %v1742
                %v1744 = vld [vmem:[%s1728 + $0x38] sm:$0xff]
                %1745 = vst [vmem:[%s1729 + $0x70] sm:$0xff] %v1744
                %v1746 = vld [vmem:[%s1728 + $0x40] sm:$0xff]
                %1747 = vst [vmem:[%s1729 + $0x80] sm:$0xff] %v1746
                %v1748 = vld [vmem:[%s1728 + $0x48] sm:$0xff]
                %1749 = vst [vmem:[%s1729 + $0x90] sm:$0xff] %v1748
                %v1750 = vld [vmem:[%s1728 + $0x50] sm:$0xff]
                %1751 = vst [vmem:[%s1729 + $0xa0] sm:$0xff] %v1750
                %v1752 = vld [vmem:[%s1728 + $0x58] sm:$0xff]
                %1753 = vst [vmem:[%s1729 + $0xb0] sm:$0xff] %v1752
                %v1754 = vld [vmem:[%s1728 + $0x60] sm:$0xff]
                %1755 = vst [vmem:[%s1729 + $0xc0] sm:$0xff] %v1754
                %v1756 = vld [vmem:[%s1728 + $0x68] sm:$0xff]
                %1757 = vst [vmem:[%s1729 + $0xd0] sm:$0xff] %v1756
                %v1758 = vld [vmem:[%s1728 + $0x70] sm:$0xff]
                %1759 = vst [vmem:[%s1729 + $0xe0] sm:$0xff] %v1758
                %v1760 = vld [vmem:[%s1728 + $0x78] sm:$0xff]
                %1761 = vst [vmem:[%s1729 + $0xf0] sm:$0xff] %v1760
              $region179: #{gpt_neo_self_attention.4} parent=173 // loop_footer
                %s1727 = sadd.s32 1, %s1723
              $region180: #{gpt_neo_self_attention.4} parent=173 // loop_footer_branch
                %1722 = sbr.rel target = $region176
              $region181: #{gpt_neo_self_attention.4} parent=173 // loop_exit
                _
            $region174: #{gpt_neo_self_attention.4} parent=165 // pred_fallthru
              _
          $region166: #{gpt_neo_self_attention.4} parent=161 // pred_fallthru
            _
          %1806 = vnop
        $region162: #{gpt_neo_self_attention.4} parent=133 // pred_fallthru
          _
      $region134: #{gpt_neo_self_attention.4} parent=5 // pred_fallthru
        _
      %p1807 = scmp.le.s32.totalorder 2, %s9
      // Predicated region
      $region197: #{gpt_neo_self_attention.4} parent=5 // pred_check
        %p1808 = pneg %p1807
      $region198: #{gpt_neo_self_attention.4} parent=5 // pred_check_branch
        %1810 = sbr.rel (%p1808) target = $region200
      $region199: #{gpt_neo_self_attention.4} parent=5 // pred_region
        %s1811 = ssub.s32 %s9, 2
        // Predicated region
        $region201: #{gpt_neo_self_attention.4} parent=199 // pred_check
          %p1812 = pneg %p170
        $region202: #{gpt_neo_self_attention.4} parent=199 // pred_check_branch
          %1814 = sbr.rel (%p1812) target = $region204
        $region203: #{gpt_neo_self_attention.4} parent=199 // pred_region
          %s1815 = sand.u32 %s155, 1
          %s1816 = sand.u32 %s155, 1
          %s1817 = smul.addr %s1816, 128
          %s1818 = scalar_lea.vmem [#allocation8], %s1817
        $region204: #{gpt_neo_self_attention.4} parent=199 // pred_fallthru
          _
      $region200: #{gpt_neo_self_attention.4} parent=5 // pred_fallthru
        _
    $region6: #{gpt_neo_self_attention.4} parent=1 // loop_footer
      %s13 = sadd.s32 1, %s9
    $region7: #{gpt_neo_self_attention.4} parent=1 // loop_footer_branch
      %8 = sbr.rel target = $region3
    $region8: #{gpt_neo_self_attention.4} parent=1 // loop_exit
      _

// kernel: gpt_neo_self_attention.5
$region0: #{gpt_neo_self_attention.5}
  #allocation0 [shape = 'u32[]', space=smem, size = 0x4, offset = 0x4, fixed_abs, tag = 'smem constant byte address 0x4 - core index']
  #allocation1 [shape = 'u32[144,128]{1,0:T(1,128)}', space=vmem, size = 0x12000, scoped, tag = 'internal scratch']
  #allocation2 [shape = 'f32[256,256]{1,0:T(8,128)}', space=vmem, size = 0x40000, scoped, tag = 'scratch operand']
  %s0 = inlined_call_operand.vmem [shape: f32[512,256], index: 0, kind: input, shape index: {}]
  %s1 = inlined_call_operand.vmem [shape: f32[256,256], index: 1, kind: input, shape index: {}]
  %s2 = inlined_call_operand.vmem [shape: f32[1,256], index: 2, kind: input, shape index: {}]
  %s3 = inlined_call_operand.hbm [shape: f32[512,256], index: 3, kind: output, shape index: {}]
  %s4 = sld [smem:[#allocation0]]
  $region53: #{gpt_neo_self_attention.5} parent=0
    _
  %s6 = ssub.s32 1, %s4
  %s7 = scalar_select 0, %s6, %s4
  $region1: #{gpt_neo_self_attention.5} parent=0
    #allocation3 [shape = 'u8[524288]{0}', space=vmem, size = 0x80000, scoped, tag = 'output window, operand 0']
    #allocation4 [shape = 's32[2]{0}', space=sflag, size = 0x8, scoped, tag = 'scoped memory for gpt_neo_self_attention.5']
    %8 = vsyncpa [#allocation4], 0
    %s9 = scalar_lea.sflag [#allocation4], 1
    %10 = vsyncpa %s9, 0
    loop: start=0, step=1, limit=4
    $region2: #{gpt_neo_self_attention.5} parent=1 // loop_pre_header
      _
    $region3: #{gpt_neo_self_attention.5} parent=1 // loop_header
      %s12 = sphi 0, %s16
      %p13 = scmp.ge.s32.totalorder %s12, 4
      %s19 = sphi 0, %s38
      %s20 = sphi 0, %s34
      %s21 = sphi 0, %s30
      %s22 = sphi 0, %s19
      %s23 = sphi 0, %s20
      %s24 = sphi 0, %s21
      %s25 = sphi 0, %s22
      %s26 = sphi 0, %s23
      %s27 = sphi 0, %s24
      %s43 = sphi 0, %s45
      %s46 = sphi 0, %s43
      %s47 = sphi 0, %s46
      %s63 = sphi 0, %s47
      %s71 = sphi 0, %s73
      %s74 = sphi 0, %s71
      %s75 = sphi 0, %s74
      %s91 = sphi 0, %s75
      %s97 = sphi 0, %s99
      %s100 = sphi 0, %s97
      %s101 = sphi 0, %s100
      %s117 = sphi 0, %s101
      %s125 = sphi 0, %s127
      %s128 = sphi 0, %s125
      %s129 = sphi 0, %s128
      %s145 = sphi 0, %s129
    $region4: #{gpt_neo_self_attention.5} parent=1 // loop_header_branch
      %15 = sbr.rel (%p13) target = $region8
    $region5: #{gpt_neo_self_attention.5} parent=1 // loop_body
      %s17 = ssub.s32 %s12, 1
      %s18 = ssub.s32 %s12, 2
      %s28 = sadd.s32 1, %s21
      %p29 = scmp.ge.s32.totalorder %s28, 1
      %s30 = scalar_select %p29, 0, %s28
      %s31 = sadd.s32 1, %s20
      %s32 = scalar_select %p29, %s31, %s20
      %p33 = scmp.ge.s32.totalorder %s32, 1
      %s34 = scalar_select %p33, 0, %s32
      %s35 = sadd.s32 1, %s19
      %s36 = scalar_select %p33, %s35, %s19
      %p37 = scmp.ge.s32.totalorder %s36, 2
      %s38 = scalar_select %p37, 0, %s36
      %s39 = ssub.s32 %s19, %s38
      %s40 = ssub.s32 %s21, %s30
      %s41 = sor.u32 %s39, %s40
      %p42 = scmp.eq.s32.totalorder %s41, 0
      %s44 = sadd.s32 %s43, 1
      %s45 = scalar_select %p42, %s43, %s44
      %p48 = pneg %p42
      %p49 = scmp.eq.s32.totalorder %s12, 1
      %p50 = por %p48, %p49
      %p51 = scmp.ne.s32.totalorder %s43, %s46
      %p52 = scmp.eq.s32.totalorder %s12, 0
      %p53 = por %p51, %p52
      %p54 = scmp.ne.s32.totalorder %s43, %s46
      %p55 = scmp.eq.s32.totalorder %s17, 1
      %p56 = por %p54, %p55
      %p57 = scmp.ne.s32.totalorder %s46, %s47
      %p58 = scmp.eq.s32.totalorder %s17, 0
      %p59 = por %p57, %p58
      %p60 = scmp.ne.s32.totalorder %s46, %s47
      %p61 = scmp.eq.s32.totalorder %s18, 1
      %p62 = por %p60, %p61
      %p64 = scmp.ne.s32.totalorder %s47, %s63
      %p65 = scmp.eq.s32.totalorder %s18, 0
      %p66 = por %p64, %p65
      %s67 = ssub.s32 %s21, %s30
      %s68 = ssub.s32 %s20, %s34
      %s69 = sor.u32 %s67, %s68
      %p70 = scmp.eq.s32.totalorder %s69, 0
      %s72 = sadd.s32 %s71, 1
      %s73 = scalar_select %p70, %s71, %s72
      %p76 = pneg %p70
      %p77 = scmp.eq.s32.totalorder %s12, 1
      %p78 = por %p76, %p77
      %p79 = scmp.ne.s32.totalorder %s71, %s74
      %p80 = scmp.eq.s32.totalorder %s12, 0
      %p81 = por %p79, %p80
      %p82 = scmp.ne.s32.totalorder %s71, %s74
      %p83 = scmp.eq.s32.totalorder %s17, 1
      %p84 = por %p82, %p83
      %p85 = scmp.ne.s32.totalorder %s74, %s75
      %p86 = scmp.eq.s32.totalorder %s17, 0
      %p87 = por %p85, %p86
      %p88 = scmp.ne.s32.totalorder %s74, %s75
      %p89 = scmp.eq.s32.totalorder %s18, 1
      %p90 = por %p88, %p89
      %p92 = scmp.ne.s32.totalorder %s75, %s91
      %p93 = scmp.eq.s32.totalorder %s18, 0
      %p94 = por %p92, %p93
      %s95 = ssub.s32 %s20, %s34
      %p96 = scmp.eq.s32.totalorder %s95, 0
      %s98 = sadd.s32 %s97, 1
      %s99 = scalar_select %p96, %s97, %s98
      %p102 = pneg %p96
      %p103 = scmp.eq.s32.totalorder %s12, 1
      %p104 = por %p102, %p103
      %p105 = scmp.ne.s32.totalorder %s97, %s100
      %p106 = scmp.eq.s32.totalorder %s12, 0
      %p107 = por %p105, %p106
      %p108 = scmp.ne.s32.totalorder %s97, %s100
      %p109 = scmp.eq.s32.totalorder %s17, 1
      %p110 = por %p108, %p109
      %p111 = scmp.ne.s32.totalorder %s100, %s101
      %p112 = scmp.eq.s32.totalorder %s17, 0
      %p113 = por %p111, %p112
      %p114 = scmp.ne.s32.totalorder %s100, %s101
      %p115 = scmp.eq.s32.totalorder %s18, 1
      %p116 = por %p114, %p115
      %p118 = scmp.ne.s32.totalorder %s101, %s117
      %p119 = scmp.eq.s32.totalorder %s18, 0
      %p120 = por %p118, %p119
      %s121 = ssub.s32 %s19, %s38
      %s122 = ssub.s32 %s20, %s34
      %s123 = sor.u32 %s121, %s122
      %p124 = scmp.eq.s32.totalorder %s123, 0
      %s126 = sadd.s32 %s125, 1
      %s127 = scalar_select %p124, %s125, %s126
      %p130 = pneg %p124
      %p131 = scmp.eq.s32.totalorder %s12, 1
      %p132 = por %p130, %p131
      %p133 = scmp.ne.s32.totalorder %s125, %s128
      %p134 = scmp.eq.s32.totalorder %s12, 0
      %p135 = por %p133, %p134
      %p136 = scmp.ne.s32.totalorder %s125, %s128
      %p137 = scmp.eq.s32.totalorder %s17, 1
      %p138 = por %p136, %p137
      %p139 = scmp.ne.s32.totalorder %s128, %s129
      %p140 = scmp.eq.s32.totalorder %s17, 0
      %p141 = por %p139, %p140
      %p142 = scmp.ne.s32.totalorder %s128, %s129
      %p143 = scmp.eq.s32.totalorder %s18, 1
      %p144 = por %p142, %p143
      %p146 = scmp.ne.s32.totalorder %s129, %s145
      %p147 = scmp.eq.s32.totalorder %s18, 0
      %p148 = por %p146, %p147
      %p149 = scmp.le.s32.totalorder 1, %s12
      %p150 = scmp.lt.s32.totalorder %s12, 3
      %p151 = pnand %p149, %p150
      %p152 = pneg %p151
      // Predicated region
      $region9: #{gpt_neo_self_attention.5} parent=5 // pred_check
        _
      $region10: #{gpt_neo_self_attention.5} parent=5 // pred_check_branch
        %154 = sbr.rel (%p151) target = $region12
      $region11: #{gpt_neo_self_attention.5} parent=5 // pred_region
        %s155 = ssub.s32 %s12, 1
        // Predicated region
        $region13: #{gpt_neo_self_attention.5} parent=11 // pred_check
          %p156 = pneg %p87
        $region14: #{gpt_neo_self_attention.5} parent=11 // pred_check_branch
          %158 = sbr.rel (%p156) target = $region16
        $region15: #{gpt_neo_self_attention.5} parent=11 // pred_region
          %s159 = smul.u32 32, %s24
          %s160 = smul.u32 2, %s23
          %p161 = scmp.lt.s32.totalorder %s159, 31
          %s162 = scalar_select %p161, %s159, 31
          %p163 = scmp.lt.s32.totalorder %s160, 1
          %s164 = scalar_select %p163, %s160, 1
          %s165 = smul.addr %s162, 2
          %s166 = sadd.s32 %s164, %s165
          %s167 = smul.addr %s166, 8
          %s168 = scalar_lea.vmem %s1, %s167
          %s169 = smul.u32 32, %s24
          %s170 = smul.u32 2, %s23
        $region16: #{gpt_neo_self_attention.5} parent=11 // pred_fallthru
          _
        // Predicated region
        $region17: #{gpt_neo_self_attention.5} parent=11 // pred_check
          %p171 = pneg %p113
        $region18: #{gpt_neo_self_attention.5} parent=11 // pred_check_branch
          %173 = sbr.rel (%p171) target = $region20
        $region19: #{gpt_neo_self_attention.5} parent=11 // pred_region
          %s174 = smul.u32 2, %s23
          %p175 = scmp.lt.s32.totalorder %s174, 1
          %s176 = scalar_select %p175, %s174, 1
          %s177 = scalar_lea.vmem %s2, %s176
          %s178 = smul.u32 2, %s23
        $region20: #{gpt_neo_self_attention.5} parent=11 // pred_fallthru
          _
      $region12: #{gpt_neo_self_attention.5} parent=5 // pred_fallthru
        _
      %p179 = scmp.lt.s32.totalorder %s12, 2
      // Predicated region
      $region21: #{gpt_neo_self_attention.5} parent=5 // pred_check
        %p180 = pneg %p179
      $region22: #{gpt_neo_self_attention.5} parent=5 // pred_check_branch
        %182 = sbr.rel (%p180) target = $region24
      $region23: #{gpt_neo_self_attention.5} parent=5 // pred_region
        // Predicated region
        $region25: #{gpt_neo_self_attention.5} parent=23 // pred_check
          %p183 = pneg %p53
        $region26: #{gpt_neo_self_attention.5} parent=23 // pred_check_branch
          %185 = sbr.rel (%p183) target = $region28
        $region27: #{gpt_neo_self_attention.5} parent=23 // pred_region
          %s186 = smul.u32 32, %s19
          %s187 = smul.u32 2, %s21
          %p188 = scmp.lt.s32.totalorder %s186, 63
          %s189 = scalar_select %p188, %s186, 63
          %p190 = scmp.lt.s32.totalorder %s187, 1
          %s191 = scalar_select %p190, %s187, 1
          %s192 = smul.addr %s189, 2
          %s193 = sadd.s32 %s191, %s192
          %s194 = smul.addr %s193, 8
          %s195 = scalar_lea.vmem %s0, %s194
          %s196 = smul.u32 32, %s19
          %s197 = smul.u32 2, %s21
        $region28: #{gpt_neo_self_attention.5} parent=23 // pred_fallthru
          _
      $region24: #{gpt_neo_self_attention.5} parent=5 // pred_fallthru
        _
      %p198 = scmp.le.s32.totalorder 1, %s12
      %p199 = scmp.lt.s32.totalorder %s12, 3
      %p200 = pnand %p198, %p199
      %p201 = pneg %p200
      // Predicated region
      $region29: #{gpt_neo_self_attention.5} parent=5 // pred_check
        _
      $region30: #{gpt_neo_self_attention.5} parent=5 // pred_check_branch
        %203 = sbr.rel (%p200) target = $region32
      $region31: #{gpt_neo_self_attention.5} parent=5 // pred_region
        %s204 = ssub.s32 %s12, 1
        %s205 = smul.u32 32, %s22
        %s206 = smul.u32 2, %s24
        %p207 = scmp.lt.s32.totalorder %s205, 63
        %s208 = scalar_select %p207, %s205, 63
        %p209 = scmp.lt.s32.totalorder %s206, 1
        %s210 = scalar_select %p209, %s206, 1
        %s211 = smul.addr %s208, 2
        %s212 = sadd.s32 %s210, %s211
        %s213 = smul.addr %s212, 8
        %s214 = scalar_lea.vmem %s0, %s213
        %p215 = pneg %p59
        %p216 = pneg %p56
        %s217 = smul.u32 32, %s24
        %s218 = smul.u32 2, %s23
        %p219 = scmp.lt.s32.totalorder %s217, 31
        %s220 = scalar_select %p219, %s217, 31
        %p221 = scmp.lt.s32.totalorder %s218, 1
        %s222 = scalar_select %p221, %s218, 1
        %s223 = smul.addr %s220, 2
        %s224 = sadd.s32 %s222, %s223
        %s225 = smul.addr %s224, 8
        %s226 = scalar_lea.vmem %s1, %s225
        %p227 = pneg %p87
        %p228 = pneg %p84
        %s229 = smul.u32 2, %s23
        %p230 = scmp.lt.s32.totalorder %s229, 1
        %s231 = scalar_select %p230, %s229, 1
        %s232 = scalar_lea.vmem %s2, %s231
        %p233 = pneg %p113
        %p234 = pneg %p110
        %p235 = pneg %p141
        %p236 = pneg %p138
        %s237 = sand.u32 %s128, 1
        %s238 = scalar_lea.sflag [#allocation4], %s237
        %s239 = sand.u32 %s128, 1
        %s240 = smul.addr %s239, 512
        %s241 = scalar_lea.vmem [#allocation3], %s240
        %s242 = smul.u32 32, %s22
        %s243 = smul.u32 2, %s24
        %p244 = scmp.lt.s32.totalorder %s242, 63
        %s245 = scalar_select %p244, %s242, 63
        %p246 = scmp.lt.s32.totalorder %s243, 1
        %s247 = scalar_select %p246, %s243, 1
        %s248 = smul.addr %s245, 2
        %s249 = sadd.s32 %s247, %s248
        %s250 = smul.addr %s249, 8
        %s251 = scalar_lea.vmem %s0, %s250
        %s252 = smul.u32 32, %s22
        %s253 = smul.u32 2, %s24
        %s254 = smul.u32 32, %s24
        %s255 = smul.u32 2, %s23
        %p256 = scmp.lt.s32.totalorder %s254, 31
        %s257 = scalar_select %p256, %s254, 31
        %p258 = scmp.lt.s32.totalorder %s255, 1
        %s259 = scalar_select %p258, %s255, 1
        %s260 = smul.addr %s257, 2
        %s261 = sadd.s32 %s259, %s260
        %s262 = smul.addr %s261, 8
        %s263 = scalar_lea.vmem %s1, %s262
        %s264 = smul.u32 32, %s24
        %s265 = smul.u32 2, %s23
        %s266 = smul.u32 2, %s23
        %p267 = scmp.lt.s32.totalorder %s266, 1
        %s268 = scalar_select %p267, %s266, 1
        %s269 = scalar_lea.vmem %s2, %s268
        %s270 = smul.u32 2, %s23
        %s271 = smul.u32 32, %s22
        %s272 = smul.u32 2, %s23
        %p273 = scmp.eq.s32.totalorder %s24, 0
        // Predicated region
        $region33: #{gpt_neo_self_attention.5} parent=31 // pred_check
          %p274 = pneg %p273
        $region34: #{gpt_neo_self_attention.5} parent=31 // pred_check_branch
          %276 = sbr.rel (%p274) target = $region36
        $region35: #{gpt_neo_self_attention.5} parent=31 // pred_region
          %277 = vst [vmem:[#allocation2] sm:$0xff] 0.0
          %278 = vst [vmem:[#allocation2 + $0x8] sm:$0xff] 0.0
          %279 = vst [vmem:[#allocation2 + $0x10] sm:$0xff] 0.0
          %280 = vst [vmem:[#allocation2 + $0x18] sm:$0xff] 0.0
          %281 = vst [vmem:[#allocation2 + $0x20] sm:$0xff] 0.0
          %282 = vst [vmem:[#allocation2 + $0x28] sm:$0xff] 0.0
          %283 = vst [vmem:[#allocation2 + $0x30] sm:$0xff] 0.0
          %284 = vst [vmem:[#allocation2 + $0x38] sm:$0xff] 0.0
          %285 = vst [vmem:[#allocation2 + $0x40] sm:$0xff] 0.0
          %286 = vst [vmem:[#allocation2 + $0x48] sm:$0xff] 0.0
          %287 = vst [vmem:[#allocation2 + $0x50] sm:$0xff] 0.0
          %288 = vst [vmem:[#allocation2 + $0x58] sm:$0xff] 0.0
          %289 = vst [vmem:[#allocation2 + $0x60] sm:$0xff] 0.0
          %290 = vst [vmem:[#allocation2 + $0x68] sm:$0xff] 0.0
          %291 = vst [vmem:[#allocation2 + $0x70] sm:$0xff] 0.0
          %292 = vst [vmem:[#allocation2 + $0x78] sm:$0xff] 0.0
          %293 = vst [vmem:[#allocation2 + $0x80] sm:$0xff] 0.0
          %294 = vst [vmem:[#allocation2 + $0x88] sm:$0xff] 0.0
          %295 = vst [vmem:[#allocation2 + $0x90] sm:$0xff] 0.0
          %296 = vst [vmem:[#allocation2 + $0x98] sm:$0xff] 0.0
          %297 = vst [vmem:[#allocation2 + $0xa0] sm:$0xff] 0.0
          %298 = vst [vmem:[#allocation2 + $0xa8] sm:$0xff] 0.0
          %299 = vst [vmem:[#allocation2 + $0xb0] sm:$0xff] 0.0
          %300 = vst [vmem:[#allocation2 + $0xb8] sm:$0xff] 0.0
          %301 = vst [vmem:[#allocation2 + $0xc0] sm:$0xff] 0.0
          %302 = vst [vmem:[#allocation2 + $0xc8] sm:$0xff] 0.0
          %303 = vst [vmem:[#allocation2 + $0xd0] sm:$0xff] 0.0
          %304 = vst [vmem:[#allocation2 + $0xd8] sm:$0xff] 0.0
          %305 = vst [vmem:[#allocation2 + $0xe0] sm:$0xff] 0.0
          %306 = vst [vmem:[#allocation2 + $0xe8] sm:$0xff] 0.0
          %307 = vst [vmem:[#allocation2 + $0xf0] sm:$0xff] 0.0
          %308 = vst [vmem:[#allocation2 + $0xf8] sm:$0xff] 0.0
          %309 = vst [vmem:[#allocation2 + $0x100] sm:$0xff] 0.0
          %310 = vst [vmem:[#allocation2 + $0x108] sm:$0xff] 0.0
          %311 = vst [vmem:[#allocation2 + $0x110] sm:$0xff] 0.0
          %312 = vst [vmem:[#allocation2 + $0x118] sm:$0xff] 0.0
          %313 = vst [vmem:[#allocation2 + $0x120] sm:$0xff] 0.0
          %314 = vst [vmem:[#allocation2 + $0x128] sm:$0xff] 0.0
          %315 = vst [vmem:[#allocation2 + $0x130] sm:$0xff] 0.0
          %316 = vst [vmem:[#allocation2 + $0x138] sm:$0xff] 0.0
          %317 = vst [vmem:[#allocation2 + $0x140] sm:$0xff] 0.0
          %318 = vst [vmem:[#allocation2 + $0x148] sm:$0xff] 0.0
          %319 = vst [vmem:[#allocation2 + $0x150] sm:$0xff] 0.0
          %320 = vst [vmem:[#allocation2 + $0x158] sm:$0xff] 0.0
          %321 = vst [vmem:[#allocation2 + $0x160] sm:$0xff] 0.0
          %322 = vst [vmem:[#allocation2 + $0x168] sm:$0xff] 0.0
          %323 = vst [vmem:[#allocation2 + $0x170] sm:$0xff] 0.0
          %324 = vst [vmem:[#allocation2 + $0x178] sm:$0xff] 0.0
          %325 = vst [vmem:[#allocation2 + $0x180] sm:$0xff] 0.0
          %326 = vst [vmem:[#allocation2 + $0x188] sm:$0xff] 0.0
          %327 = vst [vmem:[#allocation2 + $0x190] sm:$0xff] 0.0
          %328 = vst [vmem:[#allocation2 + $0x198] sm:$0xff] 0.0
          %329 = vst [vmem:[#allocation2 + $0x1a0] sm:$0xff] 0.0
          %330 = vst [vmem:[#allocation2 + $0x1a8] sm:$0xff] 0.0
          %331 = vst [vmem:[#allocation2 + $0x1b0] sm:$0xff] 0.0
          %332 = vst [vmem:[#allocation2 + $0x1b8] sm:$0xff] 0.0
          %333 = vst [vmem:[#allocation2 + $0x1c0] sm:$0xff] 0.0
          %334 = vst [vmem:[#allocation2 + $0x1c8] sm:$0xff] 0.0
          %335 = vst [vmem:[#allocation2 + $0x1d0] sm:$0xff] 0.0
          %336 = vst [vmem:[#allocation2 + $0x1d8] sm:$0xff] 0.0
          %337 = vst [vmem:[#allocation2 + $0x1e0] sm:$0xff] 0.0
          %338 = vst [vmem:[#allocation2 + $0x1e8] sm:$0xff] 0.0
          %339 = vst [vmem:[#allocation2 + $0x1f0] sm:$0xff] 0.0
          %340 = vst [vmem:[#allocation2 + $0x1f8] sm:$0xff] 0.0
        $region36: #{gpt_neo_self_attention.5} parent=31 // pred_fallthru
          _
        %v341 = vld [vmem:[#allocation2] sm:$0xff]
        %v342 = vld [vmem:[#allocation2 + $0x8] sm:$0xff]
        %v343 = vld [vmem:[#allocation2 + $0x10] sm:$0xff]
        %v344 = vld [vmem:[#allocation2 + $0x18] sm:$0xff]
        %v345 = vld [vmem:[#allocation2 + $0x20] sm:$0xff]
        %v346 = vld [vmem:[#allocation2 + $0x28] sm:$0xff]
        %v347 = vld [vmem:[#allocation2 + $0x30] sm:$0xff]
        %v348 = vld [vmem:[#allocation2 + $0x38] sm:$0xff]
        %v349 = vld [vmem:[#allocation2 + $0x40] sm:$0xff]
        %v350 = vld [vmem:[#allocation2 + $0x48] sm:$0xff]
        %v351 = vld [vmem:[#allocation2 + $0x50] sm:$0xff]
        %v352 = vld [vmem:[#allocation2 + $0x58] sm:$0xff]
        %v353 = vld [vmem:[#allocation2 + $0x60] sm:$0xff]
        %v354 = vld [vmem:[#allocation2 + $0x68] sm:$0xff]
        %v355 = vld [vmem:[#allocation2 + $0x70] sm:$0xff]
        %v356 = vld [vmem:[#allocation2 + $0x78] sm:$0xff]
        %v357 = vld [vmem:[#allocation2 + $0x80] sm:$0xff]
        %v358 = vld [vmem:[#allocation2 + $0x88] sm:$0xff]
        %v359 = vld [vmem:[#allocation2 + $0x90] sm:$0xff]
        %v360 = vld [vmem:[#allocation2 + $0x98] sm:$0xff]
        %v361 = vld [vmem:[#allocation2 + $0xa0] sm:$0xff]
        %v362 = vld [vmem:[#allocation2 + $0xa8] sm:$0xff]
        %v363 = vld [vmem:[#allocation2 + $0xb0] sm:$0xff]
        %v364 = vld [vmem:[#allocation2 + $0xb8] sm:$0xff]
        %v365 = vld [vmem:[#allocation2 + $0xc0] sm:$0xff]
        %v366 = vld [vmem:[#allocation2 + $0xc8] sm:$0xff]
        %v367 = vld [vmem:[#allocation2 + $0xd0] sm:$0xff]
        %v368 = vld [vmem:[#allocation2 + $0xd8] sm:$0xff]
        %v369 = vld [vmem:[#allocation2 + $0xe0] sm:$0xff]
        %v370 = vld [vmem:[#allocation2 + $0xe8] sm:$0xff]
        %v371 = vld [vmem:[#allocation2 + $0xf0] sm:$0xff]
        %v372 = vld [vmem:[#allocation2 + $0xf8] sm:$0xff]
        %v373 = vld [vmem:[#allocation2 + $0x100] sm:$0xff]
        %v374 = vld [vmem:[#allocation2 + $0x108] sm:$0xff]
        %v375 = vld [vmem:[#allocation2 + $0x110] sm:$0xff]
        %v376 = vld [vmem:[#allocation2 + $0x118] sm:$0xff]
        %v377 = vld [vmem:[#allocation2 + $0x120] sm:$0xff]
        %v378 = vld [vmem:[#allocation2 + $0x128] sm:$0xff]
        %v379 = vld [vmem:[#allocation2 + $0x130] sm:$0xff]
        %v380 = vld [vmem:[#allocation2 + $0x138] sm:$0xff]
        %v381 = vld [vmem:[#allocation2 + $0x140] sm:$0xff]
        %v382 = vld [vmem:[#allocation2 + $0x148] sm:$0xff]
        %v383 = vld [vmem:[#allocation2 + $0x150] sm:$0xff]
        %v384 = vld [vmem:[#allocation2 + $0x158] sm:$0xff]
        %v385 = vld [vmem:[#allocation2 + $0x160] sm:$0xff]
        %v386 = vld [vmem:[#allocation2 + $0x168] sm:$0xff]
        %v387 = vld [vmem:[#allocation2 + $0x170] sm:$0xff]
        %v388 = vld [vmem:[#allocation2 + $0x178] sm:$0xff]
        %v389 = vld [vmem:[#allocation2 + $0x180] sm:$0xff]
        %v390 = vld [vmem:[#allocation2 + $0x188] sm:$0xff]
        %v391 = vld [vmem:[#allocation2 + $0x190] sm:$0xff]
        %v392 = vld [vmem:[#allocation2 + $0x198] sm:$0xff]
        %v393 = vld [vmem:[#allocation2 + $0x1a0] sm:$0xff]
        %v394 = vld [vmem:[#allocation2 + $0x1a8] sm:$0xff]
        %v395 = vld [vmem:[#allocation2 + $0x1b0] sm:$0xff]
        %v396 = vld [vmem:[#allocation2 + $0x1b8] sm:$0xff]
        %v397 = vld [vmem:[#allocation2 + $0x1c0] sm:$0xff]
        %v398 = vld [vmem:[#allocation2 + $0x1c8] sm:$0xff]
        %v399 = vld [vmem:[#allocation2 + $0x1d0] sm:$0xff]
        %v400 = vld [vmem:[#allocation2 + $0x1d8] sm:$0xff]
        %v401 = vld [vmem:[#allocation2 + $0x1e0] sm:$0xff]
        %v402 = vld [vmem:[#allocation2 + $0x1e8] sm:$0xff]
        %v403 = vld [vmem:[#allocation2 + $0x1f0] sm:$0xff]
        %v404 = vld [vmem:[#allocation2 + $0x1f8] sm:$0xff]
        %v405 = vld [vmem:[%s251] sm:$0xff]
        %v406 = vld [vmem:[%s251 + $0x8] sm:$0xff]
        %v407 = vld [vmem:[%s251 + $0x10] sm:$0xff]
        %v408 = vld [vmem:[%s251 + $0x18] sm:$0xff]
        %v409 = vld [vmem:[%s251 + $0x20] sm:$0xff]
        %v410 = vld [vmem:[%s251 + $0x28] sm:$0xff]
        %v411 = vld [vmem:[%s251 + $0x30] sm:$0xff]
        %v412 = vld [vmem:[%s251 + $0x38] sm:$0xff]
        %v413 = vld [vmem:[%s251 + $0x40] sm:$0xff]
        %v414 = vld [vmem:[%s251 + $0x48] sm:$0xff]
        %v415 = vld [vmem:[%s251 + $0x50] sm:$0xff]
        %v416 = vld [vmem:[%s251 + $0x58] sm:$0xff]
        %v417 = vld [vmem:[%s251 + $0x60] sm:$0xff]
        %v418 = vld [vmem:[%s251 + $0x68] sm:$0xff]
        %v419 = vld [vmem:[%s251 + $0x70] sm:$0xff]
        %v420 = vld [vmem:[%s251 + $0x78] sm:$0xff]
        %v421 = vld [vmem:[%s251 + $0x80] sm:$0xff]
        %v422 = vld [vmem:[%s251 + $0x88] sm:$0xff]
        %v423 = vld [vmem:[%s251 + $0x90] sm:$0xff]
        %v424 = vld [vmem:[%s251 + $0x98] sm:$0xff]
        %v425 = vld [vmem:[%s251 + $0xa0] sm:$0xff]
        %v426 = vld [vmem:[%s251 + $0xa8] sm:$0xff]
        %v427 = vld [vmem:[%s251 + $0xb0] sm:$0xff]
        %v428 = vld [vmem:[%s251 + $0xb8] sm:$0xff]
        %v429 = vld [vmem:[%s251 + $0xc0] sm:$0xff]
        %v430 = vld [vmem:[%s251 + $0xc8] sm:$0xff]
        %v431 = vld [vmem:[%s251 + $0xd0] sm:$0xff]
        %v432 = vld [vmem:[%s251 + $0xd8] sm:$0xff]
        %v433 = vld [vmem:[%s251 + $0xe0] sm:$0xff]
        %v434 = vld [vmem:[%s251 + $0xe8] sm:$0xff]
        %v435 = vld [vmem:[%s251 + $0xf0] sm:$0xff]
        %v436 = vld [vmem:[%s251 + $0xf8] sm:$0xff]
        %v437 = vld [vmem:[%s251 + $0x100] sm:$0xff]
        %v438 = vld [vmem:[%s251 + $0x108] sm:$0xff]
        %v439 = vld [vmem:[%s251 + $0x110] sm:$0xff]
        %v440 = vld [vmem:[%s251 + $0x118] sm:$0xff]
        %v441 = vld [vmem:[%s251 + $0x120] sm:$0xff]
        %v442 = vld [vmem:[%s251 + $0x128] sm:$0xff]
        %v443 = vld [vmem:[%s251 + $0x130] sm:$0xff]
        %v444 = vld [vmem:[%s251 + $0x138] sm:$0xff]
        %v445 = vld [vmem:[%s251 + $0x140] sm:$0xff]
        %v446 = vld [vmem:[%s251 + $0x148] sm:$0xff]
        %v447 = vld [vmem:[%s251 + $0x150] sm:$0xff]
        %v448 = vld [vmem:[%s251 + $0x158] sm:$0xff]
        %v449 = vld [vmem:[%s251 + $0x160] sm:$0xff]
        %v450 = vld [vmem:[%s251 + $0x168] sm:$0xff]
        %v451 = vld [vmem:[%s251 + $0x170] sm:$0xff]
        %v452 = vld [vmem:[%s251 + $0x178] sm:$0xff]
        %v453 = vld [vmem:[%s251 + $0x180] sm:$0xff]
        %v454 = vld [vmem:[%s251 + $0x188] sm:$0xff]
        %v455 = vld [vmem:[%s251 + $0x190] sm:$0xff]
        %v456 = vld [vmem:[%s251 + $0x198] sm:$0xff]
        %v457 = vld [vmem:[%s251 + $0x1a0] sm:$0xff]
        %v458 = vld [vmem:[%s251 + $0x1a8] sm:$0xff]
        %v459 = vld [vmem:[%s251 + $0x1b0] sm:$0xff]
        %v460 = vld [vmem:[%s251 + $0x1b8] sm:$0xff]
        %v461 = vld [vmem:[%s251 + $0x1c0] sm:$0xff]
        %v462 = vld [vmem:[%s251 + $0x1c8] sm:$0xff]
        %v463 = vld [vmem:[%s251 + $0x1d0] sm:$0xff]
        %v464 = vld [vmem:[%s251 + $0x1d8] sm:$0xff]
        %v465 = vld [vmem:[%s251 + $0x1e0] sm:$0xff]
        %v466 = vld [vmem:[%s251 + $0x1e8] sm:$0xff]
        %v467 = vld [vmem:[%s251 + $0x1f0] sm:$0xff]
        %v468 = vld [vmem:[%s251 + $0x1f8] sm:$0xff]
        %v469 = vld [vmem:[%s263] sm:$0xff]
        %v470 = vld [vmem:[%s263 + $0x8] sm:$0xff]
        %v471 = vld [vmem:[%s263 + $0x10] sm:$0xff]
        %v472 = vld [vmem:[%s263 + $0x18] sm:$0xff]
        %v473 = vld [vmem:[%s263 + $0x20] sm:$0xff]
        %v474 = vld [vmem:[%s263 + $0x28] sm:$0xff]
        %v475 = vld [vmem:[%s263 + $0x30] sm:$0xff]
        %v476 = vld [vmem:[%s263 + $0x38] sm:$0xff]
        %v477 = vld [vmem:[%s263 + $0x40] sm:$0xff]
        %v478 = vld [vmem:[%s263 + $0x48] sm:$0xff]
        %v479 = vld [vmem:[%s263 + $0x50] sm:$0xff]
        %v480 = vld [vmem:[%s263 + $0x58] sm:$0xff]
        %v481 = vld [vmem:[%s263 + $0x60] sm:$0xff]
        %v482 = vld [vmem:[%s263 + $0x68] sm:$0xff]
        %v483 = vld [vmem:[%s263 + $0x70] sm:$0xff]
        %v484 = vld [vmem:[%s263 + $0x78] sm:$0xff]
        %v485 = vld [vmem:[%s263 + $0x80] sm:$0xff]
        %v486 = vld [vmem:[%s263 + $0x88] sm:$0xff]
        %v487 = vld [vmem:[%s263 + $0x90] sm:$0xff]
        %v488 = vld [vmem:[%s263 + $0x98] sm:$0xff]
        %v489 = vld [vmem:[%s263 + $0xa0] sm:$0xff]
        %v490 = vld [vmem:[%s263 + $0xa8] sm:$0xff]
        %v491 = vld [vmem:[%s263 + $0xb0] sm:$0xff]
        %v492 = vld [vmem:[%s263 + $0xb8] sm:$0xff]
        %v493 = vld [vmem:[%s263 + $0xc0] sm:$0xff]
        %v494 = vld [vmem:[%s263 + $0xc8] sm:$0xff]
        %v495 = vld [vmem:[%s263 + $0xd0] sm:$0xff]
        %v496 = vld [vmem:[%s263 + $0xd8] sm:$0xff]
        %v497 = vld [vmem:[%s263 + $0xe0] sm:$0xff]
        %v498 = vld [vmem:[%s263 + $0xe8] sm:$0xff]
        %v499 = vld [vmem:[%s263 + $0xf0] sm:$0xff]
        %v500 = vld [vmem:[%s263 + $0xf8] sm:$0xff]
        %v501 = vld [vmem:[%s263 + $0x100] sm:$0xff]
        %v502 = vld [vmem:[%s263 + $0x108] sm:$0xff]
        %v503 = vld [vmem:[%s263 + $0x110] sm:$0xff]
        %v504 = vld [vmem:[%s263 + $0x118] sm:$0xff]
        %v505 = vld [vmem:[%s263 + $0x120] sm:$0xff]
        %v506 = vld [vmem:[%s263 + $0x128] sm:$0xff]
        %v507 = vld [vmem:[%s263 + $0x130] sm:$0xff]
        %v508 = vld [vmem:[%s263 + $0x138] sm:$0xff]
        %v509 = vld [vmem:[%s263 + $0x140] sm:$0xff]
        %v510 = vld [vmem:[%s263 + $0x148] sm:$0xff]
        %v511 = vld [vmem:[%s263 + $0x150] sm:$0xff]
        %v512 = vld [vmem:[%s263 + $0x158] sm:$0xff]
        %v513 = vld [vmem:[%s263 + $0x160] sm:$0xff]
        %v514 = vld [vmem:[%s263 + $0x168] sm:$0xff]
        %v515 = vld [vmem:[%s263 + $0x170] sm:$0xff]
        %v516 = vld [vmem:[%s263 + $0x178] sm:$0xff]
        %v517 = vld [vmem:[%s263 + $0x180] sm:$0xff]
        %v518 = vld [vmem:[%s263 + $0x188] sm:$0xff]
        %v519 = vld [vmem:[%s263 + $0x190] sm:$0xff]
        %v520 = vld [vmem:[%s263 + $0x198] sm:$0xff]
        %v521 = vld [vmem:[%s263 + $0x1a0] sm:$0xff]
        %v522 = vld [vmem:[%s263 + $0x1a8] sm:$0xff]
        %v523 = vld [vmem:[%s263 + $0x1b0] sm:$0xff]
        %v524 = vld [vmem:[%s263 + $0x1b8] sm:$0xff]
        %v525 = vld [vmem:[%s263 + $0x1c0] sm:$0xff]
        %v526 = vld [vmem:[%s263 + $0x1c8] sm:$0xff]
        %v527 = vld [vmem:[%s263 + $0x1d0] sm:$0xff]
        %v528 = vld [vmem:[%s263 + $0x1d8] sm:$0xff]
        %v529 = vld [vmem:[%s263 + $0x1e0] sm:$0xff]
        %v530 = vld [vmem:[%s263 + $0x1e8] sm:$0xff]
        %v531 = vld [vmem:[%s263 + $0x1f0] sm:$0xff]
        %v532 = vld [vmem:[%s263 + $0x1f8] sm:$0xff]
        %533 = vmatprep.subr.mxu0 %v470
        %534 = vmatpush1.msra.mxu0 %v469
        %535 = vmatprep.subr.mxu0 %v472
        %536 = vmatpush1.msra.mxu0 %v471
        %537 = vmatprep.subr.mxu0 %v474
        %538 = vmatpush1.msra.mxu0 %v473
        %539 = vmatprep.subr.mxu0 %v476
        %540 = vmatpush1.msra.mxu0 %v475
        %541 = vmatprep.subr.mxu0 %v478
        %542 = vmatpush1.msra.mxu0 %v477
        %543 = vmatprep.subr.mxu0 %v480
        %544 = vmatpush1.msra.mxu0 %v479
        %545 = vmatprep.subr.mxu0 %v482
        %546 = vmatpush1.msra.mxu0 %v481
        %547 = vmatprep.subr.mxu0 %v484
        %548 = vmatpush1.msra.mxu0 %v483
        %549 = vmatprep.subr.mxu0 %v486
        %550 = vmatpush1.msra.mxu0 %v485
        %551 = vmatprep.subr.mxu0 %v488
        %552 = vmatpush1.msra.mxu0 %v487
        %553 = vmatprep.subr.mxu0 %v490
        %554 = vmatpush1.msra.mxu0 %v489
        %555 = vmatprep.subr.mxu0 %v492
        %556 = vmatpush1.msra.mxu0 %v491
        %557 = vmatprep.subr.mxu0 %v494
        %558 = vmatpush1.msra.mxu0 %v493
        %559 = vmatprep.subr.mxu0 %v496
        %560 = vmatpush1.msra.mxu0 %v495
        %561 = vmatprep.subr.mxu0 %v498
        %562 = vmatpush1.msra.mxu0 %v497
        %563 = vmatprep.subr.mxu0 %v500
        %564 = vmatpush1.msra.mxu0 %v499
        %565 = vmatprep.subr.mxu0 %v502
        %566 = vmatpush1.msra.mxu0 %v501
        %567 = vmatprep.subr.mxu0 %v504
        %568 = vmatpush1.msra.mxu0 %v503
        %569 = vmatprep.subr.mxu0 %v506
        %570 = vmatpush1.msra.mxu0 %v505
        %571 = vmatprep.subr.mxu0 %v508
        %572 = vmatpush1.msra.mxu0 %v507
        %573 = vmatprep.subr.mxu0 %v510
        %574 = vmatpush1.msra.mxu0 %v509
        %575 = vmatprep.subr.mxu0 %v512
        %576 = vmatpush1.msra.mxu0 %v511
        %577 = vmatprep.subr.mxu0 %v514
        %578 = vmatpush1.msra.mxu0 %v513
        %579 = vmatprep.subr.mxu0 %v516
        %580 = vmatpush1.msra.mxu0 %v515
        %581 = vmatprep.subr.mxu0 %v518
        %582 = vmatpush1.msra.mxu0 %v517
        %583 = vmatprep.subr.mxu0 %v520
        %584 = vmatpush1.msra.mxu0 %v519
        %585 = vmatprep.subr.mxu0 %v522
        %586 = vmatpush1.msra.mxu0 %v521
        %587 = vmatprep.subr.mxu0 %v524
        %588 = vmatpush1.msra.mxu0 %v523
        %589 = vmatprep.subr.mxu0 %v526
        %590 = vmatpush1.msra.mxu0 %v525
        %591 = vmatprep.subr.mxu0 %v528
        %592 = vmatpush1.msra.mxu0 %v527
        %593 = vmatprep.subr.mxu0 %v530
        %594 = vmatpush1.msra.mxu0 %v529
        %595 = vmatprep.subr.mxu0 %v532
        %596 = vmatpush1.msra.mxu0 %v531
        %597 = vmatprep.mubr.f32.mxu0 %v406
        %598 = vmatmul.mubr.f32.gmra.mrb[0].mxu0 %v405
        %v599 = vpop.f32.mrb[0].mxu0
        %v600 = vadd.f32 0.0, %v599
        %v601 = vpop.f32.mrb[0].mxu0
        %v602 = vadd.f32 0.0, %v601
        %603 = vmatprep.mubr.f32.mxu0 %v408
        %604 = vmatmul.mubr.f32.gmra.mrb[0].mxu0 %v407
        %v605 = vpop.f32.mrb[0].mxu0
        %v606 = vadd.f32 0.0, %v605
        %v607 = vpop.f32.mrb[0].mxu0
        %v608 = vadd.f32 0.0, %v607
        %609 = vmatprep.mubr.f32.mxu0 %v410
        %610 = vmatmul.mubr.f32.gmra.mrb[0].mxu0 %v409
        %v611 = vpop.f32.mrb[0].mxu0
        %v612 = vadd.f32 0.0, %v611
        %v613 = vpop.f32.mrb[0].mxu0
        %v614 = vadd.f32 0.0, %v613
        %615 = vmatprep.mubr.f32.mxu0 %v412
        %616 = vmatmul.mubr.f32.gmra.mrb[0].mxu0 %v411
        %v617 = vpop.f32.mrb[0].mxu0
        %v618 = vadd.f32 0.0, %v617
        %v619 = vpop.f32.mrb[0].mxu0
        %v620 = vadd.f32 0.0, %v619
        %621 = vmatprep.mubr.f32.mxu0 %v414
        %622 = vmatmul.mubr.f32.gmra.mrb[0].mxu0 %v413
        %v623 = vpop.f32.mrb[0].mxu0
        %v624 = vadd.f32 0.0, %v623
        %v625 = vpop.f32.mrb[0].mxu0
        %v626 = vadd.f32 0.0, %v625
        %627 = vmatprep.mubr.f32.mxu0 %v416
        %628 = vmatmul.mubr.f32.gmra.mrb[0].mxu0 %v415
        %v629 = vpop.f32.mrb[0].mxu0
        %v630 = vadd.f32 0.0, %v629
        %v631 = vpop.f32.mrb[0].mxu0
        %v632 = vadd.f32 0.0, %v631
        %633 = vmatprep.mubr.f32.mxu0 %v418
        %634 = vmatmul.mubr.f32.gmra.mrb[0].mxu0 %v417
        %v635 = vpop.f32.mrb[0].mxu0
        %v636 = vadd.f32 0.0, %v635
        %v637 = vpop.f32.mrb[0].mxu0
        %v638 = vadd.f32 0.0, %v637
        %639 = vmatprep.mubr.f32.mxu0 %v420
        %640 = vmatmul.mubr.f32.gmra.mrb[0].mxu0 %v419
        %v641 = vpop.f32.mrb[0].mxu0
        %v642 = vadd.f32 0.0, %v641
        %v643 = vpop.f32.mrb[0].mxu0
        %v644 = vadd.f32 0.0, %v643
        %645 = vmatprep.mubr.f32.mxu0 %v422
        %646 = vmatmul.mubr.f32.gmra.mrb[0].mxu0 %v421
        %v647 = vpop.f32.mrb[0].mxu0
        %v648 = vadd.f32 0.0, %v647
        %v649 = vpop.f32.mrb[0].mxu0
        %v650 = vadd.f32 0.0, %v649
        %651 = vmatprep.mubr.f32.mxu0 %v424
        %652 = vmatmul.mubr.f32.gmra.mrb[0].mxu0 %v423
        %v653 = vpop.f32.mrb[0].mxu0
        %v654 = vadd.f32 0.0, %v653
        %v655 = vpop.f32.mrb[0].mxu0
        %v656 = vadd.f32 0.0, %v655
        %657 = vmatprep.mubr.f32.mxu0 %v426
        %658 = vmatmul.mubr.f32.gmra.mrb[0].mxu0 %v425
        %v659 = vpop.f32.mrb[0].mxu0
        %v660 = vadd.f32 0.0, %v659
        %v661 = vpop.f32.mrb[0].mxu0
        %v662 = vadd.f32 0.0, %v661
        %663 = vmatprep.mubr.f32.mxu0 %v428
        %664 = vmatmul.mubr.f32.gmra.mrb[0].mxu0 %v427
        %v665 = vpop.f32.mrb[0].mxu0
        %v666 = vadd.f32 0.0, %v665
        %v667 = vpop.f32.mrb[0].mxu0
        %v668 = vadd.f32 0.0, %v667
        %669 = vmatprep.mubr.f32.mxu0 %v430
        %670 = vmatmul.mubr.f32.gmra.mrb[0].mxu0 %v429
        %v671 = vpop.f32.mrb[0].mxu0
        %v672 = vadd.f32 0.0, %v671
        %v673 = vpop.f32.mrb[0].mxu0
        %v674 = vadd.f32 0.0, %v673
        %675 = vmatprep.mubr.f32.mxu0 %v432
        %676 = vmatmul.mubr.f32.gmra.mrb[0].mxu0 %v431
        %v677 = vpop.f32.mrb[0].mxu0
        %v678 = vadd.f32 0.0, %v677
        %v679 = vpop.f32.mrb[0].mxu0
        %v680 = vadd.f32 0.0, %v679
        %681 = vmatprep.mubr.f32.mxu0 %v434
        %682 = vmatmul.mubr.f32.gmra.mrb[0].mxu0 %v433
        %v683 = vpop.f32.mrb[0].mxu0
        %v684 = vadd.f32 0.0, %v683
        %v685 = vpop.f32.mrb[0].mxu0
        %v686 = vadd.f32 0.0, %v685
        %687 = vmatprep.mubr.f32.mxu0 %v436
        %688 = vmatmul.mubr.f32.gmra.mrb[0].mxu0 %v435
        %v689 = vpop.f32.mrb[0].mxu0
        %v690 = vadd.f32 0.0, %v689
        %v691 = vpop.f32.mrb[0].mxu0
        %v692 = vadd.f32 0.0, %v691
        %693 = vmatprep.mubr.f32.mxu0 %v438
        %694 = vmatmul.mubr.f32.gmra.mrb[0].mxu0 %v437
        %v695 = vpop.f32.mrb[0].mxu0
        %v696 = vadd.f32 0.0, %v695
        %v697 = vpop.f32.mrb[0].mxu0
        %v698 = vadd.f32 0.0, %v697
        %699 = vmatprep.mubr.f32.mxu0 %v440
        %700 = vmatmul.mubr.f32.gmra.mrb[0].mxu0 %v439
        %v701 = vpop.f32.mrb[0].mxu0
        %v702 = vadd.f32 0.0, %v701
        %v703 = vpop.f32.mrb[0].mxu0
        %v704 = vadd.f32 0.0, %v703
        %705 = vmatprep.mubr.f32.mxu0 %v442
        %706 = vmatmul.mubr.f32.gmra.mrb[0].mxu0 %v441
        %v707 = vpop.f32.mrb[0].mxu0
        %v708 = vadd.f32 0.0, %v707
        %v709 = vpop.f32.mrb[0].mxu0
        %v710 = vadd.f32 0.0, %v709
        %711 = vmatprep.mubr.f32.mxu0 %v444
        %712 = vmatmul.mubr.f32.gmra.mrb[0].mxu0 %v443
        %v713 = vpop.f32.mrb[0].mxu0
        %v714 = vadd.f32 0.0, %v713
        %v715 = vpop.f32.mrb[0].mxu0
        %v716 = vadd.f32 0.0, %v715
        %717 = vmatprep.mubr.f32.mxu0 %v446
        %718 = vmatmul.mubr.f32.gmra.mrb[0].mxu0 %v445
        %v719 = vpop.f32.mrb[0].mxu0
        %v720 = vadd.f32 0.0, %v719
        %v721 = vpop.f32.mrb[0].mxu0
        %v722 = vadd.f32 0.0, %v721
        %723 = vmatprep.mubr.f32.mxu0 %v448
        %724 = vmatmul.mubr.f32.gmra.mrb[0].mxu0 %v447
        %v725 = vpop.f32.mrb[0].mxu0
        %v726 = vadd.f32 0.0, %v725
        %v727 = vpop.f32.mrb[0].mxu0
        %v728 = vadd.f32 0.0, %v727
        %729 = vmatprep.mubr.f32.mxu0 %v450
        %730 = vmatmul.mubr.f32.gmra.mrb[0].mxu0 %v449
        %v731 = vpop.f32.mrb[0].mxu0
        %v732 = vadd.f32 0.0, %v731
        %v733 = vpop.f32.mrb[0].mxu0
        %v734 = vadd.f32 0.0, %v733
        %735 = vmatprep.mubr.f32.mxu0 %v452
        %736 = vmatmul.mubr.f32.gmra.mrb[0].mxu0 %v451
        %v737 = vpop.f32.mrb[0].mxu0
        %v738 = vadd.f32 0.0, %v737
        %v739 = vpop.f32.mrb[0].mxu0
        %v740 = vadd.f32 0.0, %v739
        %741 = vmatprep.mubr.f32.mxu0 %v454
        %742 = vmatmul.mubr.f32.gmra.mrb[0].mxu0 %v453
        %v743 = vpop.f32.mrb[0].mxu0
        %v744 = vadd.f32 0.0, %v743
        %v745 = vpop.f32.mrb[0].mxu0
        %v746 = vadd.f32 0.0, %v745
        %747 = vmatprep.mubr.f32.mxu0 %v456
        %748 = vmatmul.mubr.f32.gmra.mrb[0].mxu0 %v455
        %v749 = vpop.f32.mrb[0].mxu0
        %v750 = vadd.f32 0.0, %v749
        %v751 = vpop.f32.mrb[0].mxu0
        %v752 = vadd.f32 0.0, %v751
        %753 = vmatprep.mubr.f32.mxu0 %v458
        %754 = vmatmul.mubr.f32.gmra.mrb[0].mxu0 %v457
        %v755 = vpop.f32.mrb[0].mxu0
        %v756 = vadd.f32 0.0, %v755
        %v757 = vpop.f32.mrb[0].mxu0
        %v758 = vadd.f32 0.0, %v757
        %759 = vmatprep.mubr.f32.mxu0 %v460
        %760 = vmatmul.mubr.f32.gmra.mrb[0].mxu0 %v459
        %v761 = vpop.f32.mrb[0].mxu0
        %v762 = vadd.f32 0.0, %v761
        %v763 = vpop.f32.mrb[0].mxu0
        %v764 = vadd.f32 0.0, %v763
        %765 = vmatprep.mubr.f32.mxu0 %v462
        %766 = vmatmul.mubr.f32.gmra.mrb[0].mxu0 %v461
        %v767 = vpop.f32.mrb[0].mxu0
        %v768 = vadd.f32 0.0, %v767
        %v769 = vpop.f32.mrb[0].mxu0
        %v770 = vadd.f32 0.0, %v769
        %771 = vmatprep.mubr.f32.mxu0 %v464
        %772 = vmatmul.mubr.f32.gmra.mrb[0].mxu0 %v463
        %v773 = vpop.f32.mrb[0].mxu0
        %v774 = vadd.f32 0.0, %v773
        %v775 = vpop.f32.mrb[0].mxu0
        %v776 = vadd.f32 0.0, %v775
        %777 = vmatprep.mubr.f32.mxu0 %v466
        %778 = vmatmul.mubr.f32.gmra.mrb[0].mxu0 %v465
        %v779 = vpop.f32.mrb[0].mxu0
        %v780 = vadd.f32 0.0, %v779
        %v781 = vpop.f32.mrb[0].mxu0
        %v782 = vadd.f32 0.0, %v781
        %783 = vmatprep.mubr.f32.mxu0 %v468
        %784 = vmatmul.mubr.f32.gmra.mrb[0].mxu0 %v467
        %v785 = vpop.f32.mrb[0].mxu0
        %v786 = vadd.f32 0.0, %v785
        %v787 = vpop.f32.mrb[0].mxu0
        %v788 = vadd.f32 0.0, %v787
        %789 = vdwg.mxu0
        %v790 = vadd.f32 %v341, %v600
        %v791 = vadd.f32 %v342, %v602
        %v792 = vadd.f32 %v343, %v606
        %v793 = vadd.f32 %v344, %v608
        %v794 = vadd.f32 %v345, %v612
        %v795 = vadd.f32 %v346, %v614
        %v796 = vadd.f32 %v347, %v618
        %v797 = vadd.f32 %v348, %v620
        %v798 = vadd.f32 %v349, %v624
        %v799 = vadd.f32 %v350, %v626
        %v800 = vadd.f32 %v351, %v630
        %v801 = vadd.f32 %v352, %v632
        %v802 = vadd.f32 %v353, %v636
        %v803 = vadd.f32 %v354, %v638
        %v804 = vadd.f32 %v355, %v642
        %v805 = vadd.f32 %v356, %v644
        %v806 = vadd.f32 %v357, %v648
        %v807 = vadd.f32 %v358, %v650
        %v808 = vadd.f32 %v359, %v654
        %v809 = vadd.f32 %v360, %v656
        %v810 = vadd.f32 %v361, %v660
        %v811 = vadd.f32 %v362, %v662
        %v812 = vadd.f32 %v363, %v666
        %v813 = vadd.f32 %v364, %v668
        %v814 = vadd.f32 %v365, %v672
        %v815 = vadd.f32 %v366, %v674
        %v816 = vadd.f32 %v367, %v678
        %v817 = vadd.f32 %v368, %v680
        %v818 = vadd.f32 %v369, %v684
        %v819 = vadd.f32 %v370, %v686
        %v820 = vadd.f32 %v371, %v690
        %v821 = vadd.f32 %v372, %v692
        %v822 = vadd.f32 %v373, %v696
        %v823 = vadd.f32 %v374, %v698
        %v824 = vadd.f32 %v375, %v702
        %v825 = vadd.f32 %v376, %v704
        %v826 = vadd.f32 %v377, %v708
        %v827 = vadd.f32 %v378, %v710
        %v828 = vadd.f32 %v379, %v714
        %v829 = vadd.f32 %v380, %v716
        %v830 = vadd.f32 %v381, %v720
        %v831 = vadd.f32 %v382, %v722
        %v832 = vadd.f32 %v383, %v726
        %v833 = vadd.f32 %v384, %v728
        %v834 = vadd.f32 %v385, %v732
        %v835 = vadd.f32 %v386, %v734
        %v836 = vadd.f32 %v387, %v738
        %v837 = vadd.f32 %v388, %v740
        %v838 = vadd.f32 %v389, %v744
        %v839 = vadd.f32 %v390, %v746
        %v840 = vadd.f32 %v391, %v750
        %v841 = vadd.f32 %v392, %v752
        %v842 = vadd.f32 %v393, %v756
        %v843 = vadd.f32 %v394, %v758
        %v844 = vadd.f32 %v395, %v762
        %v845 = vadd.f32 %v396, %v764
        %v846 = vadd.f32 %v397, %v768
        %v847 = vadd.f32 %v398, %v770
        %v848 = vadd.f32 %v399, %v774
        %v849 = vadd.f32 %v400, %v776
        %v850 = vadd.f32 %v401, %v780
        %v851 = vadd.f32 %v402, %v782
        %v852 = vadd.f32 %v403, %v786
        %v853 = vadd.f32 %v404, %v788
        %854 = vst [vmem:[#allocation2] sm:$0xff] %v790
        %855 = vst [vmem:[#allocation2 + $0x8] sm:$0xff] %v791
        %856 = vst [vmem:[#allocation2 + $0x10] sm:$0xff] %v792
        %857 = vst [vmem:[#allocation2 + $0x18] sm:$0xff] %v793
        %858 = vst [vmem:[#allocation2 + $0x20] sm:$0xff] %v794
        %859 = vst [vmem:[#allocation2 + $0x28] sm:$0xff] %v795
        %860 = vst [vmem:[#allocation2 + $0x30] sm:$0xff] %v796
        %861 = vst [vmem:[#allocation2 + $0x38] sm:$0xff] %v797
        %862 = vst [vmem:[#allocation2 + $0x40] sm:$0xff] %v798
        %863 = vst [vmem:[#allocation2 + $0x48] sm:$0xff] %v799
        %864 = vst [vmem:[#allocation2 + $0x50] sm:$0xff] %v800
        %865 = vst [vmem:[#allocation2 + $0x58] sm:$0xff] %v801
        %866 = vst [vmem:[#allocation2 + $0x60] sm:$0xff] %v802
        %867 = vst [vmem:[#allocation2 + $0x68] sm:$0xff] %v803
        %868 = vst [vmem:[#allocation2 + $0x70] sm:$0xff] %v804
        %869 = vst [vmem:[#allocation2 + $0x78] sm:$0xff] %v805
        %870 = vst [vmem:[#allocation2 + $0x80] sm:$0xff] %v806
        %871 = vst [vmem:[#allocation2 + $0x88] sm:$0xff] %v807
        %872 = vst [vmem:[#allocation2 + $0x90] sm:$0xff] %v808
        %873 = vst [vmem:[#allocation2 + $0x98] sm:$0xff] %v809
        %874 = vst [vmem:[#allocation2 + $0xa0] sm:$0xff] %v810
        %875 = vst [vmem:[#allocation2 + $0xa8] sm:$0xff] %v811
        %876 = vst [vmem:[#allocation2 + $0xb0] sm:$0xff] %v812
        %877 = vst [vmem:[#allocation2 + $0xb8] sm:$0xff] %v813
        %878 = vst [vmem:[#allocation2 + $0xc0] sm:$0xff] %v814
        %879 = vst [vmem:[#allocation2 + $0xc8] sm:$0xff] %v815
        %880 = vst [vmem:[#allocation2 + $0xd0] sm:$0xff] %v816
        %881 = vst [vmem:[#allocation2 + $0xd8] sm:$0xff] %v817
        %882 = vst [vmem:[#allocation2 + $0xe0] sm:$0xff] %v818
        %883 = vst [vmem:[#allocation2 + $0xe8] sm:$0xff] %v819
        %884 = vst [vmem:[#allocation2 + $0xf0] sm:$0xff] %v820
        %885 = vst [vmem:[#allocation2 + $0xf8] sm:$0xff] %v821
        %886 = vst [vmem:[#allocation2 + $0x100] sm:$0xff] %v822
        %887 = vst [vmem:[#allocation2 + $0x108] sm:$0xff] %v823
        %888 = vst [vmem:[#allocation2 + $0x110] sm:$0xff] %v824
        %889 = vst [vmem:[#allocation2 + $0x118] sm:$0xff] %v825
        %890 = vst [vmem:[#allocation2 + $0x120] sm:$0xff] %v826
        %891 = vst [vmem:[#allocation2 + $0x128] sm:$0xff] %v827
        %892 = vst [vmem:[#allocation2 + $0x130] sm:$0xff] %v828
        %893 = vst [vmem:[#allocation2 + $0x138] sm:$0xff] %v829
        %894 = vst [vmem:[#allocation2 + $0x140] sm:$0xff] %v830
        %895 = vst [vmem:[#allocation2 + $0x148] sm:$0xff] %v831
        %896 = vst [vmem:[#allocation2 + $0x150] sm:$0xff] %v832
        %897 = vst [vmem:[#allocation2 + $0x158] sm:$0xff] %v833
        %898 = vst [vmem:[#allocation2 + $0x160] sm:$0xff] %v834
        %899 = vst [vmem:[#allocation2 + $0x168] sm:$0xff] %v835
        %900 = vst [vmem:[#allocation2 + $0x170] sm:$0xff] %v836
        %901 = vst [vmem:[#allocation2 + $0x178] sm:$0xff] %v837
        %902 = vst [vmem:[#allocation2 + $0x180] sm:$0xff] %v838
        %903 = vst [vmem:[#allocation2 + $0x188] sm:$0xff] %v839
        %904 = vst [vmem:[#allocation2 + $0x190] sm:$0xff] %v840
        %905 = vst [vmem:[#allocation2 + $0x198] sm:$0xff] %v841
        %906 = vst [vmem:[#allocation2 + $0x1a0] sm:$0xff] %v842
        %907 = vst [vmem:[#allocation2 + $0x1a8] sm:$0xff] %v843
        %908 = vst [vmem:[#allocation2 + $0x1b0] sm:$0xff] %v844
        %909 = vst [vmem:[#allocation2 + $0x1b8] sm:$0xff] %v845
        %910 = vst [vmem:[#allocation2 + $0x1c0] sm:$0xff] %v846
        %911 = vst [vmem:[#allocation2 + $0x1c8] sm:$0xff] %v847
        %912 = vst [vmem:[#allocation2 + $0x1d0] sm:$0xff] %v848
        %913 = vst [vmem:[#allocation2 + $0x1d8] sm:$0xff] %v849
        %914 = vst [vmem:[#allocation2 + $0x1e0] sm:$0xff] %v850
        %915 = vst [vmem:[#allocation2 + $0x1e8] sm:$0xff] %v851
        %916 = vst [vmem:[#allocation2 + $0x1f0] sm:$0xff] %v852
        %917 = vst [vmem:[#allocation2 + $0x1f8] sm:$0xff] %v853
        // Predicated region
        $region37: #{gpt_neo_self_attention.5} parent=31 // pred_check
          %p918 = pneg %p273
        $region38: #{gpt_neo_self_attention.5} parent=31 // pred_check_branch
          %920 = sbr.rel (%p918) target = $region40
        $region39: #{gpt_neo_self_attention.5} parent=31 // pred_region
          %v921 = vld [vmem:[#allocation2] sm:$0xff]
          %v922 = vld [vmem:[#allocation2 + $0x8] sm:$0xff]
          %v923 = vld [vmem:[#allocation2 + $0x10] sm:$0xff]
          %v924 = vld [vmem:[#allocation2 + $0x18] sm:$0xff]
          %v925 = vld [vmem:[#allocation2 + $0x20] sm:$0xff]
          %v926 = vld [vmem:[#allocation2 + $0x28] sm:$0xff]
          %v927 = vld [vmem:[#allocation2 + $0x30] sm:$0xff]
          %v928 = vld [vmem:[#allocation2 + $0x38] sm:$0xff]
          %v929 = vld [vmem:[#allocation2 + $0x40] sm:$0xff]
          %v930 = vld [vmem:[#allocation2 + $0x48] sm:$0xff]
          %v931 = vld [vmem:[#allocation2 + $0x50] sm:$0xff]
          %v932 = vld [vmem:[#allocation2 + $0x58] sm:$0xff]
          %v933 = vld [vmem:[#allocation2 + $0x60] sm:$0xff]
          %v934 = vld [vmem:[#allocation2 + $0x68] sm:$0xff]
          %v935 = vld [vmem:[#allocation2 + $0x70] sm:$0xff]
          %v936 = vld [vmem:[#allocation2 + $0x78] sm:$0xff]
          %v937 = vld [vmem:[#allocation2 + $0x80] sm:$0xff]
          %v938 = vld [vmem:[#allocation2 + $0x88] sm:$0xff]
          %v939 = vld [vmem:[#allocation2 + $0x90] sm:$0xff]
          %v940 = vld [vmem:[#allocation2 + $0x98] sm:$0xff]
          %v941 = vld [vmem:[#allocation2 + $0xa0] sm:$0xff]
          %v942 = vld [vmem:[#allocation2 + $0xa8] sm:$0xff]
          %v943 = vld [vmem:[#allocation2 + $0xb0] sm:$0xff]
          %v944 = vld [vmem:[#allocation2 + $0xb8] sm:$0xff]
          %v945 = vld [vmem:[#allocation2 + $0xc0] sm:$0xff]
          %v946 = vld [vmem:[#allocation2 + $0xc8] sm:$0xff]
          %v947 = vld [vmem:[#allocation2 + $0xd0] sm:$0xff]
          %v948 = vld [vmem:[#allocation2 + $0xd8] sm:$0xff]
          %v949 = vld [vmem:[#allocation2 + $0xe0] sm:$0xff]
          %v950 = vld [vmem:[#allocation2 + $0xe8] sm:$0xff]
          %v951 = vld [vmem:[#allocation2 + $0xf0] sm:$0xff]
          %v952 = vld [vmem:[#allocation2 + $0xf8] sm:$0xff]
          %v953 = vld [vmem:[#allocation2 + $0x100] sm:$0xff]
          %v954 = vld [vmem:[#allocation2 + $0x108] sm:$0xff]
          %v955 = vld [vmem:[#allocation2 + $0x110] sm:$0xff]
          %v956 = vld [vmem:[#allocation2 + $0x118] sm:$0xff]
          %v957 = vld [vmem:[#allocation2 + $0x120] sm:$0xff]
          %v958 = vld [vmem:[#allocation2 + $0x128] sm:$0xff]
          %v959 = vld [vmem:[#allocation2 + $0x130] sm:$0xff]
          %v960 = vld [vmem:[#allocation2 + $0x138] sm:$0xff]
          %v961 = vld [vmem:[#allocation2 + $0x140] sm:$0xff]
          %v962 = vld [vmem:[#allocation2 + $0x148] sm:$0xff]
          %v963 = vld [vmem:[#allocation2 + $0x150] sm:$0xff]
          %v964 = vld [vmem:[#allocation2 + $0x158] sm:$0xff]
          %v965 = vld [vmem:[#allocation2 + $0x160] sm:$0xff]
          %v966 = vld [vmem:[#allocation2 + $0x168] sm:$0xff]
          %v967 = vld [vmem:[#allocation2 + $0x170] sm:$0xff]
          %v968 = vld [vmem:[#allocation2 + $0x178] sm:$0xff]
          %v969 = vld [vmem:[#allocation2 + $0x180] sm:$0xff]
          %v970 = vld [vmem:[#allocation2 + $0x188] sm:$0xff]
          %v971 = vld [vmem:[#allocation2 + $0x190] sm:$0xff]
          %v972 = vld [vmem:[#allocation2 + $0x198] sm:$0xff]
          %v973 = vld [vmem:[#allocation2 + $0x1a0] sm:$0xff]
          %v974 = vld [vmem:[#allocation2 + $0x1a8] sm:$0xff]
          %v975 = vld [vmem:[#allocation2 + $0x1b0] sm:$0xff]
          %v976 = vld [vmem:[#allocation2 + $0x1b8] sm:$0xff]
          %v977 = vld [vmem:[#allocation2 + $0x1c0] sm:$0xff]
          %v978 = vld [vmem:[#allocation2 + $0x1c8] sm:$0xff]
          %v979 = vld [vmem:[#allocation2 + $0x1d0] sm:$0xff]
          %v980 = vld [vmem:[#allocation2 + $0x1d8] sm:$0xff]
          %v981 = vld [vmem:[#allocation2 + $0x1e0] sm:$0xff]
          %v982 = vld [vmem:[#allocation2 + $0x1e8] sm:$0xff]
          %v983 = vld [vmem:[#allocation2 + $0x1f0] sm:$0xff]
          %v984 = vld [vmem:[#allocation2 + $0x1f8] sm:$0xff]
          %v985 = vld [vmem:[%s269] sm:$0x3]
          %v987 = vlaneseq
          %v988 = vshrl.u32 %v987, 7
          %v989 = vsub.s32 0, %v988
          %v990 = vrot.slane %v985, %v989
          %v991 = vlaneseq
          %v992 = vshrl.u32 %v991, 7
          %v993 = vsub.s32 1, %v992
          %v994 = vrot.slane %v985, %v993
          %v997 = vadd.f32 %v921, %v990
          %v998 = vadd.f32 %v922, %v994
          %v999 = vadd.f32 %v923, %v990
          %v1000 = vadd.f32 %v924, %v994
          %v1001 = vadd.f32 %v925, %v990
          %v1002 = vadd.f32 %v926, %v994
          %v1003 = vadd.f32 %v927, %v990
          %v1004 = vadd.f32 %v928, %v994
          %v1005 = vadd.f32 %v929, %v990
          %v1006 = vadd.f32 %v930, %v994
          %v1007 = vadd.f32 %v931, %v990
          %v1008 = vadd.f32 %v932, %v994
          %v1009 = vadd.f32 %v933, %v990
          %v1010 = vadd.f32 %v934, %v994
          %v1011 = vadd.f32 %v935, %v990
          %v1012 = vadd.f32 %v936, %v994
          %v1013 = vadd.f32 %v937, %v990
          %v1014 = vadd.f32 %v938, %v994
          %v1015 = vadd.f32 %v939, %v990
          %v1016 = vadd.f32 %v940, %v994
          %v1017 = vadd.f32 %v941, %v990
          %v1018 = vadd.f32 %v942, %v994
          %v1019 = vadd.f32 %v943, %v990
          %v1020 = vadd.f32 %v944, %v994
          %v1021 = vadd.f32 %v945, %v990
          %v1022 = vadd.f32 %v946, %v994
          %v1023 = vadd.f32 %v947, %v990
          %v1024 = vadd.f32 %v948, %v994
          %v1025 = vadd.f32 %v949, %v990
          %v1026 = vadd.f32 %v950, %v994
          %v1027 = vadd.f32 %v951, %v990
          %v1028 = vadd.f32 %v952, %v994
          %v1029 = vadd.f32 %v953, %v990
          %v1030 = vadd.f32 %v954, %v994
          %v1031 = vadd.f32 %v955, %v990
          %v1032 = vadd.f32 %v956, %v994
          %v1033 = vadd.f32 %v957, %v990
          %v1034 = vadd.f32 %v958, %v994
          %v1035 = vadd.f32 %v959, %v990
          %v1036 = vadd.f32 %v960, %v994
          %v1037 = vadd.f32 %v961, %v990
          %v1038 = vadd.f32 %v962, %v994
          %v1039 = vadd.f32 %v963, %v990
          %v1040 = vadd.f32 %v964, %v994
          %v1041 = vadd.f32 %v965, %v990
          %v1042 = vadd.f32 %v966, %v994
          %v1043 = vadd.f32 %v967, %v990
          %v1044 = vadd.f32 %v968, %v994
          %v1045 = vadd.f32 %v969, %v990
          %v1046 = vadd.f32 %v970, %v994
          %v1047 = vadd.f32 %v971, %v990
          %v1048 = vadd.f32 %v972, %v994
          %v1049 = vadd.f32 %v973, %v990
          %v1050 = vadd.f32 %v974, %v994
          %v1051 = vadd.f32 %v975, %v990
          %v1052 = vadd.f32 %v976, %v994
          %v1053 = vadd.f32 %v977, %v990
          %v1054 = vadd.f32 %v978, %v994
          %v1055 = vadd.f32 %v979, %v990
          %v1056 = vadd.f32 %v980, %v994
          %v1057 = vadd.f32 %v981, %v990
          %v1058 = vadd.f32 %v982, %v994
          %v1059 = vadd.f32 %v983, %v990
          %v1060 = vadd.f32 %v984, %v994
          %1061 = vst [vmem:[%s241] sm:$0xff] %v997
          %1062 = vst [vmem:[%s241 + $0x8] sm:$0xff] %v998
          %1063 = vst [vmem:[%s241 + $0x10] sm:$0xff] %v999
          %1064 = vst [vmem:[%s241 + $0x18] sm:$0xff] %v1000
          %1065 = vst [vmem:[%s241 + $0x20] sm:$0xff] %v1001
          %1066 = vst [vmem:[%s241 + $0x28] sm:$0xff] %v1002
          %1067 = vst [vmem:[%s241 + $0x30] sm:$0xff] %v1003
          %1068 = vst [vmem:[%s241 + $0x38] sm:$0xff] %v1004
          %1069 = vst [vmem:[%s241 + $0x40] sm:$0xff] %v1005
          %1070 = vst [vmem:[%s241 + $0x48] sm:$0xff] %v1006
          %1071 = vst [vmem:[%s241 + $0x50] sm:$0xff] %v1007
          %1072 = vst [vmem:[%s241 + $0x58] sm:$0xff] %v1008
          %1073 = vst [vmem:[%s241 + $0x60] sm:$0xff] %v1009
          %1074 = vst [vmem:[%s241 + $0x68] sm:$0xff] %v1010
          %1075 = vst [vmem:[%s241 + $0x70] sm:$0xff] %v1011
          %1076 = vst [vmem:[%s241 + $0x78] sm:$0xff] %v1012
          %1077 = vst [vmem:[%s241 + $0x80] sm:$0xff] %v1013
          %1078 = vst [vmem:[%s241 + $0x88] sm:$0xff] %v1014
          %1079 = vst [vmem:[%s241 + $0x90] sm:$0xff] %v1015
          %1080 = vst [vmem:[%s241 + $0x98] sm:$0xff] %v1016
          %1081 = vst [vmem:[%s241 + $0xa0] sm:$0xff] %v1017
          %1082 = vst [vmem:[%s241 + $0xa8] sm:$0xff] %v1018
          %1083 = vst [vmem:[%s241 + $0xb0] sm:$0xff] %v1019
          %1084 = vst [vmem:[%s241 + $0xb8] sm:$0xff] %v1020
          %1085 = vst [vmem:[%s241 + $0xc0] sm:$0xff] %v1021
          %1086 = vst [vmem:[%s241 + $0xc8] sm:$0xff] %v1022
          %1087 = vst [vmem:[%s241 + $0xd0] sm:$0xff] %v1023
          %1088 = vst [vmem:[%s241 + $0xd8] sm:$0xff] %v1024
          %1089 = vst [vmem:[%s241 + $0xe0] sm:$0xff] %v1025
          %1090 = vst [vmem:[%s241 + $0xe8] sm:$0xff] %v1026
          %1091 = vst [vmem:[%s241 + $0xf0] sm:$0xff] %v1027
          %1092 = vst [vmem:[%s241 + $0xf8] sm:$0xff] %v1028
          %1093 = vst [vmem:[%s241 + $0x100] sm:$0xff] %v1029
          %1094 = vst [vmem:[%s241 + $0x108] sm:$0xff] %v1030
          %1095 = vst [vmem:[%s241 + $0x110] sm:$0xff] %v1031
          %1096 = vst [vmem:[%s241 + $0x118] sm:$0xff] %v1032
          %1097 = vst [vmem:[%s241 + $0x120] sm:$0xff] %v1033
          %1098 = vst [vmem:[%s241 + $0x128] sm:$0xff] %v1034
          %1099 = vst [vmem:[%s241 + $0x130] sm:$0xff] %v1035
          %1100 = vst [vmem:[%s241 + $0x138] sm:$0xff] %v1036
          %1101 = vst [vmem:[%s241 + $0x140] sm:$0xff] %v1037
          %1102 = vst [vmem:[%s241 + $0x148] sm:$0xff] %v1038
          %1103 = vst [vmem:[%s241 + $0x150] sm:$0xff] %v1039
          %1104 = vst [vmem:[%s241 + $0x158] sm:$0xff] %v1040
          %1105 = vst [vmem:[%s241 + $0x160] sm:$0xff] %v1041
          %1106 = vst [vmem:[%s241 + $0x168] sm:$0xff] %v1042
          %1107 = vst [vmem:[%s241 + $0x170] sm:$0xff] %v1043
          %1108 = vst [vmem:[%s241 + $0x178] sm:$0xff] %v1044
          %1109 = vst [vmem:[%s241 + $0x180] sm:$0xff] %v1045
          %1110 = vst [vmem:[%s241 + $0x188] sm:$0xff] %v1046
          %1111 = vst [vmem:[%s241 + $0x190] sm:$0xff] %v1047
          %1112 = vst [vmem:[%s241 + $0x198] sm:$0xff] %v1048
          %1113 = vst [vmem:[%s241 + $0x1a0] sm:$0xff] %v1049
          %1114 = vst [vmem:[%s241 + $0x1a8] sm:$0xff] %v1050
          %1115 = vst [vmem:[%s241 + $0x1b0] sm:$0xff] %v1051
          %1116 = vst [vmem:[%s241 + $0x1b8] sm:$0xff] %v1052
          %1117 = vst [vmem:[%s241 + $0x1c0] sm:$0xff] %v1053
          %1118 = vst [vmem:[%s241 + $0x1c8] sm:$0xff] %v1054
          %1119 = vst [vmem:[%s241 + $0x1d0] sm:$0xff] %v1055
          %1120 = vst [vmem:[%s241 + $0x1d8] sm:$0xff] %v1056
          %1121 = vst [vmem:[%s241 + $0x1e0] sm:$0xff] %v1057
          %1122 = vst [vmem:[%s241 + $0x1e8] sm:$0xff] %v1058
          %1123 = vst [vmem:[%s241 + $0x1f0] sm:$0xff] %v1059
          %1124 = vst [vmem:[%s241 + $0x1f8] sm:$0xff] %v1060
        $region40: #{gpt_neo_self_attention.5} parent=31 // pred_fallthru
          _
        %s1125 = sand.u32 %s128, 1
        %s1126 = scalar_lea.sflag [#allocation4], %s1125
        %s1127 = sand.u32 %s128, 1
        %s1128 = smul.addr %s1127, 512
        %s1129 = scalar_lea.vmem [#allocation3], %s1128
        // Predicated region
        $region41: #{gpt_neo_self_attention.5} parent=31 // pred_check
          %p1130 = pneg %p138
        $region42: #{gpt_neo_self_attention.5} parent=31 // pred_check_branch
          %1132 = sbr.rel (%p1130) target = $region44
        $region43: #{gpt_neo_self_attention.5} parent=31 // pred_region
          %s1133 = smul.u32 32, %s22
          %s1134 = smul.u32 2, %s23
          %s1136 = ssub.s32 8192, 8192
          %1137 = vsyncadd %s1126, %s1136
          %s1138 = smul.addr %s1133, 2
          %s1139 = sadd.s32 %s1134, %s1138
          %s1140 = smul.addr %s1139, 128
          %s1141 = scalar_lea.hbm %s3, %s1140
          %s1142 = sshll.u32 %s1129, 4
          %s1143 = int_to_ptr.vmem [resolvable:$true] %s1142
          %1148 = dma.vmem_to_hbm [thread:$0]  %s1143, 8192, %s1141, %s1126, 256, 256, 16
        $region44: #{gpt_neo_self_attention.5} parent=31 // pred_fallthru
          _
      $region32: #{gpt_neo_self_attention.5} parent=5 // pred_fallthru
        _
      %p1149 = scmp.le.s32.totalorder 2, %s12
      // Predicated region
      $region45: #{gpt_neo_self_attention.5} parent=5 // pred_check
        %p1150 = pneg %p1149
      $region46: #{gpt_neo_self_attention.5} parent=5 // pred_check_branch
        %1152 = sbr.rel (%p1150) target = $region48
      $region47: #{gpt_neo_self_attention.5} parent=5 // pred_region
        %s1153 = ssub.s32 %s12, 2
        // Predicated region
        $region49: #{gpt_neo_self_attention.5} parent=47 // pred_check
          %p1154 = pneg %p144
        $region50: #{gpt_neo_self_attention.5} parent=47 // pred_check_branch
          %1156 = sbr.rel (%p1154) target = $region52
        $region51: #{gpt_neo_self_attention.5} parent=47 // pred_region
          %s1157 = sand.u32 %s129, 1
          %s1158 = scalar_lea.sflag [#allocation4], %s1157
          %s1159 = sand.u32 %s129, 1
          %s1160 = smul.addr %s1159, 512
          %s1161 = scalar_lea.vmem [#allocation3], %s1160
          %1162 = dma.done %s1158, 8192
        $region52: #{gpt_neo_self_attention.5} parent=47 // pred_fallthru
          _
      $region48: #{gpt_neo_self_attention.5} parent=5 // pred_fallthru
        _
    $region6: #{gpt_neo_self_attention.5} parent=1 // loop_footer
      %s16 = sadd.s32 1, %s12
    $region7: #{gpt_neo_self_attention.5} parent=1 // loop_footer_branch
      %11 = sbr.rel target = $region3
    $region8: #{gpt_neo_self_attention.5} parent=1 // loop_exit
      _
    %1163 = vsyncpa [#allocation4], 1
    %s1164 = scalar_lea.sflag [#allocation4], 1
    %1165 = vsyncpa %s1164, 1

// kernel: gpt_neo_self_attention.3
$region0: #{gpt_neo_self_attention.3}
  #allocation0 [shape = 'u32[]', space=smem, size = 0x4, offset = 0x4, fixed_abs, tag = 'smem constant byte address 0x4 - core index']
  #allocation1 [shape = 'u32[144,128]{1,0:T(1,128)}', space=vmem, size = 0x12000, scoped, tag = 'internal scratch']
  #allocation2 [shape = 'f32[256,384]{1,0:T(8,128)}', space=vmem, size = 0x60000, scoped, tag = 'scratch operand']
  %s0 = inlined_call_operand.hbm [shape: f32[512,256], index: 0, kind: input, shape index: {}]
  %s1 = inlined_call_operand.hbm [shape: f32[256,768], index: 1, kind: input, shape index: {}]
  %s2 = inlined_call_operand.vmem [shape: f32[512,768], index: 2, kind: output, shape index: {}]
  %s3 = sld [smem:[#allocation0]]
  $region76: #{gpt_neo_self_attention.3} parent=0
    _
  %s5 = ssub.s32 1, %s3
  %s6 = scalar_select 0, %s5, %s3
  $region1: #{gpt_neo_self_attention.3} parent=0
    #allocation3 [shape = 'u8[524288]{0}', space=vmem, size = 0x80000, scoped, tag = 'input window, operand 0']
    #allocation4 [shape = 's32[2]{0}', space=sflag, size = 0x8, scoped, tag = 'scoped memory for gpt_neo_self_attention.3']
    #allocation5 [shape = 'u8[786432]{0}', space=vmem, size = 0xc0000, scoped, tag = 'input window, operand 1']
    #allocation6 [shape = 's32[2]{0}', space=sflag, size = 0x8, scoped, tag = 'scoped memory for gpt_neo_self_attention.3']
    #allocation7 [shape = 'u8[786432]{0}', space=vmem, size = 0xc0000, scoped, tag = 'output window, operand 0']
    %7 = vsyncpa [#allocation4], 0
    %s8 = scalar_lea.sflag [#allocation4], 1
    %9 = vsyncpa %s8, 0
    %10 = vsyncpa [#allocation6], 0
    %s11 = scalar_lea.sflag [#allocation6], 1
    %12 = vsyncpa %s11, 0
    loop: start=0, step=1, limit=6
    $region2: #{gpt_neo_self_attention.3} parent=1 // loop_pre_header
      _
    $region3: #{gpt_neo_self_attention.3} parent=1 // loop_header
      %s14 = sphi 0, %s18
      %p15 = scmp.ge.s32.totalorder %s14, 6
      %s21 = sphi 0, %s40
      %s22 = sphi 0, %s36
      %s23 = sphi 0, %s32
      %s24 = sphi 0, %s21
      %s25 = sphi 0, %s22
      %s26 = sphi 0, %s23
      %s27 = sphi 0, %s24
      %s28 = sphi 0, %s25
      %s29 = sphi 0, %s26
      %s45 = sphi 0, %s47
      %s48 = sphi 0, %s45
      %s49 = sphi 0, %s48
      %s65 = sphi 0, %s49
      %s73 = sphi 0, %s75
      %s76 = sphi 0, %s73
      %s77 = sphi 0, %s76
      %s93 = sphi 0, %s77
      %s101 = sphi 0, %s103
      %s104 = sphi 0, %s101
      %s105 = sphi 0, %s104
      %s121 = sphi 0, %s105
    $region4: #{gpt_neo_self_attention.3} parent=1 // loop_header_branch
      %17 = sbr.rel (%p15) target = $region8
    $region5: #{gpt_neo_self_attention.3} parent=1 // loop_body
      %s19 = ssub.s32 %s14, 1
      %s20 = ssub.s32 %s14, 2
      %s30 = sadd.s32 1, %s23
      %p31 = scmp.ge.s32.totalorder %s30, 1
      %s32 = scalar_select %p31, 0, %s30
      %s33 = sadd.s32 1, %s22
      %s34 = scalar_select %p31, %s33, %s22
      %p35 = scmp.ge.s32.totalorder %s34, 2
      %s36 = scalar_select %p35, 0, %s34
      %s37 = sadd.s32 1, %s21
      %s38 = scalar_select %p35, %s37, %s21
      %p39 = scmp.ge.s32.totalorder %s38, 2
      %s40 = scalar_select %p39, 0, %s38
      %s41 = ssub.s32 %s21, %s40
      %s42 = ssub.s32 %s23, %s32
      %s43 = sor.u32 %s41, %s42
      %p44 = scmp.eq.s32.totalorder %s43, 0
      %s46 = sadd.s32 %s45, 1
      %s47 = scalar_select %p44, %s45, %s46
      %p50 = pneg %p44
      %p51 = scmp.eq.s32.totalorder %s14, 3
      %p52 = por %p50, %p51
      %p53 = scmp.ne.s32.totalorder %s45, %s48
      %p54 = scmp.eq.s32.totalorder %s14, 0
      %p55 = por %p53, %p54
      %p56 = scmp.ne.s32.totalorder %s45, %s48
      %p57 = scmp.eq.s32.totalorder %s19, 3
      %p58 = por %p56, %p57
      %p59 = scmp.ne.s32.totalorder %s48, %s49
      %p60 = scmp.eq.s32.totalorder %s19, 0
      %p61 = por %p59, %p60
      %p62 = scmp.ne.s32.totalorder %s48, %s49
      %p63 = scmp.eq.s32.totalorder %s20, 3
      %p64 = por %p62, %p63
      %p66 = scmp.ne.s32.totalorder %s49, %s65
      %p67 = scmp.eq.s32.totalorder %s20, 0
      %p68 = por %p66, %p67
      %s69 = ssub.s32 %s23, %s32
      %s70 = ssub.s32 %s22, %s36
      %s71 = sor.u32 %s69, %s70
      %p72 = scmp.eq.s32.totalorder %s71, 0
      %s74 = sadd.s32 %s73, 1
      %s75 = scalar_select %p72, %s73, %s74
      %p78 = pneg %p72
      %p79 = scmp.eq.s32.totalorder %s14, 3
      %p80 = por %p78, %p79
      %p81 = scmp.ne.s32.totalorder %s73, %s76
      %p82 = scmp.eq.s32.totalorder %s14, 0
      %p83 = por %p81, %p82
      %p84 = scmp.ne.s32.totalorder %s73, %s76
      %p85 = scmp.eq.s32.totalorder %s19, 3
      %p86 = por %p84, %p85
      %p87 = scmp.ne.s32.totalorder %s76, %s77
      %p88 = scmp.eq.s32.totalorder %s19, 0
      %p89 = por %p87, %p88
      %p90 = scmp.ne.s32.totalorder %s76, %s77
      %p91 = scmp.eq.s32.totalorder %s20, 3
      %p92 = por %p90, %p91
      %p94 = scmp.ne.s32.totalorder %s77, %s93
      %p95 = scmp.eq.s32.totalorder %s20, 0
      %p96 = por %p94, %p95
      %s97 = ssub.s32 %s21, %s40
      %s98 = ssub.s32 %s22, %s36
      %s99 = sor.u32 %s97, %s98
      %p100 = scmp.eq.s32.totalorder %s99, 0
      %s102 = sadd.s32 %s101, 1
      %s103 = scalar_select %p100, %s101, %s102
      %p106 = pneg %p100
      %p107 = scmp.eq.s32.totalorder %s14, 3
      %p108 = por %p106, %p107
      %p109 = scmp.ne.s32.totalorder %s101, %s104
      %p110 = scmp.eq.s32.totalorder %s14, 0
      %p111 = por %p109, %p110
      %p112 = scmp.ne.s32.totalorder %s101, %s104
      %p113 = scmp.eq.s32.totalorder %s19, 3
      %p114 = por %p112, %p113
      %p115 = scmp.ne.s32.totalorder %s104, %s105
      %p116 = scmp.eq.s32.totalorder %s19, 0
      %p117 = por %p115, %p116
      %p118 = scmp.ne.s32.totalorder %s104, %s105
      %p119 = scmp.eq.s32.totalorder %s20, 3
      %p120 = por %p118, %p119
      %p122 = scmp.ne.s32.totalorder %s105, %s121
      %p123 = scmp.eq.s32.totalorder %s20, 0
      %p124 = por %p122, %p123
      %p125 = scmp.le.s32.totalorder 1, %s14
      %p126 = scmp.lt.s32.totalorder %s14, 5
      %p127 = pnand %p125, %p126
      %p128 = pneg %p127
      // Predicated region
      $region9: #{gpt_neo_self_attention.3} parent=5 // pred_check
        _
      $region10: #{gpt_neo_self_attention.3} parent=5 // pred_check_branch
        %130 = sbr.rel (%p127) target = $region12
      $region11: #{gpt_neo_self_attention.3} parent=5 // pred_region
        %s131 = ssub.s32 %s14, 1
      $region12: #{gpt_neo_self_attention.3} parent=5 // pred_fallthru
        _
      %p132 = scmp.lt.s32.totalorder %s14, 4
      // Predicated region
      $region13: #{gpt_neo_self_attention.3} parent=5 // pred_check
        %p133 = pneg %p132
      $region14: #{gpt_neo_self_attention.3} parent=5 // pred_check_branch
        %135 = sbr.rel (%p133) target = $region16
      $region15: #{gpt_neo_self_attention.3} parent=5 // pred_region
        // Predicated region
        $region17: #{gpt_neo_self_attention.3} parent=15 // pred_check
          %p136 = pneg %p55
        $region18: #{gpt_neo_self_attention.3} parent=15 // pred_check_branch
          %138 = sbr.rel (%p136) target = $region20
        $region19: #{gpt_neo_self_attention.3} parent=15 // pred_region
          %s139 = sand.u32 %s45, 1
          %s140 = scalar_lea.sflag [#allocation4], %s139
          %s141 = sand.u32 %s45, 1
          %s142 = smul.addr %s141, 512
          %s143 = scalar_lea.vmem [#allocation3], %s142
          %s144 = smul.u32 32, %s21
          %s145 = smul.u32 2, %s23
          %s147 = ssub.s32 8192, 8192
          %148 = vsyncadd %s140, %s147
          %s149 = smul.addr %s144, 2
          %s150 = sadd.s32 %s145, %s149
          %s151 = smul.addr %s150, 128
          %s152 = scalar_lea.hbm %s0, %s151
          %s153 = sshll.u32 %s143, 4
          %s154 = int_to_ptr.vmem [resolvable:$true] %s153
          %159 = dma.hbm_to_vmem [thread:$0]  %s152, 8192, %s154, %s140, 256, 256, 16
        $region20: #{gpt_neo_self_attention.3} parent=15 // pred_fallthru
          _
        // Predicated region
        $region21: #{gpt_neo_self_attention.3} parent=15 // pred_check
          %p160 = pneg %p83
        $region22: #{gpt_neo_self_attention.3} parent=15 // pred_check_branch
          %162 = sbr.rel (%p160) target = $region24
        $region23: #{gpt_neo_self_attention.3} parent=15 // pred_region
          %s163 = sand.u32 %s73, 1
          %s164 = scalar_lea.sflag [#allocation6], %s163
          %s165 = sand.u32 %s73, 1
          %s166 = smul.addr %s165, 768
          %s167 = scalar_lea.vmem [#allocation5], %s166
          %s168 = smul.u32 32, %s23
          %s169 = smul.u32 3, %s22
          %s171 = ssub.s32 12288, 12288
          %172 = vsyncadd %s164, %s171
          %s173 = smul.addr %s168, 6
          %s174 = sadd.s32 %s169, %s173
          %s175 = smul.addr %s174, 128
          %s176 = scalar_lea.hbm %s1, %s175
          %s177 = sshll.u32 %s167, 4
          %s178 = int_to_ptr.vmem [resolvable:$true] %s177
          %183 = dma.hbm_to_vmem [thread:$0]  %s176, 12288, %s178, %s164, 768, 384, 24
        $region24: #{gpt_neo_self_attention.3} parent=15 // pred_fallthru
          _
      $region16: #{gpt_neo_self_attention.3} parent=5 // pred_fallthru
        _
      %p184 = scmp.le.s32.totalorder 1, %s14
      %p185 = scmp.lt.s32.totalorder %s14, 5
      %p186 = pnand %p184, %p185
      %p187 = pneg %p186
      // Predicated region
      $region25: #{gpt_neo_self_attention.3} parent=5 // pred_check
        _
      $region26: #{gpt_neo_self_attention.3} parent=5 // pred_check_branch
        %189 = sbr.rel (%p186) target = $region28
      $region27: #{gpt_neo_self_attention.3} parent=5 // pred_region
        %s190 = ssub.s32 %s14, 1
        %s191 = sand.u32 %s48, 1
        %s192 = scalar_lea.sflag [#allocation4], %s191
        %s193 = sand.u32 %s48, 1
        %s194 = smul.addr %s193, 512
        %s195 = scalar_lea.vmem [#allocation3], %s194
        // Predicated region
        $region29: #{gpt_neo_self_attention.3} parent=27 // pred_check
          %p196 = pneg %p61
        $region30: #{gpt_neo_self_attention.3} parent=27 // pred_check_branch
          %198 = sbr.rel (%p196) target = $region32
        $region31: #{gpt_neo_self_attention.3} parent=27 // pred_region
          %199 = dma.done %s192, 8192
        $region32: #{gpt_neo_self_attention.3} parent=27 // pred_fallthru
          _
        %s200 = sand.u32 %s76, 1
        %s201 = scalar_lea.sflag [#allocation6], %s200
        %s202 = sand.u32 %s76, 1
        %s203 = smul.addr %s202, 768
        %s204 = scalar_lea.vmem [#allocation5], %s203
        // Predicated region
        $region33: #{gpt_neo_self_attention.3} parent=27 // pred_check
          %p205 = pneg %p89
        $region34: #{gpt_neo_self_attention.3} parent=27 // pred_check_branch
          %207 = sbr.rel (%p205) target = $region36
        $region35: #{gpt_neo_self_attention.3} parent=27 // pred_region
          %208 = dma.done %s201, 12288
        $region36: #{gpt_neo_self_attention.3} parent=27 // pred_fallthru
          _
        %s209 = sand.u32 %s48, 1
        %s210 = scalar_lea.sflag [#allocation4], %s209
        %s211 = sand.u32 %s48, 1
        %s212 = smul.addr %s211, 512
        %s213 = scalar_lea.vmem [#allocation3], %s212
        %p214 = pneg %p61
        %p215 = pneg %p58
        %s216 = sand.u32 %s76, 1
        %s217 = scalar_lea.sflag [#allocation6], %s216
        %s218 = sand.u32 %s76, 1
        %s219 = smul.addr %s218, 768
        %s220 = scalar_lea.vmem [#allocation5], %s219
        %p221 = pneg %p89
        %p222 = pneg %p86
        %p223 = pneg %p117
        %p224 = pneg %p114
        %s225 = sand.u32 %s104, 1
        %s226 = sand.u32 %s104, 1
        %s227 = smul.addr %s226, 768
        %s228 = scalar_lea.vmem [#allocation7], %s227
        %s229 = smul.u32 32, %s24
        %s230 = smul.u32 2, %s26
        %s231 = smul.u32 32, %s26
        %s232 = smul.u32 3, %s25
        %s233 = smul.u32 32, %s24
        %s234 = smul.u32 3, %s25
        %p235 = scmp.eq.s32.totalorder %s26, 0
        // Predicated region
        $region37: #{gpt_neo_self_attention.3} parent=27 // pred_check
          %p236 = pneg %p235
        $region38: #{gpt_neo_self_attention.3} parent=27 // pred_check_branch
          %238 = sbr.rel (%p236) target = $region40
        $region39: #{gpt_neo_self_attention.3} parent=27 // pred_region
          %239 = vst [vmem:[#allocation2] sm:$0xff] 0.0
          %240 = vst [vmem:[#allocation2 + $0x8] sm:$0xff] 0.0
          %241 = vst [vmem:[#allocation2 + $0x10] sm:$0xff] 0.0
          %242 = vst [vmem:[#allocation2 + $0x18] sm:$0xff] 0.0
          %243 = vst [vmem:[#allocation2 + $0x20] sm:$0xff] 0.0
          %244 = vst [vmem:[#allocation2 + $0x28] sm:$0xff] 0.0
          %245 = vst [vmem:[#allocation2 + $0x30] sm:$0xff] 0.0
          %246 = vst [vmem:[#allocation2 + $0x38] sm:$0xff] 0.0
          %247 = vst [vmem:[#allocation2 + $0x40] sm:$0xff] 0.0
          %248 = vst [vmem:[#allocation2 + $0x48] sm:$0xff] 0.0
          %249 = vst [vmem:[#allocation2 + $0x50] sm:$0xff] 0.0
          %250 = vst [vmem:[#allocation2 + $0x58] sm:$0xff] 0.0
          %251 = vst [vmem:[#allocation2 + $0x60] sm:$0xff] 0.0
          %252 = vst [vmem:[#allocation2 + $0x68] sm:$0xff] 0.0
          %253 = vst [vmem:[#allocation2 + $0x70] sm:$0xff] 0.0
          %254 = vst [vmem:[#allocation2 + $0x78] sm:$0xff] 0.0
          %255 = vst [vmem:[#allocation2 + $0x80] sm:$0xff] 0.0
          %256 = vst [vmem:[#allocation2 + $0x88] sm:$0xff] 0.0
          %257 = vst [vmem:[#allocation2 + $0x90] sm:$0xff] 0.0
          %258 = vst [vmem:[#allocation2 + $0x98] sm:$0xff] 0.0
          %259 = vst [vmem:[#allocation2 + $0xa0] sm:$0xff] 0.0
          %260 = vst [vmem:[#allocation2 + $0xa8] sm:$0xff] 0.0
          %261 = vst [vmem:[#allocation2 + $0xb0] sm:$0xff] 0.0
          %262 = vst [vmem:[#allocation2 + $0xb8] sm:$0xff] 0.0
          %263 = vst [vmem:[#allocation2 + $0xc0] sm:$0xff] 0.0
          %264 = vst [vmem:[#allocation2 + $0xc8] sm:$0xff] 0.0
          %265 = vst [vmem:[#allocation2 + $0xd0] sm:$0xff] 0.0
          %266 = vst [vmem:[#allocation2 + $0xd8] sm:$0xff] 0.0
          %267 = vst [vmem:[#allocation2 + $0xe0] sm:$0xff] 0.0
          %268 = vst [vmem:[#allocation2 + $0xe8] sm:$0xff] 0.0
          %269 = vst [vmem:[#allocation2 + $0xf0] sm:$0xff] 0.0
          %270 = vst [vmem:[#allocation2 + $0xf8] sm:$0xff] 0.0
          %271 = vst [vmem:[#allocation2 + $0x100] sm:$0xff] 0.0
          %272 = vst [vmem:[#allocation2 + $0x108] sm:$0xff] 0.0
          %273 = vst [vmem:[#allocation2 + $0x110] sm:$0xff] 0.0
          %274 = vst [vmem:[#allocation2 + $0x118] sm:$0xff] 0.0
          %275 = vst [vmem:[#allocation2 + $0x120] sm:$0xff] 0.0
          %276 = vst [vmem:[#allocation2 + $0x128] sm:$0xff] 0.0
          %277 = vst [vmem:[#allocation2 + $0x130] sm:$0xff] 0.0
          %278 = vst [vmem:[#allocation2 + $0x138] sm:$0xff] 0.0
          %279 = vst [vmem:[#allocation2 + $0x140] sm:$0xff] 0.0
          %280 = vst [vmem:[#allocation2 + $0x148] sm:$0xff] 0.0
          %281 = vst [vmem:[#allocation2 + $0x150] sm:$0xff] 0.0
          %282 = vst [vmem:[#allocation2 + $0x158] sm:$0xff] 0.0
          %283 = vst [vmem:[#allocation2 + $0x160] sm:$0xff] 0.0
          %284 = vst [vmem:[#allocation2 + $0x168] sm:$0xff] 0.0
          %285 = vst [vmem:[#allocation2 + $0x170] sm:$0xff] 0.0
          %286 = vst [vmem:[#allocation2 + $0x178] sm:$0xff] 0.0
          %287 = vst [vmem:[#allocation2 + $0x180] sm:$0xff] 0.0
          %288 = vst [vmem:[#allocation2 + $0x188] sm:$0xff] 0.0
          %289 = vst [vmem:[#allocation2 + $0x190] sm:$0xff] 0.0
          %290 = vst [vmem:[#allocation2 + $0x198] sm:$0xff] 0.0
          %291 = vst [vmem:[#allocation2 + $0x1a0] sm:$0xff] 0.0
          %292 = vst [vmem:[#allocation2 + $0x1a8] sm:$0xff] 0.0
          %293 = vst [vmem:[#allocation2 + $0x1b0] sm:$0xff] 0.0
          %294 = vst [vmem:[#allocation2 + $0x1b8] sm:$0xff] 0.0
          %295 = vst [vmem:[#allocation2 + $0x1c0] sm:$0xff] 0.0
          %296 = vst [vmem:[#allocation2 + $0x1c8] sm:$0xff] 0.0
          %297 = vst [vmem:[#allocation2 + $0x1d0] sm:$0xff] 0.0
          %298 = vst [vmem:[#allocation2 + $0x1d8] sm:$0xff] 0.0
          %299 = vst [vmem:[#allocation2 + $0x1e0] sm:$0xff] 0.0
          %300 = vst [vmem:[#allocation2 + $0x1e8] sm:$0xff] 0.0
          %301 = vst [vmem:[#allocation2 + $0x1f0] sm:$0xff] 0.0
          %302 = vst [vmem:[#allocation2 + $0x1f8] sm:$0xff] 0.0
          %303 = vst [vmem:[#allocation2 + $0x200] sm:$0xff] 0.0
          %304 = vst [vmem:[#allocation2 + $0x208] sm:$0xff] 0.0
          %305 = vst [vmem:[#allocation2 + $0x210] sm:$0xff] 0.0
          %306 = vst [vmem:[#allocation2 + $0x218] sm:$0xff] 0.0
          %307 = vst [vmem:[#allocation2 + $0x220] sm:$0xff] 0.0
          %308 = vst [vmem:[#allocation2 + $0x228] sm:$0xff] 0.0
          %309 = vst [vmem:[#allocation2 + $0x230] sm:$0xff] 0.0
          %310 = vst [vmem:[#allocation2 + $0x238] sm:$0xff] 0.0
          %311 = vst [vmem:[#allocation2 + $0x240] sm:$0xff] 0.0
          %312 = vst [vmem:[#allocation2 + $0x248] sm:$0xff] 0.0
          %313 = vst [vmem:[#allocation2 + $0x250] sm:$0xff] 0.0
          %314 = vst [vmem:[#allocation2 + $0x258] sm:$0xff] 0.0
          %315 = vst [vmem:[#allocation2 + $0x260] sm:$0xff] 0.0
          %316 = vst [vmem:[#allocation2 + $0x268] sm:$0xff] 0.0
          %317 = vst [vmem:[#allocation2 + $0x270] sm:$0xff] 0.0
          %318 = vst [vmem:[#allocation2 + $0x278] sm:$0xff] 0.0
          %319 = vst [vmem:[#allocation2 + $0x280] sm:$0xff] 0.0
          %320 = vst [vmem:[#allocation2 + $0x288] sm:$0xff] 0.0
          %321 = vst [vmem:[#allocation2 + $0x290] sm:$0xff] 0.0
          %322 = vst [vmem:[#allocation2 + $0x298] sm:$0xff] 0.0
          %323 = vst [vmem:[#allocation2 + $0x2a0] sm:$0xff] 0.0
          %324 = vst [vmem:[#allocation2 + $0x2a8] sm:$0xff] 0.0
          %325 = vst [vmem:[#allocation2 + $0x2b0] sm:$0xff] 0.0
          %326 = vst [vmem:[#allocation2 + $0x2b8] sm:$0xff] 0.0
          %327 = vst [vmem:[#allocation2 + $0x2c0] sm:$0xff] 0.0
          %328 = vst [vmem:[#allocation2 + $0x2c8] sm:$0xff] 0.0
          %329 = vst [vmem:[#allocation2 + $0x2d0] sm:$0xff] 0.0
          %330 = vst [vmem:[#allocation2 + $0x2d8] sm:$0xff] 0.0
          %331 = vst [vmem:[#allocation2 + $0x2e0] sm:$0xff] 0.0
          %332 = vst [vmem:[#allocation2 + $0x2e8] sm:$0xff] 0.0
          %333 = vst [vmem:[#allocation2 + $0x2f0] sm:$0xff] 0.0
          %334 = vst [vmem:[#allocation2 + $0x2f8] sm:$0xff] 0.0
        $region40: #{gpt_neo_self_attention.3} parent=27 // pred_fallthru
          _
        %v335 = vld [vmem:[#allocation2] sm:$0xff]
        %v336 = vld [vmem:[#allocation2 + $0x8] sm:$0xff]
        %v337 = vld [vmem:[#allocation2 + $0x10] sm:$0xff]
        %v338 = vld [vmem:[#allocation2 + $0x18] sm:$0xff]
        %v339 = vld [vmem:[#allocation2 + $0x20] sm:$0xff]
        %v340 = vld [vmem:[#allocation2 + $0x28] sm:$0xff]
        %v341 = vld [vmem:[#allocation2 + $0x30] sm:$0xff]
        %v342 = vld [vmem:[#allocation2 + $0x38] sm:$0xff]
        %v343 = vld [vmem:[#allocation2 + $0x40] sm:$0xff]
        %v344 = vld [vmem:[#allocation2 + $0x48] sm:$0xff]
        %v345 = vld [vmem:[#allocation2 + $0x50] sm:$0xff]
        %v346 = vld [vmem:[#allocation2 + $0x58] sm:$0xff]
        %v347 = vld [vmem:[#allocation2 + $0x60] sm:$0xff]
        %v348 = vld [vmem:[#allocation2 + $0x68] sm:$0xff]
        %v349 = vld [vmem:[#allocation2 + $0x70] sm:$0xff]
        %v350 = vld [vmem:[#allocation2 + $0x78] sm:$0xff]
        %v351 = vld [vmem:[#allocation2 + $0x80] sm:$0xff]
        %v352 = vld [vmem:[#allocation2 + $0x88] sm:$0xff]
        %v353 = vld [vmem:[#allocation2 + $0x90] sm:$0xff]
        %v354 = vld [vmem:[#allocation2 + $0x98] sm:$0xff]
        %v355 = vld [vmem:[#allocation2 + $0xa0] sm:$0xff]
        %v356 = vld [vmem:[#allocation2 + $0xa8] sm:$0xff]
        %v357 = vld [vmem:[#allocation2 + $0xb0] sm:$0xff]
        %v358 = vld [vmem:[#allocation2 + $0xb8] sm:$0xff]
        %v359 = vld [vmem:[#allocation2 + $0xc0] sm:$0xff]
        %v360 = vld [vmem:[#allocation2 + $0xc8] sm:$0xff]
        %v361 = vld [vmem:[#allocation2 + $0xd0] sm:$0xff]
        %v362 = vld [vmem:[#allocation2 + $0xd8] sm:$0xff]
        %v363 = vld [vmem:[#allocation2 + $0xe0] sm:$0xff]
        %v364 = vld [vmem:[#allocation2 + $0xe8] sm:$0xff]
        %v365 = vld [vmem:[#allocation2 + $0xf0] sm:$0xff]
        %v366 = vld [vmem:[#allocation2 + $0xf8] sm:$0xff]
        %v367 = vld [vmem:[#allocation2 + $0x100] sm:$0xff]
        %v368 = vld [vmem:[#allocation2 + $0x108] sm:$0xff]
        %v369 = vld [vmem:[#allocation2 + $0x110] sm:$0xff]
        %v370 = vld [vmem:[#allocation2 + $0x118] sm:$0xff]
        %v371 = vld [vmem:[#allocation2 + $0x120] sm:$0xff]
        %v372 = vld [vmem:[#allocation2 + $0x128] sm:$0xff]
        %v373 = vld [vmem:[#allocation2 + $0x130] sm:$0xff]
        %v374 = vld [vmem:[#allocation2 + $0x138] sm:$0xff]
        %v375 = vld [vmem:[#allocation2 + $0x140] sm:$0xff]
        %v376 = vld [vmem:[#allocation2 + $0x148] sm:$0xff]
        %v377 = vld [vmem:[#allocation2 + $0x150] sm:$0xff]
        %v378 = vld [vmem:[#allocation2 + $0x158] sm:$0xff]
        %v379 = vld [vmem:[#allocation2 + $0x160] sm:$0xff]
        %v380 = vld [vmem:[#allocation2 + $0x168] sm:$0xff]
        %v381 = vld [vmem:[#allocation2 + $0x170] sm:$0xff]
        %v382 = vld [vmem:[#allocation2 + $0x178] sm:$0xff]
        %v383 = vld [vmem:[#allocation2 + $0x180] sm:$0xff]
        %v384 = vld [vmem:[#allocation2 + $0x188] sm:$0xff]
        %v385 = vld [vmem:[#allocation2 + $0x190] sm:$0xff]
        %v386 = vld [vmem:[#allocation2 + $0x198] sm:$0xff]
        %v387 = vld [vmem:[#allocation2 + $0x1a0] sm:$0xff]
        %v388 = vld [vmem:[#allocation2 + $0x1a8] sm:$0xff]
        %v389 = vld [vmem:[#allocation2 + $0x1b0] sm:$0xff]
        %v390 = vld [vmem:[#allocation2 + $0x1b8] sm:$0xff]
        %v391 = vld [vmem:[#allocation2 + $0x1c0] sm:$0xff]
        %v392 = vld [vmem:[#allocation2 + $0x1c8] sm:$0xff]
        %v393 = vld [vmem:[#allocation2 + $0x1d0] sm:$0xff]
        %v394 = vld [vmem:[#allocation2 + $0x1d8] sm:$0xff]
        %v395 = vld [vmem:[#allocation2 + $0x1e0] sm:$0xff]
        %v396 = vld [vmem:[#allocation2 + $0x1e8] sm:$0xff]
        %v397 = vld [vmem:[#allocation2 + $0x1f0] sm:$0xff]
        %v398 = vld [vmem:[#allocation2 + $0x1f8] sm:$0xff]
        %v399 = vld [vmem:[#allocation2 + $0x200] sm:$0xff]
        %v400 = vld [vmem:[#allocation2 + $0x208] sm:$0xff]
        %v401 = vld [vmem:[#allocation2 + $0x210] sm:$0xff]
        %v402 = vld [vmem:[#allocation2 + $0x218] sm:$0xff]
        %v403 = vld [vmem:[#allocation2 + $0x220] sm:$0xff]
        %v404 = vld [vmem:[#allocation2 + $0x228] sm:$0xff]
        %v405 = vld [vmem:[#allocation2 + $0x230] sm:$0xff]
        %v406 = vld [vmem:[#allocation2 + $0x238] sm:$0xff]
        %v407 = vld [vmem:[#allocation2 + $0x240] sm:$0xff]
        %v408 = vld [vmem:[#allocation2 + $0x248] sm:$0xff]
        %v409 = vld [vmem:[#allocation2 + $0x250] sm:$0xff]
        %v410 = vld [vmem:[#allocation2 + $0x258] sm:$0xff]
        %v411 = vld [vmem:[#allocation2 + $0x260] sm:$0xff]
        %v412 = vld [vmem:[#allocation2 + $0x268] sm:$0xff]
        %v413 = vld [vmem:[#allocation2 + $0x270] sm:$0xff]
        %v414 = vld [vmem:[#allocation2 + $0x278] sm:$0xff]
        %v415 = vld [vmem:[#allocation2 + $0x280] sm:$0xff]
        %v416 = vld [vmem:[#allocation2 + $0x288] sm:$0xff]
        %v417 = vld [vmem:[#allocation2 + $0x290] sm:$0xff]
        %v418 = vld [vmem:[#allocation2 + $0x298] sm:$0xff]
        %v419 = vld [vmem:[#allocation2 + $0x2a0] sm:$0xff]
        %v420 = vld [vmem:[#allocation2 + $0x2a8] sm:$0xff]
        %v421 = vld [vmem:[#allocation2 + $0x2b0] sm:$0xff]
        %v422 = vld [vmem:[#allocation2 + $0x2b8] sm:$0xff]
        %v423 = vld [vmem:[#allocation2 + $0x2c0] sm:$0xff]
        %v424 = vld [vmem:[#allocation2 + $0x2c8] sm:$0xff]
        %v425 = vld [vmem:[#allocation2 + $0x2d0] sm:$0xff]
        %v426 = vld [vmem:[#allocation2 + $0x2d8] sm:$0xff]
        %v427 = vld [vmem:[#allocation2 + $0x2e0] sm:$0xff]
        %v428 = vld [vmem:[#allocation2 + $0x2e8] sm:$0xff]
        %v429 = vld [vmem:[#allocation2 + $0x2f0] sm:$0xff]
        %v430 = vld [vmem:[#allocation2 + $0x2f8] sm:$0xff]
        %v431 = vld [vmem:[%s195] sm:$0xff]
        %v432 = vld [vmem:[%s195 + $0x8] sm:$0xff]
        %v433 = vld [vmem:[%s195 + $0x10] sm:$0xff]
        %v434 = vld [vmem:[%s195 + $0x18] sm:$0xff]
        %v435 = vld [vmem:[%s195 + $0x20] sm:$0xff]
        %v436 = vld [vmem:[%s195 + $0x28] sm:$0xff]
        %v437 = vld [vmem:[%s195 + $0x30] sm:$0xff]
        %v438 = vld [vmem:[%s195 + $0x38] sm:$0xff]
        %v439 = vld [vmem:[%s195 + $0x40] sm:$0xff]
        %v440 = vld [vmem:[%s195 + $0x48] sm:$0xff]
        %v441 = vld [vmem:[%s195 + $0x50] sm:$0xff]
        %v442 = vld [vmem:[%s195 + $0x58] sm:$0xff]
        %v443 = vld [vmem:[%s195 + $0x60] sm:$0xff]
        %v444 = vld [vmem:[%s195 + $0x68] sm:$0xff]
        %v445 = vld [vmem:[%s195 + $0x70] sm:$0xff]
        %v446 = vld [vmem:[%s195 + $0x78] sm:$0xff]
        %v447 = vld [vmem:[%s195 + $0x80] sm:$0xff]
        %v448 = vld [vmem:[%s195 + $0x88] sm:$0xff]
        %v449 = vld [vmem:[%s195 + $0x90] sm:$0xff]
        %v450 = vld [vmem:[%s195 + $0x98] sm:$0xff]
        %v451 = vld [vmem:[%s195 + $0xa0] sm:$0xff]
        %v452 = vld [vmem:[%s195 + $0xa8] sm:$0xff]
        %v453 = vld [vmem:[%s195 + $0xb0] sm:$0xff]
        %v454 = vld [vmem:[%s195 + $0xb8] sm:$0xff]
        %v455 = vld [vmem:[%s195 + $0xc0] sm:$0xff]
        %v456 = vld [vmem:[%s195 + $0xc8] sm:$0xff]
        %v457 = vld [vmem:[%s195 + $0xd0] sm:$0xff]
        %v458 = vld [vmem:[%s195 + $0xd8] sm:$0xff]
        %v459 = vld [vmem:[%s195 + $0xe0] sm:$0xff]
        %v460 = vld [vmem:[%s195 + $0xe8] sm:$0xff]
        %v461 = vld [vmem:[%s195 + $0xf0] sm:$0xff]
        %v462 = vld [vmem:[%s195 + $0xf8] sm:$0xff]
        %v463 = vld [vmem:[%s195 + $0x100] sm:$0xff]
        %v464 = vld [vmem:[%s195 + $0x108] sm:$0xff]
        %v465 = vld [vmem:[%s195 + $0x110] sm:$0xff]
        %v466 = vld [vmem:[%s195 + $0x118] sm:$0xff]
        %v467 = vld [vmem:[%s195 + $0x120] sm:$0xff]
        %v468 = vld [vmem:[%s195 + $0x128] sm:$0xff]
        %v469 = vld [vmem:[%s195 + $0x130] sm:$0xff]
        %v470 = vld [vmem:[%s195 + $0x138] sm:$0xff]
        %v471 = vld [vmem:[%s195 + $0x140] sm:$0xff]
        %v472 = vld [vmem:[%s195 + $0x148] sm:$0xff]
        %v473 = vld [vmem:[%s195 + $0x150] sm:$0xff]
        %v474 = vld [vmem:[%s195 + $0x158] sm:$0xff]
        %v475 = vld [vmem:[%s195 + $0x160] sm:$0xff]
        %v476 = vld [vmem:[%s195 + $0x168] sm:$0xff]
        %v477 = vld [vmem:[%s195 + $0x170] sm:$0xff]
        %v478 = vld [vmem:[%s195 + $0x178] sm:$0xff]
        %v479 = vld [vmem:[%s195 + $0x180] sm:$0xff]
        %v480 = vld [vmem:[%s195 + $0x188] sm:$0xff]
        %v481 = vld [vmem:[%s195 + $0x190] sm:$0xff]
        %v482 = vld [vmem:[%s195 + $0x198] sm:$0xff]
        %v483 = vld [vmem:[%s195 + $0x1a0] sm:$0xff]
        %v484 = vld [vmem:[%s195 + $0x1a8] sm:$0xff]
        %v485 = vld [vmem:[%s195 + $0x1b0] sm:$0xff]
        %v486 = vld [vmem:[%s195 + $0x1b8] sm:$0xff]
        %v487 = vld [vmem:[%s195 + $0x1c0] sm:$0xff]
        %v488 = vld [vmem:[%s195 + $0x1c8] sm:$0xff]
        %v489 = vld [vmem:[%s195 + $0x1d0] sm:$0xff]
        %v490 = vld [vmem:[%s195 + $0x1d8] sm:$0xff]
        %v491 = vld [vmem:[%s195 + $0x1e0] sm:$0xff]
        %v492 = vld [vmem:[%s195 + $0x1e8] sm:$0xff]
        %v493 = vld [vmem:[%s195 + $0x1f0] sm:$0xff]
        %v494 = vld [vmem:[%s195 + $0x1f8] sm:$0xff]
        %v495 = vld [vmem:[%s204] sm:$0xff]
        %v496 = vld [vmem:[%s204 + $0x8] sm:$0xff]
        %v497 = vld [vmem:[%s204 + $0x10] sm:$0xff]
        %v498 = vld [vmem:[%s204 + $0x18] sm:$0xff]
        %v499 = vld [vmem:[%s204 + $0x20] sm:$0xff]
        %v500 = vld [vmem:[%s204 + $0x28] sm:$0xff]
        %v501 = vld [vmem:[%s204 + $0x30] sm:$0xff]
        %v502 = vld [vmem:[%s204 + $0x38] sm:$0xff]
        %v503 = vld [vmem:[%s204 + $0x40] sm:$0xff]
        %v504 = vld [vmem:[%s204 + $0x48] sm:$0xff]
        %v505 = vld [vmem:[%s204 + $0x50] sm:$0xff]
        %v506 = vld [vmem:[%s204 + $0x58] sm:$0xff]
        %v507 = vld [vmem:[%s204 + $0x60] sm:$0xff]
        %v508 = vld [vmem:[%s204 + $0x68] sm:$0xff]
        %v509 = vld [vmem:[%s204 + $0x70] sm:$0xff]
        %v510 = vld [vmem:[%s204 + $0x78] sm:$0xff]
        %v511 = vld [vmem:[%s204 + $0x80] sm:$0xff]
        %v512 = vld [vmem:[%s204 + $0x88] sm:$0xff]
        %v513 = vld [vmem:[%s204 + $0x90] sm:$0xff]
        %v514 = vld [vmem:[%s204 + $0x98] sm:$0xff]
        %v515 = vld [vmem:[%s204 + $0xa0] sm:$0xff]
        %v516 = vld [vmem:[%s204 + $0xa8] sm:$0xff]
        %v517 = vld [vmem:[%s204 + $0xb0] sm:$0xff]
        %v518 = vld [vmem:[%s204 + $0xb8] sm:$0xff]
        %v519 = vld [vmem:[%s204 + $0xc0] sm:$0xff]
        %v520 = vld [vmem:[%s204 + $0xc8] sm:$0xff]
        %v521 = vld [vmem:[%s204 + $0xd0] sm:$0xff]
        %v522 = vld [vmem:[%s204 + $0xd8] sm:$0xff]
        %v523 = vld [vmem:[%s204 + $0xe0] sm:$0xff]
        %v524 = vld [vmem:[%s204 + $0xe8] sm:$0xff]
        %v525 = vld [vmem:[%s204 + $0xf0] sm:$0xff]
        %v526 = vld [vmem:[%s204 + $0xf8] sm:$0xff]
        %v527 = vld [vmem:[%s204 + $0x100] sm:$0xff]
        %v528 = vld [vmem:[%s204 + $0x108] sm:$0xff]
        %v529 = vld [vmem:[%s204 + $0x110] sm:$0xff]
        %v530 = vld [vmem:[%s204 + $0x118] sm:$0xff]
        %v531 = vld [vmem:[%s204 + $0x120] sm:$0xff]
        %v532 = vld [vmem:[%s204 + $0x128] sm:$0xff]
        %v533 = vld [vmem:[%s204 + $0x130] sm:$0xff]
        %v534 = vld [vmem:[%s204 + $0x138] sm:$0xff]
        %v535 = vld [vmem:[%s204 + $0x140] sm:$0xff]
        %v536 = vld [vmem:[%s204 + $0x148] sm:$0xff]
        %v537 = vld [vmem:[%s204 + $0x150] sm:$0xff]
        %v538 = vld [vmem:[%s204 + $0x158] sm:$0xff]
        %v539 = vld [vmem:[%s204 + $0x160] sm:$0xff]
        %v540 = vld [vmem:[%s204 + $0x168] sm:$0xff]
        %v541 = vld [vmem:[%s204 + $0x170] sm:$0xff]
        %v542 = vld [vmem:[%s204 + $0x178] sm:$0xff]
        %v543 = vld [vmem:[%s204 + $0x180] sm:$0xff]
        %v544 = vld [vmem:[%s204 + $0x188] sm:$0xff]
        %v545 = vld [vmem:[%s204 + $0x190] sm:$0xff]
        %v546 = vld [vmem:[%s204 + $0x198] sm:$0xff]
        %v547 = vld [vmem:[%s204 + $0x1a0] sm:$0xff]
        %v548 = vld [vmem:[%s204 + $0x1a8] sm:$0xff]
        %v549 = vld [vmem:[%s204 + $0x1b0] sm:$0xff]
        %v550 = vld [vmem:[%s204 + $0x1b8] sm:$0xff]
        %v551 = vld [vmem:[%s204 + $0x1c0] sm:$0xff]
        %v552 = vld [vmem:[%s204 + $0x1c8] sm:$0xff]
        %v553 = vld [vmem:[%s204 + $0x1d0] sm:$0xff]
        %v554 = vld [vmem:[%s204 + $0x1d8] sm:$0xff]
        %v555 = vld [vmem:[%s204 + $0x1e0] sm:$0xff]
        %v556 = vld [vmem:[%s204 + $0x1e8] sm:$0xff]
        %v557 = vld [vmem:[%s204 + $0x1f0] sm:$0xff]
        %v558 = vld [vmem:[%s204 + $0x1f8] sm:$0xff]
        %v559 = vld [vmem:[%s204 + $0x200] sm:$0xff]
        %v560 = vld [vmem:[%s204 + $0x208] sm:$0xff]
        %v561 = vld [vmem:[%s204 + $0x210] sm:$0xff]
        %v562 = vld [vmem:[%s204 + $0x218] sm:$0xff]
        %v563 = vld [vmem:[%s204 + $0x220] sm:$0xff]
        %v564 = vld [vmem:[%s204 + $0x228] sm:$0xff]
        %v565 = vld [vmem:[%s204 + $0x230] sm:$0xff]
        %v566 = vld [vmem:[%s204 + $0x238] sm:$0xff]
        %v567 = vld [vmem:[%s204 + $0x240] sm:$0xff]
        %v568 = vld [vmem:[%s204 + $0x248] sm:$0xff]
        %v569 = vld [vmem:[%s204 + $0x250] sm:$0xff]
        %v570 = vld [vmem:[%s204 + $0x258] sm:$0xff]
        %v571 = vld [vmem:[%s204 + $0x260] sm:$0xff]
        %v572 = vld [vmem:[%s204 + $0x268] sm:$0xff]
        %v573 = vld [vmem:[%s204 + $0x270] sm:$0xff]
        %v574 = vld [vmem:[%s204 + $0x278] sm:$0xff]
        %v575 = vld [vmem:[%s204 + $0x280] sm:$0xff]
        %v576 = vld [vmem:[%s204 + $0x288] sm:$0xff]
        %v577 = vld [vmem:[%s204 + $0x290] sm:$0xff]
        %v578 = vld [vmem:[%s204 + $0x298] sm:$0xff]
        %v579 = vld [vmem:[%s204 + $0x2a0] sm:$0xff]
        %v580 = vld [vmem:[%s204 + $0x2a8] sm:$0xff]
        %v581 = vld [vmem:[%s204 + $0x2b0] sm:$0xff]
        %v582 = vld [vmem:[%s204 + $0x2b8] sm:$0xff]
        %v583 = vld [vmem:[%s204 + $0x2c0] sm:$0xff]
        %v584 = vld [vmem:[%s204 + $0x2c8] sm:$0xff]
        %v585 = vld [vmem:[%s204 + $0x2d0] sm:$0xff]
        %v586 = vld [vmem:[%s204 + $0x2d8] sm:$0xff]
        %v587 = vld [vmem:[%s204 + $0x2e0] sm:$0xff]
        %v588 = vld [vmem:[%s204 + $0x2e8] sm:$0xff]
        %v589 = vld [vmem:[%s204 + $0x2f0] sm:$0xff]
        %v590 = vld [vmem:[%s204 + $0x2f8] sm:$0xff]
        %591 = vmatprep.subr.mxu0 %v496
        %592 = vmatpush1.msra.mxu0 %v495
        %593 = vmatprep.subr.mxu0 %v499
        %594 = vmatpush1.msra.mxu0 %v498
        %595 = vmatprep.subr.mxu0 %v502
        %596 = vmatpush1.msra.mxu0 %v501
        %597 = vmatprep.subr.mxu0 %v505
        %598 = vmatpush1.msra.mxu0 %v504
        %599 = vmatprep.subr.mxu0 %v508
        %600 = vmatpush1.msra.mxu0 %v507
        %601 = vmatprep.subr.mxu0 %v511
        %602 = vmatpush1.msra.mxu0 %v510
        %603 = vmatprep.subr.mxu0 %v514
        %604 = vmatpush1.msra.mxu0 %v513
        %605 = vmatprep.subr.mxu0 %v517
        %606 = vmatpush1.msra.mxu0 %v516
        %607 = vmatprep.subr.mxu0 %v520
        %608 = vmatpush1.msra.mxu0 %v519
        %609 = vmatprep.subr.mxu0 %v523
        %610 = vmatpush1.msra.mxu0 %v522
        %611 = vmatprep.subr.mxu0 %v526
        %612 = vmatpush1.msra.mxu0 %v525
        %613 = vmatprep.subr.mxu0 %v529
        %614 = vmatpush1.msra.mxu0 %v528
        %615 = vmatprep.subr.mxu0 %v532
        %616 = vmatpush1.msra.mxu0 %v531
        %617 = vmatprep.subr.mxu0 %v535
        %618 = vmatpush1.msra.mxu0 %v534
        %619 = vmatprep.subr.mxu0 %v538
        %620 = vmatpush1.msra.mxu0 %v537
        %621 = vmatprep.subr.mxu0 %v541
        %622 = vmatpush1.msra.mxu0 %v540
        %623 = vmatprep.subr.mxu0 %v544
        %624 = vmatpush1.msra.mxu0 %v543
        %625 = vmatprep.subr.mxu0 %v547
        %626 = vmatpush1.msra.mxu0 %v546
        %627 = vmatprep.subr.mxu0 %v550
        %628 = vmatpush1.msra.mxu0 %v549
        %629 = vmatprep.subr.mxu0 %v553
        %630 = vmatpush1.msra.mxu0 %v552
        %631 = vmatprep.subr.mxu0 %v556
        %632 = vmatpush1.msra.mxu0 %v555
        %633 = vmatprep.subr.mxu0 %v559
        %634 = vmatpush1.msra.mxu0 %v558
        %635 = vmatprep.subr.mxu0 %v562
        %636 = vmatpush1.msra.mxu0 %v561
        %637 = vmatprep.subr.mxu0 %v565
        %638 = vmatpush1.msra.mxu0 %v564
        %639 = vmatprep.subr.mxu0 %v568
        %640 = vmatpush1.msra.mxu0 %v567
        %641 = vmatprep.subr.mxu0 %v571
        %642 = vmatpush1.msra.mxu0 %v570
        %643 = vmatprep.subr.mxu0 %v574
        %644 = vmatpush1.msra.mxu0 %v573
        %645 = vmatprep.subr.mxu0 %v577
        %646 = vmatpush1.msra.mxu0 %v576
        %647 = vmatprep.subr.mxu0 %v580
        %648 = vmatpush1.msra.mxu0 %v579
        %649 = vmatprep.subr.mxu0 %v583
        %650 = vmatpush1.msra.mxu0 %v582
        %651 = vmatprep.subr.mxu0 %v586
        %652 = vmatpush1.msra.mxu0 %v585
        %653 = vmatprep.subr.mxu0 %v589
        %654 = vmatpush1.msra.mxu0 %v588
        %655 = vmatprep.mubr.f32.mxu0 %v432
        %656 = vmatmul.mubr.f32.gmra.mrb[0].mxu0 %v431
        %v657 = vpop.f32.mrb[0].mxu0
        %v658 = vadd.f32 0.0, %v657
        %v659 = vpop.f32.mrb[0].mxu0
        %v660 = vadd.f32 0.0, %v659
        %661 = vmatprep.mubr.f32.mxu0 %v434
        %662 = vmatmul.mubr.f32.gmra.mrb[0].mxu0 %v433
        %v663 = vpop.f32.mrb[0].mxu0
        %v664 = vadd.f32 0.0, %v663
        %v665 = vpop.f32.mrb[0].mxu0
        %v666 = vadd.f32 0.0, %v665
        %667 = vmatprep.mubr.f32.mxu0 %v436
        %668 = vmatmul.mubr.f32.gmra.mrb[0].mxu0 %v435
        %v669 = vpop.f32.mrb[0].mxu0
        %v670 = vadd.f32 0.0, %v669
        %v671 = vpop.f32.mrb[0].mxu0
        %v672 = vadd.f32 0.0, %v671
        %673 = vmatprep.mubr.f32.mxu0 %v438
        %674 = vmatmul.mubr.f32.gmra.mrb[0].mxu0 %v437
        %v675 = vpop.f32.mrb[0].mxu0
        %v676 = vadd.f32 0.0, %v675
        %v677 = vpop.f32.mrb[0].mxu0
        %v678 = vadd.f32 0.0, %v677
        %679 = vmatprep.mubr.f32.mxu0 %v440
        %680 = vmatmul.mubr.f32.gmra.mrb[0].mxu0 %v439
        %v681 = vpop.f32.mrb[0].mxu0
        %v682 = vadd.f32 0.0, %v681
        %v683 = vpop.f32.mrb[0].mxu0
        %v684 = vadd.f32 0.0, %v683
        %685 = vmatprep.mubr.f32.mxu0 %v442
        %686 = vmatmul.mubr.f32.gmra.mrb[0].mxu0 %v441
        %v687 = vpop.f32.mrb[0].mxu0
        %v688 = vadd.f32 0.0, %v687
        %v689 = vpop.f32.mrb[0].mxu0
        %v690 = vadd.f32 0.0, %v689
        %691 = vmatprep.mubr.f32.mxu0 %v444
        %692 = vmatmul.mubr.f32.gmra.mrb[0].mxu0 %v443
        %v693 = vpop.f32.mrb[0].mxu0
        %v694 = vadd.f32 0.0, %v693
        %v695 = vpop.f32.mrb[0].mxu0
        %v696 = vadd.f32 0.0, %v695
        %697 = vmatprep.mubr.f32.mxu0 %v446
        %698 = vmatmul.mubr.f32.gmra.mrb[0].mxu0 %v445
        %v699 = vpop.f32.mrb[0].mxu0
        %v700 = vadd.f32 0.0, %v699
        %v701 = vpop.f32.mrb[0].mxu0
        %v702 = vadd.f32 0.0, %v701
        %703 = vmatprep.mubr.f32.mxu0 %v448
        %704 = vmatmul.mubr.f32.gmra.mrb[0].mxu0 %v447
        %v705 = vpop.f32.mrb[0].mxu0
        %v706 = vadd.f32 0.0, %v705
        %v707 = vpop.f32.mrb[0].mxu0
        %v708 = vadd.f32 0.0, %v707
        %709 = vmatprep.mubr.f32.mxu0 %v450
        %710 = vmatmul.mubr.f32.gmra.mrb[0].mxu0 %v449
        %v711 = vpop.f32.mrb[0].mxu0
        %v712 = vadd.f32 0.0, %v711
        %v713 = vpop.f32.mrb[0].mxu0
        %v714 = vadd.f32 0.0, %v713
        %715 = vmatprep.mubr.f32.mxu0 %v452
        %716 = vmatmul.mubr.f32.gmra.mrb[0].mxu0 %v451
        %v717 = vpop.f32.mrb[0].mxu0
        %v718 = vadd.f32 0.0, %v717
        %v719 = vpop.f32.mrb[0].mxu0
        %v720 = vadd.f32 0.0, %v719
        %721 = vmatprep.mubr.f32.mxu0 %v454
        %722 = vmatmul.mubr.f32.gmra.mrb[0].mxu0 %v453
        %v723 = vpop.f32.mrb[0].mxu0
        %v724 = vadd.f32 0.0, %v723
        %v725 = vpop.f32.mrb[0].mxu0
        %v726 = vadd.f32 0.0, %v725
        %727 = vmatprep.mubr.f32.mxu0 %v456
        %728 = vmatmul.mubr.f32.gmra.mrb[0].mxu0 %v455
        %v729 = vpop.f32.mrb[0].mxu0
        %v730 = vadd.f32 0.0, %v729
        %v731 = vpop.f32.mrb[0].mxu0
        %v732 = vadd.f32 0.0, %v731
        %733 = vmatprep.mubr.f32.mxu0 %v458
        %734 = vmatmul.mubr.f32.gmra.mrb[0].mxu0 %v457
        %v735 = vpop.f32.mrb[0].mxu0
        %v736 = vadd.f32 0.0, %v735
        %v737 = vpop.f32.mrb[0].mxu0
        %v738 = vadd.f32 0.0, %v737
        %739 = vmatprep.mubr.f32.mxu0 %v460
        %740 = vmatmul.mubr.f32.gmra.mrb[0].mxu0 %v459
        %v741 = vpop.f32.mrb[0].mxu0
        %v742 = vadd.f32 0.0, %v741
        %v743 = vpop.f32.mrb[0].mxu0
        %v744 = vadd.f32 0.0, %v743
        %745 = vmatprep.mubr.f32.mxu0 %v462
        %746 = vmatmul.mubr.f32.gmra.mrb[0].mxu0 %v461
        %v747 = vpop.f32.mrb[0].mxu0
        %v748 = vadd.f32 0.0, %v747
        %v749 = vpop.f32.mrb[0].mxu0
        %v750 = vadd.f32 0.0, %v749
        %751 = vmatprep.mubr.f32.mxu0 %v464
        %752 = vmatmul.mubr.f32.gmra.mrb[0].mxu0 %v463
        %v753 = vpop.f32.mrb[0].mxu0
        %v754 = vadd.f32 0.0, %v753
        %v755 = vpop.f32.mrb[0].mxu0
        %v756 = vadd.f32 0.0, %v755
        %757 = vmatprep.mubr.f32.mxu0 %v466
        %758 = vmatmul.mubr.f32.gmra.mrb[0].mxu0 %v465
        %v759 = vpop.f32.mrb[0].mxu0
        %v760 = vadd.f32 0.0, %v759
        %v761 = vpop.f32.mrb[0].mxu0
        %v762 = vadd.f32 0.0, %v761
        %763 = vmatprep.mubr.f32.mxu0 %v468
        %764 = vmatmul.mubr.f32.gmra.mrb[0].mxu0 %v467
        %v765 = vpop.f32.mrb[0].mxu0
        %v766 = vadd.f32 0.0, %v765
        %v767 = vpop.f32.mrb[0].mxu0
        %v768 = vadd.f32 0.0, %v767
        %769 = vmatprep.mubr.f32.mxu0 %v470
        %770 = vmatmul.mubr.f32.gmra.mrb[0].mxu0 %v469
        %v771 = vpop.f32.mrb[0].mxu0
        %v772 = vadd.f32 0.0, %v771
        %v773 = vpop.f32.mrb[0].mxu0
        %v774 = vadd.f32 0.0, %v773
        %775 = vmatprep.mubr.f32.mxu0 %v472
        %776 = vmatmul.mubr.f32.gmra.mrb[0].mxu0 %v471
        %v777 = vpop.f32.mrb[0].mxu0
        %v778 = vadd.f32 0.0, %v777
        %v779 = vpop.f32.mrb[0].mxu0
        %v780 = vadd.f32 0.0, %v779
        %781 = vmatprep.mubr.f32.mxu0 %v474
        %782 = vmatmul.mubr.f32.gmra.mrb[0].mxu0 %v473
        %v783 = vpop.f32.mrb[0].mxu0
        %v784 = vadd.f32 0.0, %v783
        %v785 = vpop.f32.mrb[0].mxu0
        %v786 = vadd.f32 0.0, %v785
        %787 = vmatprep.mubr.f32.mxu0 %v476
        %788 = vmatmul.mubr.f32.gmra.mrb[0].mxu0 %v475
        %v789 = vpop.f32.mrb[0].mxu0
        %v790 = vadd.f32 0.0, %v789
        %v791 = vpop.f32.mrb[0].mxu0
        %v792 = vadd.f32 0.0, %v791
        %793 = vmatprep.mubr.f32.mxu0 %v478
        %794 = vmatmul.mubr.f32.gmra.mrb[0].mxu0 %v477
        %v795 = vpop.f32.mrb[0].mxu0
        %v796 = vadd.f32 0.0, %v795
        %v797 = vpop.f32.mrb[0].mxu0
        %v798 = vadd.f32 0.0, %v797
        %799 = vmatprep.mubr.f32.mxu0 %v480
        %800 = vmatmul.mubr.f32.gmra.mrb[0].mxu0 %v479
        %v801 = vpop.f32.mrb[0].mxu0
        %v802 = vadd.f32 0.0, %v801
        %v803 = vpop.f32.mrb[0].mxu0
        %v804 = vadd.f32 0.0, %v803
        %805 = vmatprep.mubr.f32.mxu0 %v482
        %806 = vmatmul.mubr.f32.gmra.mrb[0].mxu0 %v481
        %v807 = vpop.f32.mrb[0].mxu0
        %v808 = vadd.f32 0.0, %v807
        %v809 = vpop.f32.mrb[0].mxu0
        %v810 = vadd.f32 0.0, %v809
        %811 = vmatprep.mubr.f32.mxu0 %v484
        %812 = vmatmul.mubr.f32.gmra.mrb[0].mxu0 %v483
        %v813 = vpop.f32.mrb[0].mxu0
        %v814 = vadd.f32 0.0, %v813
        %v815 = vpop.f32.mrb[0].mxu0
        %v816 = vadd.f32 0.0, %v815
        %817 = vmatprep.mubr.f32.mxu0 %v486
        %818 = vmatmul.mubr.f32.gmra.mrb[0].mxu0 %v485
        %v819 = vpop.f32.mrb[0].mxu0
        %v820 = vadd.f32 0.0, %v819
        %v821 = vpop.f32.mrb[0].mxu0
        %v822 = vadd.f32 0.0, %v821
        %823 = vmatprep.mubr.f32.mxu0 %v488
        %824 = vmatmul.mubr.f32.gmra.mrb[0].mxu0 %v487
        %v825 = vpop.f32.mrb[0].mxu0
        %v826 = vadd.f32 0.0, %v825
        %v827 = vpop.f32.mrb[0].mxu0
        %v828 = vadd.f32 0.0, %v827
        %829 = vmatprep.mubr.f32.mxu0 %v490
        %830 = vmatmul.mubr.f32.gmra.mrb[0].mxu0 %v489
        %v831 = vpop.f32.mrb[0].mxu0
        %v832 = vadd.f32 0.0, %v831
        %v833 = vpop.f32.mrb[0].mxu0
        %v834 = vadd.f32 0.0, %v833
        %835 = vmatprep.mubr.f32.mxu0 %v492
        %836 = vmatmul.mubr.f32.gmra.mrb[0].mxu0 %v491
        %v837 = vpop.f32.mrb[0].mxu0
        %v838 = vadd.f32 0.0, %v837
        %v839 = vpop.f32.mrb[0].mxu0
        %v840 = vadd.f32 0.0, %v839
        %841 = vmatprep.mubr.f32.mxu0 %v494
        %842 = vmatmul.mubr.f32.gmra.mrb[0].mxu0 %v493
        %v843 = vpop.f32.mrb[0].mxu0
        %v844 = vadd.f32 0.0, %v843
        %v845 = vpop.f32.mrb[0].mxu0
        %v846 = vadd.f32 0.0, %v845
        %847 = vdwg.mxu0
        %848 = vmatprep.subr.mxu0 0.0
        %849 = vmatpush1.msra.mxu0 %v497
        %850 = vmatprep.subr.mxu0 0.0
        %851 = vmatpush1.msra.mxu0 %v500
        %852 = vmatprep.subr.mxu0 0.0
        %853 = vmatpush1.msra.mxu0 %v503
        %854 = vmatprep.subr.mxu0 0.0
        %855 = vmatpush1.msra.mxu0 %v506
        %856 = vmatprep.subr.mxu0 0.0
        %857 = vmatpush1.msra.mxu0 %v509
        %858 = vmatprep.subr.mxu0 0.0
        %859 = vmatpush1.msra.mxu0 %v512
        %860 = vmatprep.subr.mxu0 0.0
        %861 = vmatpush1.msra.mxu0 %v515
        %862 = vmatprep.subr.mxu0 0.0
        %863 = vmatpush1.msra.mxu0 %v518
        %864 = vmatprep.subr.mxu0 0.0
        %865 = vmatpush1.msra.mxu0 %v521
        %866 = vmatprep.subr.mxu0 0.0
        %867 = vmatpush1.msra.mxu0 %v524
        %868 = vmatprep.subr.mxu0 0.0
        %869 = vmatpush1.msra.mxu0 %v527
        %870 = vmatprep.subr.mxu0 0.0
        %871 = vmatpush1.msra.mxu0 %v530
        %872 = vmatprep.subr.mxu0 0.0
        %873 = vmatpush1.msra.mxu0 %v533
        %874 = vmatprep.subr.mxu0 0.0
        %875 = vmatpush1.msra.mxu0 %v536
        %876 = vmatprep.subr.mxu0 0.0
        %877 = vmatpush1.msra.mxu0 %v539
        %878 = vmatprep.subr.mxu0 0.0
        %879 = vmatpush1.msra.mxu0 %v542
        %880 = vmatprep.subr.mxu0 0.0
        %881 = vmatpush1.msra.mxu0 %v545
        %882 = vmatprep.subr.mxu0 0.0
        %883 = vmatpush1.msra.mxu0 %v548
        %884 = vmatprep.subr.mxu0 0.0
        %885 = vmatpush1.msra.mxu0 %v551
        %886 = vmatprep.subr.mxu0 0.0
        %887 = vmatpush1.msra.mxu0 %v554
        %888 = vmatprep.subr.mxu0 0.0
        %889 = vmatpush1.msra.mxu0 %v557
        %890 = vmatprep.subr.mxu0 0.0
        %891 = vmatpush1.msra.mxu0 %v560
        %892 = vmatprep.subr.mxu0 0.0
        %893 = vmatpush1.msra.mxu0 %v563
        %894 = vmatprep.subr.mxu0 0.0
        %895 = vmatpush1.msra.mxu0 %v566
        %896 = vmatprep.subr.mxu0 0.0
        %897 = vmatpush1.msra.mxu0 %v569
        %898 = vmatprep.subr.mxu0 0.0
        %899 = vmatpush1.msra.mxu0 %v572
        %900 = vmatprep.subr.mxu0 0.0
        %901 = vmatpush1.msra.mxu0 %v575
        %902 = vmatprep.subr.mxu0 0.0
        %903 = vmatpush1.msra.mxu0 %v578
        %904 = vmatprep.subr.mxu0 0.0
        %905 = vmatpush1.msra.mxu0 %v581
        %906 = vmatprep.subr.mxu0 0.0
        %907 = vmatpush1.msra.mxu0 %v584
        %908 = vmatprep.subr.mxu0 0.0
        %909 = vmatpush1.msra.mxu0 %v587
        %910 = vmatprep.subr.mxu0 0.0
        %911 = vmatpush1.msra.mxu0 %v590
        %912 = vmatprep.mubr.f32.mxu0 %v432
        %913 = vmatmul.mubr.f32.gmra.mrb[0].mxu0 %v431
        %v914 = vpop.f32.mrb[0].mxu0
        %v915 = vadd.f32 0.0, %v914
        %v916 = vpop.f32.mrb[0].mxu0
        %917 = vmatprep.mubr.f32.mxu0 %v434
        %918 = vmatmul.mubr.f32.gmra.mrb[0].mxu0 %v433
        %v919 = vpop.f32.mrb[0].mxu0
        %v920 = vadd.f32 0.0, %v919
        %v921 = vpop.f32.mrb[0].mxu0
        %922 = vmatprep.mubr.f32.mxu0 %v436
        %923 = vmatmul.mubr.f32.gmra.mrb[0].mxu0 %v435
        %v924 = vpop.f32.mrb[0].mxu0
        %v925 = vadd.f32 0.0, %v924
        %v926 = vpop.f32.mrb[0].mxu0
        %927 = vmatprep.mubr.f32.mxu0 %v438
        %928 = vmatmul.mubr.f32.gmra.mrb[0].mxu0 %v437
        %v929 = vpop.f32.mrb[0].mxu0
        %v930 = vadd.f32 0.0, %v929
        %v931 = vpop.f32.mrb[0].mxu0
        %932 = vmatprep.mubr.f32.mxu0 %v440
        %933 = vmatmul.mubr.f32.gmra.mrb[0].mxu0 %v439
        %v934 = vpop.f32.mrb[0].mxu0
        %v935 = vadd.f32 0.0, %v934
        %v936 = vpop.f32.mrb[0].mxu0
        %937 = vmatprep.mubr.f32.mxu0 %v442
        %938 = vmatmul.mubr.f32.gmra.mrb[0].mxu0 %v441
        %v939 = vpop.f32.mrb[0].mxu0
        %v940 = vadd.f32 0.0, %v939
        %v941 = vpop.f32.mrb[0].mxu0
        %942 = vmatprep.mubr.f32.mxu0 %v444
        %943 = vmatmul.mubr.f32.gmra.mrb[0].mxu0 %v443
        %v944 = vpop.f32.mrb[0].mxu0
        %v945 = vadd.f32 0.0, %v944
        %v946 = vpop.f32.mrb[0].mxu0
        %947 = vmatprep.mubr.f32.mxu0 %v446
        %948 = vmatmul.mubr.f32.gmra.mrb[0].mxu0 %v445
        %v949 = vpop.f32.mrb[0].mxu0
        %v950 = vadd.f32 0.0, %v949
        %v951 = vpop.f32.mrb[0].mxu0
        %952 = vmatprep.mubr.f32.mxu0 %v448
        %953 = vmatmul.mubr.f32.gmra.mrb[0].mxu0 %v447
        %v954 = vpop.f32.mrb[0].mxu0
        %v955 = vadd.f32 0.0, %v954
        %v956 = vpop.f32.mrb[0].mxu0
        %957 = vmatprep.mubr.f32.mxu0 %v450
        %958 = vmatmul.mubr.f32.gmra.mrb[0].mxu0 %v449
        %v959 = vpop.f32.mrb[0].mxu0
        %v960 = vadd.f32 0.0, %v959
        %v961 = vpop.f32.mrb[0].mxu0
        %962 = vmatprep.mubr.f32.mxu0 %v452
        %963 = vmatmul.mubr.f32.gmra.mrb[0].mxu0 %v451
        %v964 = vpop.f32.mrb[0].mxu0
        %v965 = vadd.f32 0.0, %v964
        %v966 = vpop.f32.mrb[0].mxu0
        %967 = vmatprep.mubr.f32.mxu0 %v454
        %968 = vmatmul.mubr.f32.gmra.mrb[0].mxu0 %v453
        %v969 = vpop.f32.mrb[0].mxu0
        %v970 = vadd.f32 0.0, %v969
        %v971 = vpop.f32.mrb[0].mxu0
        %972 = vmatprep.mubr.f32.mxu0 %v456
        %973 = vmatmul.mubr.f32.gmra.mrb[0].mxu0 %v455
        %v974 = vpop.f32.mrb[0].mxu0
        %v975 = vadd.f32 0.0, %v974
        %v976 = vpop.f32.mrb[0].mxu0
        %977 = vmatprep.mubr.f32.mxu0 %v458
        %978 = vmatmul.mubr.f32.gmra.mrb[0].mxu0 %v457
        %v979 = vpop.f32.mrb[0].mxu0
        %v980 = vadd.f32 0.0, %v979
        %v981 = vpop.f32.mrb[0].mxu0
        %982 = vmatprep.mubr.f32.mxu0 %v460
        %983 = vmatmul.mubr.f32.gmra.mrb[0].mxu0 %v459
        %v984 = vpop.f32.mrb[0].mxu0
        %v985 = vadd.f32 0.0, %v984
        %v986 = vpop.f32.mrb[0].mxu0
        %987 = vmatprep.mubr.f32.mxu0 %v462
        %988 = vmatmul.mubr.f32.gmra.mrb[0].mxu0 %v461
        %v989 = vpop.f32.mrb[0].mxu0
        %v990 = vadd.f32 0.0, %v989
        %v991 = vpop.f32.mrb[0].mxu0
        %992 = vmatprep.mubr.f32.mxu0 %v464
        %993 = vmatmul.mubr.f32.gmra.mrb[0].mxu0 %v463
        %v994 = vpop.f32.mrb[0].mxu0
        %v995 = vadd.f32 0.0, %v994
        %v996 = vpop.f32.mrb[0].mxu0
        %997 = vmatprep.mubr.f32.mxu0 %v466
        %998 = vmatmul.mubr.f32.gmra.mrb[0].mxu0 %v465
        %v999 = vpop.f32.mrb[0].mxu0
        %v1000 = vadd.f32 0.0, %v999
        %v1001 = vpop.f32.mrb[0].mxu0
        %1002 = vmatprep.mubr.f32.mxu0 %v468
        %1003 = vmatmul.mubr.f32.gmra.mrb[0].mxu0 %v467
        %v1004 = vpop.f32.mrb[0].mxu0
        %v1005 = vadd.f32 0.0, %v1004
        %v1006 = vpop.f32.mrb[0].mxu0
        %1007 = vmatprep.mubr.f32.mxu0 %v470
        %1008 = vmatmul.mubr.f32.gmra.mrb[0].mxu0 %v469
        %v1009 = vpop.f32.mrb[0].mxu0
        %v1010 = vadd.f32 0.0, %v1009
        %v1011 = vpop.f32.mrb[0].mxu0
        %1012 = vmatprep.mubr.f32.mxu0 %v472
        %1013 = vmatmul.mubr.f32.gmra.mrb[0].mxu0 %v471
        %v1014 = vpop.f32.mrb[0].mxu0
        %v1015 = vadd.f32 0.0, %v1014
        %v1016 = vpop.f32.mrb[0].mxu0
        %1017 = vmatprep.mubr.f32.mxu0 %v474
        %1018 = vmatmul.mubr.f32.gmra.mrb[0].mxu0 %v473
        %v1019 = vpop.f32.mrb[0].mxu0
        %v1020 = vadd.f32 0.0, %v1019
        %v1021 = vpop.f32.mrb[0].mxu0
        %1022 = vmatprep.mubr.f32.mxu0 %v476
        %1023 = vmatmul.mubr.f32.gmra.mrb[0].mxu0 %v475
        %v1024 = vpop.f32.mrb[0].mxu0
        %v1025 = vadd.f32 0.0, %v1024
        %v1026 = vpop.f32.mrb[0].mxu0
        %1027 = vmatprep.mubr.f32.mxu0 %v478
        %1028 = vmatmul.mubr.f32.gmra.mrb[0].mxu0 %v477
        %v1029 = vpop.f32.mrb[0].mxu0
        %v1030 = vadd.f32 0.0, %v1029
        %v1031 = vpop.f32.mrb[0].mxu0
        %1032 = vmatprep.mubr.f32.mxu0 %v480
        %1033 = vmatmul.mubr.f32.gmra.mrb[0].mxu0 %v479
        %v1034 = vpop.f32.mrb[0].mxu0
        %v1035 = vadd.f32 0.0, %v1034
        %v1036 = vpop.f32.mrb[0].mxu0
        %1037 = vmatprep.mubr.f32.mxu0 %v482
        %1038 = vmatmul.mubr.f32.gmra.mrb[0].mxu0 %v481
        %v1039 = vpop.f32.mrb[0].mxu0
        %v1040 = vadd.f32 0.0, %v1039
        %v1041 = vpop.f32.mrb[0].mxu0
        %1042 = vmatprep.mubr.f32.mxu0 %v484
        %1043 = vmatmul.mubr.f32.gmra.mrb[0].mxu0 %v483
        %v1044 = vpop.f32.mrb[0].mxu0
        %v1045 = vadd.f32 0.0, %v1044
        %v1046 = vpop.f32.mrb[0].mxu0
        %1047 = vmatprep.mubr.f32.mxu0 %v486
        %1048 = vmatmul.mubr.f32.gmra.mrb[0].mxu0 %v485
        %v1049 = vpop.f32.mrb[0].mxu0
        %v1050 = vadd.f32 0.0, %v1049
        %v1051 = vpop.f32.mrb[0].mxu0
        %1052 = vmatprep.mubr.f32.mxu0 %v488
        %1053 = vmatmul.mubr.f32.gmra.mrb[0].mxu0 %v487
        %v1054 = vpop.f32.mrb[0].mxu0
        %v1055 = vadd.f32 0.0, %v1054
        %v1056 = vpop.f32.mrb[0].mxu0
        %1057 = vmatprep.mubr.f32.mxu0 %v490
        %1058 = vmatmul.mubr.f32.gmra.mrb[0].mxu0 %v489
        %v1059 = vpop.f32.mrb[0].mxu0
        %v1060 = vadd.f32 0.0, %v1059
        %v1061 = vpop.f32.mrb[0].mxu0
        %1062 = vmatprep.mubr.f32.mxu0 %v492
        %1063 = vmatmul.mubr.f32.gmra.mrb[0].mxu0 %v491
        %v1064 = vpop.f32.mrb[0].mxu0
        %v1065 = vadd.f32 0.0, %v1064
        %v1066 = vpop.f32.mrb[0].mxu0
        %1067 = vmatprep.mubr.f32.mxu0 %v494
        %1068 = vmatmul.mubr.f32.gmra.mrb[0].mxu0 %v493
        %v1069 = vpop.f32.mrb[0].mxu0
        %v1070 = vadd.f32 0.0, %v1069
        %v1071 = vpop.f32.mrb[0].mxu0
        %1072 = vdwg.mxu0
        %v1073 = vadd.f32 %v335, %v658
        %v1074 = vadd.f32 %v336, %v660
        %v1075 = vadd.f32 %v337, %v915
        %v1076 = vadd.f32 %v338, %v664
        %v1077 = vadd.f32 %v339, %v666
        %v1078 = vadd.f32 %v340, %v920
        %v1079 = vadd.f32 %v341, %v670
        %v1080 = vadd.f32 %v342, %v672
        %v1081 = vadd.f32 %v343, %v925
        %v1082 = vadd.f32 %v344, %v676
        %v1083 = vadd.f32 %v345, %v678
        %v1084 = vadd.f32 %v346, %v930
        %v1085 = vadd.f32 %v347, %v682
        %v1086 = vadd.f32 %v348, %v684
        %v1087 = vadd.f32 %v349, %v935
        %v1088 = vadd.f32 %v350, %v688
        %v1089 = vadd.f32 %v351, %v690
        %v1090 = vadd.f32 %v352, %v940
        %v1091 = vadd.f32 %v353, %v694
        %v1092 = vadd.f32 %v354, %v696
        %v1093 = vadd.f32 %v355, %v945
        %v1094 = vadd.f32 %v356, %v700
        %v1095 = vadd.f32 %v357, %v702
        %v1096 = vadd.f32 %v358, %v950
        %v1097 = vadd.f32 %v359, %v706
        %v1098 = vadd.f32 %v360, %v708
        %v1099 = vadd.f32 %v361, %v955
        %v1100 = vadd.f32 %v362, %v712
        %v1101 = vadd.f32 %v363, %v714
        %v1102 = vadd.f32 %v364, %v960
        %v1103 = vadd.f32 %v365, %v718
        %v1104 = vadd.f32 %v366, %v720
        %v1105 = vadd.f32 %v367, %v965
        %v1106 = vadd.f32 %v368, %v724
        %v1107 = vadd.f32 %v369, %v726
        %v1108 = vadd.f32 %v370, %v970
        %v1109 = vadd.f32 %v371, %v730
        %v1110 = vadd.f32 %v372, %v732
        %v1111 = vadd.f32 %v373, %v975
        %v1112 = vadd.f32 %v374, %v736
        %v1113 = vadd.f32 %v375, %v738
        %v1114 = vadd.f32 %v376, %v980
        %v1115 = vadd.f32 %v377, %v742
        %v1116 = vadd.f32 %v378, %v744
        %v1117 = vadd.f32 %v379, %v985
        %v1118 = vadd.f32 %v380, %v748
        %v1119 = vadd.f32 %v381, %v750
        %v1120 = vadd.f32 %v382, %v990
        %v1121 = vadd.f32 %v383, %v754
        %v1122 = vadd.f32 %v384, %v756
        %v1123 = vadd.f32 %v385, %v995
        %v1124 = vadd.f32 %v386, %v760
        %v1125 = vadd.f32 %v387, %v762
        %v1126 = vadd.f32 %v388, %v1000
        %v1127 = vadd.f32 %v389, %v766
        %v1128 = vadd.f32 %v390, %v768
        %v1129 = vadd.f32 %v391, %v1005
        %v1130 = vadd.f32 %v392, %v772
        %v1131 = vadd.f32 %v393, %v774
        %v1132 = vadd.f32 %v394, %v1010
        %v1133 = vadd.f32 %v395, %v778
        %v1134 = vadd.f32 %v396, %v780
        %v1135 = vadd.f32 %v397, %v1015
        %v1136 = vadd.f32 %v398, %v784
        %v1137 = vadd.f32 %v399, %v786
        %v1138 = vadd.f32 %v400, %v1020
        %v1139 = vadd.f32 %v401, %v790
        %v1140 = vadd.f32 %v402, %v792
        %v1141 = vadd.f32 %v403, %v1025
        %v1142 = vadd.f32 %v404, %v796
        %v1143 = vadd.f32 %v405, %v798
        %v1144 = vadd.f32 %v406, %v1030
        %v1145 = vadd.f32 %v407, %v802
        %v1146 = vadd.f32 %v408, %v804
        %v1147 = vadd.f32 %v409, %v1035
        %v1148 = vadd.f32 %v410, %v808
        %v1149 = vadd.f32 %v411, %v810
        %v1150 = vadd.f32 %v412, %v1040
        %v1151 = vadd.f32 %v413, %v814
        %v1152 = vadd.f32 %v414, %v816
        %v1153 = vadd.f32 %v415, %v1045
        %v1154 = vadd.f32 %v416, %v820
        %v1155 = vadd.f32 %v417, %v822
        %v1156 = vadd.f32 %v418, %v1050
        %v1157 = vadd.f32 %v419, %v826
        %v1158 = vadd.f32 %v420, %v828
        %v1159 = vadd.f32 %v421, %v1055
        %v1160 = vadd.f32 %v422, %v832
        %v1161 = vadd.f32 %v423, %v834
        %v1162 = vadd.f32 %v424, %v1060
        %v1163 = vadd.f32 %v425, %v838
        %v1164 = vadd.f32 %v426, %v840
        %v1165 = vadd.f32 %v427, %v1065
        %v1166 = vadd.f32 %v428, %v844
        %v1167 = vadd.f32 %v429, %v846
        %v1168 = vadd.f32 %v430, %v1070
        %1169 = vst [vmem:[#allocation2] sm:$0xff] %v1073
        %1170 = vst [vmem:[#allocation2 + $0x8] sm:$0xff] %v1074
        %1171 = vst [vmem:[#allocation2 + $0x10] sm:$0xff] %v1075
        %1172 = vst [vmem:[#allocation2 + $0x18] sm:$0xff] %v1076
        %1173 = vst [vmem:[#allocation2 + $0x20] sm:$0xff] %v1077
        %1174 = vst [vmem:[#allocation2 + $0x28] sm:$0xff] %v1078
        %1175 = vst [vmem:[#allocation2 + $0x30] sm:$0xff] %v1079
        %1176 = vst [vmem:[#allocation2 + $0x38] sm:$0xff] %v1080
        %1177 = vst [vmem:[#allocation2 + $0x40] sm:$0xff] %v1081
        %1178 = vst [vmem:[#allocation2 + $0x48] sm:$0xff] %v1082
        %1179 = vst [vmem:[#allocation2 + $0x50] sm:$0xff] %v1083
        %1180 = vst [vmem:[#allocation2 + $0x58] sm:$0xff] %v1084
        %1181 = vst [vmem:[#allocation2 + $0x60] sm:$0xff] %v1085
        %1182 = vst [vmem:[#allocation2 + $0x68] sm:$0xff] %v1086
        %1183 = vst [vmem:[#allocation2 + $0x70] sm:$0xff] %v1087
        %1184 = vst [vmem:[#allocation2 + $0x78] sm:$0xff] %v1088
        %1185 = vst [vmem:[#allocation2 + $0x80] sm:$0xff] %v1089
        %1186 = vst [vmem:[#allocation2 + $0x88] sm:$0xff] %v1090
        %1187 = vst [vmem:[#allocation2 + $0x90] sm:$0xff] %v1091
        %1188 = vst [vmem:[#allocation2 + $0x98] sm:$0xff] %v1092
        %1189 = vst [vmem:[#allocation2 + $0xa0] sm:$0xff] %v1093
        %1190 = vst [vmem:[#allocation2 + $0xa8] sm:$0xff] %v1094
        %1191 = vst [vmem:[#allocation2 + $0xb0] sm:$0xff] %v1095
        %1192 = vst [vmem:[#allocation2 + $0xb8] sm:$0xff] %v1096
        %1193 = vst [vmem:[#allocation2 + $0xc0] sm:$0xff] %v1097
        %1194 = vst [vmem:[#allocation2 + $0xc8] sm:$0xff] %v1098
        %1195 = vst [vmem:[#allocation2 + $0xd0] sm:$0xff] %v1099
        %1196 = vst [vmem:[#allocation2 + $0xd8] sm:$0xff] %v1100
        %1197 = vst [vmem:[#allocation2 + $0xe0] sm:$0xff] %v1101
        %1198 = vst [vmem:[#allocation2 + $0xe8] sm:$0xff] %v1102
        %1199 = vst [vmem:[#allocation2 + $0xf0] sm:$0xff] %v1103
        %1200 = vst [vmem:[#allocation2 + $0xf8] sm:$0xff] %v1104
        %1201 = vst [vmem:[#allocation2 + $0x100] sm:$0xff] %v1105
        %1202 = vst [vmem:[#allocation2 + $0x108] sm:$0xff] %v1106
        %1203 = vst [vmem:[#allocation2 + $0x110] sm:$0xff] %v1107
        %1204 = vst [vmem:[#allocation2 + $0x118] sm:$0xff] %v1108
        %1205 = vst [vmem:[#allocation2 + $0x120] sm:$0xff] %v1109
        %1206 = vst [vmem:[#allocation2 + $0x128] sm:$0xff] %v1110
        %1207 = vst [vmem:[#allocation2 + $0x130] sm:$0xff] %v1111
        %1208 = vst [vmem:[#allocation2 + $0x138] sm:$0xff] %v1112
        %1209 = vst [vmem:[#allocation2 + $0x140] sm:$0xff] %v1113
        %1210 = vst [vmem:[#allocation2 + $0x148] sm:$0xff] %v1114
        %1211 = vst [vmem:[#allocation2 + $0x150] sm:$0xff] %v1115
        %1212 = vst [vmem:[#allocation2 + $0x158] sm:$0xff] %v1116
        %1213 = vst [vmem:[#allocation2 + $0x160] sm:$0xff] %v1117
        %1214 = vst [vmem:[#allocation2 + $0x168] sm:$0xff] %v1118
        %1215 = vst [vmem:[#allocation2 + $0x170] sm:$0xff] %v1119
        %1216 = vst [vmem:[#allocation2 + $0x178] sm:$0xff] %v1120
        %1217 = vst [vmem:[#allocation2 + $0x180] sm:$0xff] %v1121
        %1218 = vst [vmem:[#allocation2 + $0x188] sm:$0xff] %v1122
        %1219 = vst [vmem:[#allocation2 + $0x190] sm:$0xff] %v1123
        %1220 = vst [vmem:[#allocation2 + $0x198] sm:$0xff] %v1124
        %1221 = vst [vmem:[#allocation2 + $0x1a0] sm:$0xff] %v1125
        %1222 = vst [vmem:[#allocation2 + $0x1a8] sm:$0xff] %v1126
        %1223 = vst [vmem:[#allocation2 + $0x1b0] sm:$0xff] %v1127
        %1224 = vst [vmem:[#allocation2 + $0x1b8] sm:$0xff] %v1128
        %1225 = vst [vmem:[#allocation2 + $0x1c0] sm:$0xff] %v1129
        %1226 = vst [vmem:[#allocation2 + $0x1c8] sm:$0xff] %v1130
        %1227 = vst [vmem:[#allocation2 + $0x1d0] sm:$0xff] %v1131
        %1228 = vst [vmem:[#allocation2 + $0x1d8] sm:$0xff] %v1132
        %1229 = vst [vmem:[#allocation2 + $0x1e0] sm:$0xff] %v1133
        %1230 = vst [vmem:[#allocation2 + $0x1e8] sm:$0xff] %v1134
        %1231 = vst [vmem:[#allocation2 + $0x1f0] sm:$0xff] %v1135
        %1232 = vst [vmem:[#allocation2 + $0x1f8] sm:$0xff] %v1136
        %1233 = vst [vmem:[#allocation2 + $0x200] sm:$0xff] %v1137
        %1234 = vst [vmem:[#allocation2 + $0x208] sm:$0xff] %v1138
        %1235 = vst [vmem:[#allocation2 + $0x210] sm:$0xff] %v1139
        %1236 = vst [vmem:[#allocation2 + $0x218] sm:$0xff] %v1140
        %1237 = vst [vmem:[#allocation2 + $0x220] sm:$0xff] %v1141
        %1238 = vst [vmem:[#allocation2 + $0x228] sm:$0xff] %v1142
        %1239 = vst [vmem:[#allocation2 + $0x230] sm:$0xff] %v1143
        %1240 = vst [vmem:[#allocation2 + $0x238] sm:$0xff] %v1144
        %1241 = vst [vmem:[#allocation2 + $0x240] sm:$0xff] %v1145
        %1242 = vst [vmem:[#allocation2 + $0x248] sm:$0xff] %v1146
        %1243 = vst [vmem:[#allocation2 + $0x250] sm:$0xff] %v1147
        %1244 = vst [vmem:[#allocation2 + $0x258] sm:$0xff] %v1148
        %1245 = vst [vmem:[#allocation2 + $0x260] sm:$0xff] %v1149
        %1246 = vst [vmem:[#allocation2 + $0x268] sm:$0xff] %v1150
        %1247 = vst [vmem:[#allocation2 + $0x270] sm:$0xff] %v1151
        %1248 = vst [vmem:[#allocation2 + $0x278] sm:$0xff] %v1152
        %1249 = vst [vmem:[#allocation2 + $0x280] sm:$0xff] %v1153
        %1250 = vst [vmem:[#allocation2 + $0x288] sm:$0xff] %v1154
        %1251 = vst [vmem:[#allocation2 + $0x290] sm:$0xff] %v1155
        %1252 = vst [vmem:[#allocation2 + $0x298] sm:$0xff] %v1156
        %1253 = vst [vmem:[#allocation2 + $0x2a0] sm:$0xff] %v1157
        %1254 = vst [vmem:[#allocation2 + $0x2a8] sm:$0xff] %v1158
        %1255 = vst [vmem:[#allocation2 + $0x2b0] sm:$0xff] %v1159
        %1256 = vst [vmem:[#allocation2 + $0x2b8] sm:$0xff] %v1160
        %1257 = vst [vmem:[#allocation2 + $0x2c0] sm:$0xff] %v1161
        %1258 = vst [vmem:[#allocation2 + $0x2c8] sm:$0xff] %v1162
        %1259 = vst [vmem:[#allocation2 + $0x2d0] sm:$0xff] %v1163
        %1260 = vst [vmem:[#allocation2 + $0x2d8] sm:$0xff] %v1164
        %1261 = vst [vmem:[#allocation2 + $0x2e0] sm:$0xff] %v1165
        %1262 = vst [vmem:[#allocation2 + $0x2e8] sm:$0xff] %v1166
        %1263 = vst [vmem:[#allocation2 + $0x2f0] sm:$0xff] %v1167
        %1264 = vst [vmem:[#allocation2 + $0x2f8] sm:$0xff] %v1168
        // Predicated region
        $region41: #{gpt_neo_self_attention.3} parent=27 // pred_check
          %p1265 = pneg %p235
        $region42: #{gpt_neo_self_attention.3} parent=27 // pred_check_branch
          %1267 = sbr.rel (%p1265) target = $region44
        $region43: #{gpt_neo_self_attention.3} parent=27 // pred_region
          %v1268 = vld [vmem:[#allocation2] sm:$0xff]
          %v1269 = vld [vmem:[#allocation2 + $0x8] sm:$0xff]
          %v1270 = vld [vmem:[#allocation2 + $0x10] sm:$0xff]
          %v1271 = vld [vmem:[#allocation2 + $0x18] sm:$0xff]
          %v1272 = vld [vmem:[#allocation2 + $0x20] sm:$0xff]
          %v1273 = vld [vmem:[#allocation2 + $0x28] sm:$0xff]
          %v1274 = vld [vmem:[#allocation2 + $0x30] sm:$0xff]
          %v1275 = vld [vmem:[#allocation2 + $0x38] sm:$0xff]
          %v1276 = vld [vmem:[#allocation2 + $0x40] sm:$0xff]
          %v1277 = vld [vmem:[#allocation2 + $0x48] sm:$0xff]
          %v1278 = vld [vmem:[#allocation2 + $0x50] sm:$0xff]
          %v1279 = vld [vmem:[#allocation2 + $0x58] sm:$0xff]
          %v1280 = vld [vmem:[#allocation2 + $0x60] sm:$0xff]
          %v1281 = vld [vmem:[#allocation2 + $0x68] sm:$0xff]
          %v1282 = vld [vmem:[#allocation2 + $0x70] sm:$0xff]
          %v1283 = vld [vmem:[#allocation2 + $0x78] sm:$0xff]
          %v1284 = vld [vmem:[#allocation2 + $0x80] sm:$0xff]
          %v1285 = vld [vmem:[#allocation2 + $0x88] sm:$0xff]
          %v1286 = vld [vmem:[#allocation2 + $0x90] sm:$0xff]
          %v1287 = vld [vmem:[#allocation2 + $0x98] sm:$0xff]
          %v1288 = vld [vmem:[#allocation2 + $0xa0] sm:$0xff]
          %v1289 = vld [vmem:[#allocation2 + $0xa8] sm:$0xff]
          %v1290 = vld [vmem:[#allocation2 + $0xb0] sm:$0xff]
          %v1291 = vld [vmem:[#allocation2 + $0xb8] sm:$0xff]
          %v1292 = vld [vmem:[#allocation2 + $0xc0] sm:$0xff]
          %v1293 = vld [vmem:[#allocation2 + $0xc8] sm:$0xff]
          %v1294 = vld [vmem:[#allocation2 + $0xd0] sm:$0xff]
          %v1295 = vld [vmem:[#allocation2 + $0xd8] sm:$0xff]
          %v1296 = vld [vmem:[#allocation2 + $0xe0] sm:$0xff]
          %v1297 = vld [vmem:[#allocation2 + $0xe8] sm:$0xff]
          %v1298 = vld [vmem:[#allocation2 + $0xf0] sm:$0xff]
          %v1299 = vld [vmem:[#allocation2 + $0xf8] sm:$0xff]
          %v1300 = vld [vmem:[#allocation2 + $0x100] sm:$0xff]
          %v1301 = vld [vmem:[#allocation2 + $0x108] sm:$0xff]
          %v1302 = vld [vmem:[#allocation2 + $0x110] sm:$0xff]
          %v1303 = vld [vmem:[#allocation2 + $0x118] sm:$0xff]
          %v1304 = vld [vmem:[#allocation2 + $0x120] sm:$0xff]
          %v1305 = vld [vmem:[#allocation2 + $0x128] sm:$0xff]
          %v1306 = vld [vmem:[#allocation2 + $0x130] sm:$0xff]
          %v1307 = vld [vmem:[#allocation2 + $0x138] sm:$0xff]
          %v1308 = vld [vmem:[#allocation2 + $0x140] sm:$0xff]
          %v1309 = vld [vmem:[#allocation2 + $0x148] sm:$0xff]
          %v1310 = vld [vmem:[#allocation2 + $0x150] sm:$0xff]
          %v1311 = vld [vmem:[#allocation2 + $0x158] sm:$0xff]
          %v1312 = vld [vmem:[#allocation2 + $0x160] sm:$0xff]
          %v1313 = vld [vmem:[#allocation2 + $0x168] sm:$0xff]
          %v1314 = vld [vmem:[#allocation2 + $0x170] sm:$0xff]
          %v1315 = vld [vmem:[#allocation2 + $0x178] sm:$0xff]
          %v1316 = vld [vmem:[#allocation2 + $0x180] sm:$0xff]
          %v1317 = vld [vmem:[#allocation2 + $0x188] sm:$0xff]
          %v1318 = vld [vmem:[#allocation2 + $0x190] sm:$0xff]
          %v1319 = vld [vmem:[#allocation2 + $0x198] sm:$0xff]
          %v1320 = vld [vmem:[#allocation2 + $0x1a0] sm:$0xff]
          %v1321 = vld [vmem:[#allocation2 + $0x1a8] sm:$0xff]
          %v1322 = vld [vmem:[#allocation2 + $0x1b0] sm:$0xff]
          %v1323 = vld [vmem:[#allocation2 + $0x1b8] sm:$0xff]
          %v1324 = vld [vmem:[#allocation2 + $0x1c0] sm:$0xff]
          %v1325 = vld [vmem:[#allocation2 + $0x1c8] sm:$0xff]
          %v1326 = vld [vmem:[#allocation2 + $0x1d0] sm:$0xff]
          %v1327 = vld [vmem:[#allocation2 + $0x1d8] sm:$0xff]
          %v1328 = vld [vmem:[#allocation2 + $0x1e0] sm:$0xff]
          %v1329 = vld [vmem:[#allocation2 + $0x1e8] sm:$0xff]
          %v1330 = vld [vmem:[#allocation2 + $0x1f0] sm:$0xff]
          %v1331 = vld [vmem:[#allocation2 + $0x1f8] sm:$0xff]
          %v1332 = vld [vmem:[#allocation2 + $0x200] sm:$0xff]
          %v1333 = vld [vmem:[#allocation2 + $0x208] sm:$0xff]
          %v1334 = vld [vmem:[#allocation2 + $0x210] sm:$0xff]
          %v1335 = vld [vmem:[#allocation2 + $0x218] sm:$0xff]
          %v1336 = vld [vmem:[#allocation2 + $0x220] sm:$0xff]
          %v1337 = vld [vmem:[#allocation2 + $0x228] sm:$0xff]
          %v1338 = vld [vmem:[#allocation2 + $0x230] sm:$0xff]
          %v1339 = vld [vmem:[#allocation2 + $0x238] sm:$0xff]
          %v1340 = vld [vmem:[#allocation2 + $0x240] sm:$0xff]
          %v1341 = vld [vmem:[#allocation2 + $0x248] sm:$0xff]
          %v1342 = vld [vmem:[#allocation2 + $0x250] sm:$0xff]
          %v1343 = vld [vmem:[#allocation2 + $0x258] sm:$0xff]
          %v1344 = vld [vmem:[#allocation2 + $0x260] sm:$0xff]
          %v1345 = vld [vmem:[#allocation2 + $0x268] sm:$0xff]
          %v1346 = vld [vmem:[#allocation2 + $0x270] sm:$0xff]
          %v1347 = vld [vmem:[#allocation2 + $0x278] sm:$0xff]
          %v1348 = vld [vmem:[#allocation2 + $0x280] sm:$0xff]
          %v1349 = vld [vmem:[#allocation2 + $0x288] sm:$0xff]
          %v1350 = vld [vmem:[#allocation2 + $0x290] sm:$0xff]
          %v1351 = vld [vmem:[#allocation2 + $0x298] sm:$0xff]
          %v1352 = vld [vmem:[#allocation2 + $0x2a0] sm:$0xff]
          %v1353 = vld [vmem:[#allocation2 + $0x2a8] sm:$0xff]
          %v1354 = vld [vmem:[#allocation2 + $0x2b0] sm:$0xff]
          %v1355 = vld [vmem:[#allocation2 + $0x2b8] sm:$0xff]
          %v1356 = vld [vmem:[#allocation2 + $0x2c0] sm:$0xff]
          %v1357 = vld [vmem:[#allocation2 + $0x2c8] sm:$0xff]
          %v1358 = vld [vmem:[#allocation2 + $0x2d0] sm:$0xff]
          %v1359 = vld [vmem:[#allocation2 + $0x2d8] sm:$0xff]
          %v1360 = vld [vmem:[#allocation2 + $0x2e0] sm:$0xff]
          %v1361 = vld [vmem:[#allocation2 + $0x2e8] sm:$0xff]
          %v1362 = vld [vmem:[#allocation2 + $0x2f0] sm:$0xff]
          %v1363 = vld [vmem:[#allocation2 + $0x2f8] sm:$0xff]
          %1364 = vst [vmem:[%s228] sm:$0xff] %v1268
          %1365 = vst [vmem:[%s228 + $0x8] sm:$0xff] %v1269
          %1366 = vst [vmem:[%s228 + $0x10] sm:$0xff] %v1270
          %1367 = vst [vmem:[%s228 + $0x18] sm:$0xff] %v1271
          %1368 = vst [vmem:[%s228 + $0x20] sm:$0xff] %v1272
          %1369 = vst [vmem:[%s228 + $0x28] sm:$0xff] %v1273
          %1370 = vst [vmem:[%s228 + $0x30] sm:$0xff] %v1274
          %1371 = vst [vmem:[%s228 + $0x38] sm:$0xff] %v1275
          %1372 = vst [vmem:[%s228 + $0x40] sm:$0xff] %v1276
          %1373 = vst [vmem:[%s228 + $0x48] sm:$0xff] %v1277
          %1374 = vst [vmem:[%s228 + $0x50] sm:$0xff] %v1278
          %1375 = vst [vmem:[%s228 + $0x58] sm:$0xff] %v1279
          %1376 = vst [vmem:[%s228 + $0x60] sm:$0xff] %v1280
          %1377 = vst [vmem:[%s228 + $0x68] sm:$0xff] %v1281
          %1378 = vst [vmem:[%s228 + $0x70] sm:$0xff] %v1282
          %1379 = vst [vmem:[%s228 + $0x78] sm:$0xff] %v1283
          %1380 = vst [vmem:[%s228 + $0x80] sm:$0xff] %v1284
          %1381 = vst [vmem:[%s228 + $0x88] sm:$0xff] %v1285
          %1382 = vst [vmem:[%s228 + $0x90] sm:$0xff] %v1286
          %1383 = vst [vmem:[%s228 + $0x98] sm:$0xff] %v1287
          %1384 = vst [vmem:[%s228 + $0xa0] sm:$0xff] %v1288
          %1385 = vst [vmem:[%s228 + $0xa8] sm:$0xff] %v1289
          %1386 = vst [vmem:[%s228 + $0xb0] sm:$0xff] %v1290
          %1387 = vst [vmem:[%s228 + $0xb8] sm:$0xff] %v1291
          %1388 = vst [vmem:[%s228 + $0xc0] sm:$0xff] %v1292
          %1389 = vst [vmem:[%s228 + $0xc8] sm:$0xff] %v1293
          %1390 = vst [vmem:[%s228 + $0xd0] sm:$0xff] %v1294
          %1391 = vst [vmem:[%s228 + $0xd8] sm:$0xff] %v1295
          %1392 = vst [vmem:[%s228 + $0xe0] sm:$0xff] %v1296
          %1393 = vst [vmem:[%s228 + $0xe8] sm:$0xff] %v1297
          %1394 = vst [vmem:[%s228 + $0xf0] sm:$0xff] %v1298
          %1395 = vst [vmem:[%s228 + $0xf8] sm:$0xff] %v1299
          %1396 = vst [vmem:[%s228 + $0x100] sm:$0xff] %v1300
          %1397 = vst [vmem:[%s228 + $0x108] sm:$0xff] %v1301
          %1398 = vst [vmem:[%s228 + $0x110] sm:$0xff] %v1302
          %1399 = vst [vmem:[%s228 + $0x118] sm:$0xff] %v1303
          %1400 = vst [vmem:[%s228 + $0x120] sm:$0xff] %v1304
          %1401 = vst [vmem:[%s228 + $0x128] sm:$0xff] %v1305
          %1402 = vst [vmem:[%s228 + $0x130] sm:$0xff] %v1306
          %1403 = vst [vmem:[%s228 + $0x138] sm:$0xff] %v1307
          %1404 = vst [vmem:[%s228 + $0x140] sm:$0xff] %v1308
          %1405 = vst [vmem:[%s228 + $0x148] sm:$0xff] %v1309
          %1406 = vst [vmem:[%s228 + $0x150] sm:$0xff] %v1310
          %1407 = vst [vmem:[%s228 + $0x158] sm:$0xff] %v1311
          %1408 = vst [vmem:[%s228 + $0x160] sm:$0xff] %v1312
          %1409 = vst [vmem:[%s228 + $0x168] sm:$0xff] %v1313
          %1410 = vst [vmem:[%s228 + $0x170] sm:$0xff] %v1314
          %1411 = vst [vmem:[%s228 + $0x178] sm:$0xff] %v1315
          %1412 = vst [vmem:[%s228 + $0x180] sm:$0xff] %v1316
          %1413 = vst [vmem:[%s228 + $0x188] sm:$0xff] %v1317
          %1414 = vst [vmem:[%s228 + $0x190] sm:$0xff] %v1318
          %1415 = vst [vmem:[%s228 + $0x198] sm:$0xff] %v1319
          %1416 = vst [vmem:[%s228 + $0x1a0] sm:$0xff] %v1320
          %1417 = vst [vmem:[%s228 + $0x1a8] sm:$0xff] %v1321
          %1418 = vst [vmem:[%s228 + $0x1b0] sm:$0xff] %v1322
          %1419 = vst [vmem:[%s228 + $0x1b8] sm:$0xff] %v1323
          %1420 = vst [vmem:[%s228 + $0x1c0] sm:$0xff] %v1324
          %1421 = vst [vmem:[%s228 + $0x1c8] sm:$0xff] %v1325
          %1422 = vst [vmem:[%s228 + $0x1d0] sm:$0xff] %v1326
          %1423 = vst [vmem:[%s228 + $0x1d8] sm:$0xff] %v1327
          %1424 = vst [vmem:[%s228 + $0x1e0] sm:$0xff] %v1328
          %1425 = vst [vmem:[%s228 + $0x1e8] sm:$0xff] %v1329
          %1426 = vst [vmem:[%s228 + $0x1f0] sm:$0xff] %v1330
          %1427 = vst [vmem:[%s228 + $0x1f8] sm:$0xff] %v1331
          %1428 = vst [vmem:[%s228 + $0x200] sm:$0xff] %v1332
          %1429 = vst [vmem:[%s228 + $0x208] sm:$0xff] %v1333
          %1430 = vst [vmem:[%s228 + $0x210] sm:$0xff] %v1334
          %1431 = vst [vmem:[%s228 + $0x218] sm:$0xff] %v1335
          %1432 = vst [vmem:[%s228 + $0x220] sm:$0xff] %v1336
          %1433 = vst [vmem:[%s228 + $0x228] sm:$0xff] %v1337
          %1434 = vst [vmem:[%s228 + $0x230] sm:$0xff] %v1338
          %1435 = vst [vmem:[%s228 + $0x238] sm:$0xff] %v1339
          %1436 = vst [vmem:[%s228 + $0x240] sm:$0xff] %v1340
          %1437 = vst [vmem:[%s228 + $0x248] sm:$0xff] %v1341
          %1438 = vst [vmem:[%s228 + $0x250] sm:$0xff] %v1342
          %1439 = vst [vmem:[%s228 + $0x258] sm:$0xff] %v1343
          %1440 = vst [vmem:[%s228 + $0x260] sm:$0xff] %v1344
          %1441 = vst [vmem:[%s228 + $0x268] sm:$0xff] %v1345
          %1442 = vst [vmem:[%s228 + $0x270] sm:$0xff] %v1346
          %1443 = vst [vmem:[%s228 + $0x278] sm:$0xff] %v1347
          %1444 = vst [vmem:[%s228 + $0x280] sm:$0xff] %v1348
          %1445 = vst [vmem:[%s228 + $0x288] sm:$0xff] %v1349
          %1446 = vst [vmem:[%s228 + $0x290] sm:$0xff] %v1350
          %1447 = vst [vmem:[%s228 + $0x298] sm:$0xff] %v1351
          %1448 = vst [vmem:[%s228 + $0x2a0] sm:$0xff] %v1352
          %1449 = vst [vmem:[%s228 + $0x2a8] sm:$0xff] %v1353
          %1450 = vst [vmem:[%s228 + $0x2b0] sm:$0xff] %v1354
          %1451 = vst [vmem:[%s228 + $0x2b8] sm:$0xff] %v1355
          %1452 = vst [vmem:[%s228 + $0x2c0] sm:$0xff] %v1356
          %1453 = vst [vmem:[%s228 + $0x2c8] sm:$0xff] %v1357
          %1454 = vst [vmem:[%s228 + $0x2d0] sm:$0xff] %v1358
          %1455 = vst [vmem:[%s228 + $0x2d8] sm:$0xff] %v1359
          %1456 = vst [vmem:[%s228 + $0x2e0] sm:$0xff] %v1360
          %1457 = vst [vmem:[%s228 + $0x2e8] sm:$0xff] %v1361
          %1458 = vst [vmem:[%s228 + $0x2f0] sm:$0xff] %v1362
          %1459 = vst [vmem:[%s228 + $0x2f8] sm:$0xff] %v1363
        $region44: #{gpt_neo_self_attention.3} parent=27 // pred_fallthru
          _
        %s1460 = sand.u32 %s104, 1
        %s1461 = sand.u32 %s104, 1
        %s1462 = smul.addr %s1461, 768
        %s1463 = scalar_lea.vmem [#allocation7], %s1462
        // Predicated region
        $region45: #{gpt_neo_self_attention.3} parent=27 // pred_check
          %p1464 = pneg %p114
        $region46: #{gpt_neo_self_attention.3} parent=27 // pred_check_branch
          %1466 = sbr.rel (%p1464) target = $region48
        $region47: #{gpt_neo_self_attention.3} parent=27 // pred_region
          %s1467 = smul.u32 32, %s24
          %s1468 = smul.u32 3, %s25
          %s1469 = smul.addr %s1467, 6
          %s1470 = sadd.s32 %s1468, %s1469
          %s1471 = smul.addr %s1470, 8
          %s1472 = scalar_lea.vmem %s2, %s1471
          // Predicated region
          $region49: #{gpt_neo_self_attention.3} parent=47 // pred_check
            _
          $region50: #{gpt_neo_self_attention.3} parent=47 // pred_check_branch
            %1474 = sbr.rel (0) target = $region52
          $region51: #{gpt_neo_self_attention.3} parent=47 // pred_region
            // Predicated region
            $region53: #{gpt_neo_self_attention.3} parent=51 // pred_check
              _
            $region54: #{gpt_neo_self_attention.3} parent=51 // pred_check_branch
              %1476 = sbr.rel (0) target = $region56
            $region55: #{gpt_neo_self_attention.3} parent=51 // pred_region
              loop: start=0, step=1, limit=1
              $region57: #{gpt_neo_self_attention.3} parent=55 // loop_pre_header
                _
              $region58: #{gpt_neo_self_attention.3} parent=55 // loop_header
                %s1478 = sphi 0, %s1482
                %p1479 = scmp.ge.s32.totalorder %s1478, 1
                %s1483 = sphi %s1463, %s1463
                %s1484 = sphi %s1472, %s1472
              $region59: #{gpt_neo_self_attention.3} parent=55 // loop_header_branch
                %1481 = sbr.rel (%p1479) target = $region63
              $region60: #{gpt_neo_self_attention.3} parent=55 // loop_body
                %v1485 = vld [vmem:[%s1483] sm:$0xff]
                %1486 = vst [vmem:[%s1484] sm:$0xff] %v1485
                %v1487 = vld [vmem:[%s1483 + $0x8] sm:$0xff]
                %1488 = vst [vmem:[%s1484 + $0x8] sm:$0xff] %v1487
                %v1489 = vld [vmem:[%s1483 + $0x10] sm:$0xff]
                %1490 = vst [vmem:[%s1484 + $0x10] sm:$0xff] %v1489
                %v1491 = vld [vmem:[%s1483 + $0x18] sm:$0xff]
                %1492 = vst [vmem:[%s1484 + $0x30] sm:$0xff] %v1491
                %v1493 = vld [vmem:[%s1483 + $0x20] sm:$0xff]
                %1494 = vst [vmem:[%s1484 + $0x38] sm:$0xff] %v1493
                %v1495 = vld [vmem:[%s1483 + $0x28] sm:$0xff]
                %1496 = vst [vmem:[%s1484 + $0x40] sm:$0xff] %v1495
                %v1497 = vld [vmem:[%s1483 + $0x30] sm:$0xff]
                %1498 = vst [vmem:[%s1484 + $0x60] sm:$0xff] %v1497
                %v1499 = vld [vmem:[%s1483 + $0x38] sm:$0xff]
                %1500 = vst [vmem:[%s1484 + $0x68] sm:$0xff] %v1499
                %v1501 = vld [vmem:[%s1483 + $0x40] sm:$0xff]
                %1502 = vst [vmem:[%s1484 + $0x70] sm:$0xff] %v1501
                %v1503 = vld [vmem:[%s1483 + $0x48] sm:$0xff]
                %1504 = vst [vmem:[%s1484 + $0x90] sm:$0xff] %v1503
                %v1505 = vld [vmem:[%s1483 + $0x50] sm:$0xff]
                %1506 = vst [vmem:[%s1484 + $0x98] sm:$0xff] %v1505
                %v1507 = vld [vmem:[%s1483 + $0x58] sm:$0xff]
                %1508 = vst [vmem:[%s1484 + $0xa0] sm:$0xff] %v1507
                %v1509 = vld [vmem:[%s1483 + $0x60] sm:$0xff]
                %1510 = vst [vmem:[%s1484 + $0xc0] sm:$0xff] %v1509
                %v1511 = vld [vmem:[%s1483 + $0x68] sm:$0xff]
                %1512 = vst [vmem:[%s1484 + $0xc8] sm:$0xff] %v1511
                %v1513 = vld [vmem:[%s1483 + $0x70] sm:$0xff]
                %1514 = vst [vmem:[%s1484 + $0xd0] sm:$0xff] %v1513
                %v1515 = vld [vmem:[%s1483 + $0x78] sm:$0xff]
                %1516 = vst [vmem:[%s1484 + $0xf0] sm:$0xff] %v1515
                %v1517 = vld [vmem:[%s1483 + $0x80] sm:$0xff]
                %1518 = vst [vmem:[%s1484 + $0xf8] sm:$0xff] %v1517
                %v1519 = vld [vmem:[%s1483 + $0x88] sm:$0xff]
                %1520 = vst [vmem:[%s1484 + $0x100] sm:$0xff] %v1519
                %v1521 = vld [vmem:[%s1483 + $0x90] sm:$0xff]
                %1522 = vst [vmem:[%s1484 + $0x120] sm:$0xff] %v1521
                %v1523 = vld [vmem:[%s1483 + $0x98] sm:$0xff]
                %1524 = vst [vmem:[%s1484 + $0x128] sm:$0xff] %v1523
                %v1525 = vld [vmem:[%s1483 + $0xa0] sm:$0xff]
                %1526 = vst [vmem:[%s1484 + $0x130] sm:$0xff] %v1525
                %v1527 = vld [vmem:[%s1483 + $0xa8] sm:$0xff]
                %1528 = vst [vmem:[%s1484 + $0x150] sm:$0xff] %v1527
                %v1529 = vld [vmem:[%s1483 + $0xb0] sm:$0xff]
                %1530 = vst [vmem:[%s1484 + $0x158] sm:$0xff] %v1529
                %v1531 = vld [vmem:[%s1483 + $0xb8] sm:$0xff]
                %1532 = vst [vmem:[%s1484 + $0x160] sm:$0xff] %v1531
                %v1533 = vld [vmem:[%s1483 + $0xc0] sm:$0xff]
                %1534 = vst [vmem:[%s1484 + $0x180] sm:$0xff] %v1533
                %v1535 = vld [vmem:[%s1483 + $0xc8] sm:$0xff]
                %1536 = vst [vmem:[%s1484 + $0x188] sm:$0xff] %v1535
                %v1537 = vld [vmem:[%s1483 + $0xd0] sm:$0xff]
                %1538 = vst [vmem:[%s1484 + $0x190] sm:$0xff] %v1537
                %v1539 = vld [vmem:[%s1483 + $0xd8] sm:$0xff]
                %1540 = vst [vmem:[%s1484 + $0x1b0] sm:$0xff] %v1539
                %v1541 = vld [vmem:[%s1483 + $0xe0] sm:$0xff]
                %1542 = vst [vmem:[%s1484 + $0x1b8] sm:$0xff] %v1541
                %v1543 = vld [vmem:[%s1483 + $0xe8] sm:$0xff]
                %1544 = vst [vmem:[%s1484 + $0x1c0] sm:$0xff] %v1543
                %v1545 = vld [vmem:[%s1483 + $0xf0] sm:$0xff]
                %1546 = vst [vmem:[%s1484 + $0x1e0] sm:$0xff] %v1545
                %v1547 = vld [vmem:[%s1483 + $0xf8] sm:$0xff]
                %1548 = vst [vmem:[%s1484 + $0x1e8] sm:$0xff] %v1547
                %v1549 = vld [vmem:[%s1483 + $0x100] sm:$0xff]
                %1550 = vst [vmem:[%s1484 + $0x1f0] sm:$0xff] %v1549
                %v1551 = vld [vmem:[%s1483 + $0x108] sm:$0xff]
                %1552 = vst [vmem:[%s1484 + $0x210] sm:$0xff] %v1551
                %v1553 = vld [vmem:[%s1483 + $0x110] sm:$0xff]
                %1554 = vst [vmem:[%s1484 + $0x218] sm:$0xff] %v1553
                %v1555 = vld [vmem:[%s1483 + $0x118] sm:$0xff]
                %1556 = vst [vmem:[%s1484 + $0x220] sm:$0xff] %v1555
                %v1557 = vld [vmem:[%s1483 + $0x120] sm:$0xff]
                %1558 = vst [vmem:[%s1484 + $0x240] sm:$0xff] %v1557
                %v1559 = vld [vmem:[%s1483 + $0x128] sm:$0xff]
                %1560 = vst [vmem:[%s1484 + $0x248] sm:$0xff] %v1559
                %v1561 = vld [vmem:[%s1483 + $0x130] sm:$0xff]
                %1562 = vst [vmem:[%s1484 + $0x250] sm:$0xff] %v1561
                %v1563 = vld [vmem:[%s1483 + $0x138] sm:$0xff]
                %1564 = vst [vmem:[%s1484 + $0x270] sm:$0xff] %v1563
                %v1565 = vld [vmem:[%s1483 + $0x140] sm:$0xff]
                %1566 = vst [vmem:[%s1484 + $0x278] sm:$0xff] %v1565
                %v1567 = vld [vmem:[%s1483 + $0x148] sm:$0xff]
                %1568 = vst [vmem:[%s1484 + $0x280] sm:$0xff] %v1567
                %v1569 = vld [vmem:[%s1483 + $0x150] sm:$0xff]
                %1570 = vst [vmem:[%s1484 + $0x2a0] sm:$0xff] %v1569
                %v1571 = vld [vmem:[%s1483 + $0x158] sm:$0xff]
                %1572 = vst [vmem:[%s1484 + $0x2a8] sm:$0xff] %v1571
                %v1573 = vld [vmem:[%s1483 + $0x160] sm:$0xff]
                %1574 = vst [vmem:[%s1484 + $0x2b0] sm:$0xff] %v1573
                %v1575 = vld [vmem:[%s1483 + $0x168] sm:$0xff]
                %1576 = vst [vmem:[%s1484 + $0x2d0] sm:$0xff] %v1575
                %v1577 = vld [vmem:[%s1483 + $0x170] sm:$0xff]
                %1578 = vst [vmem:[%s1484 + $0x2d8] sm:$0xff] %v1577
                %v1579 = vld [vmem:[%s1483 + $0x178] sm:$0xff]
                %1580 = vst [vmem:[%s1484 + $0x2e0] sm:$0xff] %v1579
                %v1581 = vld [vmem:[%s1483 + $0x180] sm:$0xff]
                %1582 = vst [vmem:[%s1484 + $0x300] sm:$0xff] %v1581
                %v1583 = vld [vmem:[%s1483 + $0x188] sm:$0xff]
                %1584 = vst [vmem:[%s1484 + $0x308] sm:$0xff] %v1583
                %v1585 = vld [vmem:[%s1483 + $0x190] sm:$0xff]
                %1586 = vst [vmem:[%s1484 + $0x310] sm:$0xff] %v1585
                %v1587 = vld [vmem:[%s1483 + $0x198] sm:$0xff]
                %1588 = vst [vmem:[%s1484 + $0x330] sm:$0xff] %v1587
                %v1589 = vld [vmem:[%s1483 + $0x1a0] sm:$0xff]
                %1590 = vst [vmem:[%s1484 + $0x338] sm:$0xff] %v1589
                %v1591 = vld [vmem:[%s1483 + $0x1a8] sm:$0xff]
                %1592 = vst [vmem:[%s1484 + $0x340] sm:$0xff] %v1591
                %v1593 = vld [vmem:[%s1483 + $0x1b0] sm:$0xff]
                %1594 = vst [vmem:[%s1484 + $0x360] sm:$0xff] %v1593
                %v1595 = vld [vmem:[%s1483 + $0x1b8] sm:$0xff]
                %1596 = vst [vmem:[%s1484 + $0x368] sm:$0xff] %v1595
                %v1597 = vld [vmem:[%s1483 + $0x1c0] sm:$0xff]
                %1598 = vst [vmem:[%s1484 + $0x370] sm:$0xff] %v1597
                %v1599 = vld [vmem:[%s1483 + $0x1c8] sm:$0xff]
                %1600 = vst [vmem:[%s1484 + $0x390] sm:$0xff] %v1599
                %v1601 = vld [vmem:[%s1483 + $0x1d0] sm:$0xff]
                %1602 = vst [vmem:[%s1484 + $0x398] sm:$0xff] %v1601
                %v1603 = vld [vmem:[%s1483 + $0x1d8] sm:$0xff]
                %1604 = vst [vmem:[%s1484 + $0x3a0] sm:$0xff] %v1603
                %v1605 = vld [vmem:[%s1483 + $0x1e0] sm:$0xff]
                %1606 = vst [vmem:[%s1484 + $0x3c0] sm:$0xff] %v1605
                %v1607 = vld [vmem:[%s1483 + $0x1e8] sm:$0xff]
                %1608 = vst [vmem:[%s1484 + $0x3c8] sm:$0xff] %v1607
                %v1609 = vld [vmem:[%s1483 + $0x1f0] sm:$0xff]
                %1610 = vst [vmem:[%s1484 + $0x3d0] sm:$0xff] %v1609
                %v1611 = vld [vmem:[%s1483 + $0x1f8] sm:$0xff]
                %1612 = vst [vmem:[%s1484 + $0x3f0] sm:$0xff] %v1611
                %v1613 = vld [vmem:[%s1483 + $0x200] sm:$0xff]
                %1614 = vst [vmem:[%s1484 + $0x3f8] sm:$0xff] %v1613
                %v1615 = vld [vmem:[%s1483 + $0x208] sm:$0xff]
                %1616 = vst [vmem:[%s1484 + $0x400] sm:$0xff] %v1615
                %v1617 = vld [vmem:[%s1483 + $0x210] sm:$0xff]
                %1618 = vst [vmem:[%s1484 + $0x420] sm:$0xff] %v1617
                %v1619 = vld [vmem:[%s1483 + $0x218] sm:$0xff]
                %1620 = vst [vmem:[%s1484 + $0x428] sm:$0xff] %v1619
                %v1621 = vld [vmem:[%s1483 + $0x220] sm:$0xff]
                %1622 = vst [vmem:[%s1484 + $0x430] sm:$0xff] %v1621
                %v1623 = vld [vmem:[%s1483 + $0x228] sm:$0xff]
                %1624 = vst [vmem:[%s1484 + $0x450] sm:$0xff] %v1623
                %v1625 = vld [vmem:[%s1483 + $0x230] sm:$0xff]
                %1626 = vst [vmem:[%s1484 + $0x458] sm:$0xff] %v1625
                %v1627 = vld [vmem:[%s1483 + $0x238] sm:$0xff]
                %1628 = vst [vmem:[%s1484 + $0x460] sm:$0xff] %v1627
                %v1629 = vld [vmem:[%s1483 + $0x240] sm:$0xff]
                %1630 = vst [vmem:[%s1484 + $0x480] sm:$0xff] %v1629
                %v1631 = vld [vmem:[%s1483 + $0x248] sm:$0xff]
                %1632 = vst [vmem:[%s1484 + $0x488] sm:$0xff] %v1631
                %v1633 = vld [vmem:[%s1483 + $0x250] sm:$0xff]
                %1634 = vst [vmem:[%s1484 + $0x490] sm:$0xff] %v1633
                %v1635 = vld [vmem:[%s1483 + $0x258] sm:$0xff]
                %1636 = vst [vmem:[%s1484 + $0x4b0] sm:$0xff] %v1635
                %v1637 = vld [vmem:[%s1483 + $0x260] sm:$0xff]
                %1638 = vst [vmem:[%s1484 + $0x4b8] sm:$0xff] %v1637
                %v1639 = vld [vmem:[%s1483 + $0x268] sm:$0xff]
                %1640 = vst [vmem:[%s1484 + $0x4c0] sm:$0xff] %v1639
                %v1641 = vld [vmem:[%s1483 + $0x270] sm:$0xff]
                %1642 = vst [vmem:[%s1484 + $0x4e0] sm:$0xff] %v1641
                %v1643 = vld [vmem:[%s1483 + $0x278] sm:$0xff]
                %1644 = vst [vmem:[%s1484 + $0x4e8] sm:$0xff] %v1643
                %v1645 = vld [vmem:[%s1483 + $0x280] sm:$0xff]
                %1646 = vst [vmem:[%s1484 + $0x4f0] sm:$0xff] %v1645
                %v1647 = vld [vmem:[%s1483 + $0x288] sm:$0xff]
                %1648 = vst [vmem:[%s1484 + $0x510] sm:$0xff] %v1647
                %v1649 = vld [vmem:[%s1483 + $0x290] sm:$0xff]
                %1650 = vst [vmem:[%s1484 + $0x518] sm:$0xff] %v1649
                %v1651 = vld [vmem:[%s1483 + $0x298] sm:$0xff]
                %1652 = vst [vmem:[%s1484 + $0x520] sm:$0xff] %v1651
                %v1653 = vld [vmem:[%s1483 + $0x2a0] sm:$0xff]
                %1654 = vst [vmem:[%s1484 + $0x540] sm:$0xff] %v1653
                %v1655 = vld [vmem:[%s1483 + $0x2a8] sm:$0xff]
                %1656 = vst [vmem:[%s1484 + $0x548] sm:$0xff] %v1655
                %v1657 = vld [vmem:[%s1483 + $0x2b0] sm:$0xff]
                %1658 = vst [vmem:[%s1484 + $0x550] sm:$0xff] %v1657
                %v1659 = vld [vmem:[%s1483 + $0x2b8] sm:$0xff]
                %1660 = vst [vmem:[%s1484 + $0x570] sm:$0xff] %v1659
                %v1661 = vld [vmem:[%s1483 + $0x2c0] sm:$0xff]
                %1662 = vst [vmem:[%s1484 + $0x578] sm:$0xff] %v1661
                %v1663 = vld [vmem:[%s1483 + $0x2c8] sm:$0xff]
                %1664 = vst [vmem:[%s1484 + $0x580] sm:$0xff] %v1663
                %v1665 = vld [vmem:[%s1483 + $0x2d0] sm:$0xff]
                %1666 = vst [vmem:[%s1484 + $0x5a0] sm:$0xff] %v1665
                %v1667 = vld [vmem:[%s1483 + $0x2d8] sm:$0xff]
                %1668 = vst [vmem:[%s1484 + $0x5a8] sm:$0xff] %v1667
                %v1669 = vld [vmem:[%s1483 + $0x2e0] sm:$0xff]
                %1670 = vst [vmem:[%s1484 + $0x5b0] sm:$0xff] %v1669
                %v1671 = vld [vmem:[%s1483 + $0x2e8] sm:$0xff]
                %1672 = vst [vmem:[%s1484 + $0x5d0] sm:$0xff] %v1671
                %v1673 = vld [vmem:[%s1483 + $0x2f0] sm:$0xff]
                %1674 = vst [vmem:[%s1484 + $0x5d8] sm:$0xff] %v1673
                %v1675 = vld [vmem:[%s1483 + $0x2f8] sm:$0xff]
                %1676 = vst [vmem:[%s1484 + $0x5e0] sm:$0xff] %v1675
              $region61: #{gpt_neo_self_attention.3} parent=55 // loop_footer
                %s1482 = sadd.s32 1, %s1478
              $region62: #{gpt_neo_self_attention.3} parent=55 // loop_footer_branch
                %1477 = sbr.rel target = $region58
              $region63: #{gpt_neo_self_attention.3} parent=55 // loop_exit
                _
            $region56: #{gpt_neo_self_attention.3} parent=51 // pred_fallthru
              _
            // Predicated region
            $region64: #{gpt_neo_self_attention.3} parent=51 // pred_check
              _
            $region65: #{gpt_neo_self_attention.3} parent=51 // pred_check_branch
              %1678 = sbr.rel target = $region67
            $region66: #{gpt_neo_self_attention.3} parent=51 // pred_region
              _
            $region67: #{gpt_neo_self_attention.3} parent=51 // pred_fallthru
              _
          $region52: #{gpt_neo_self_attention.3} parent=47 // pred_fallthru
            _
          %1679 = vnop
        $region48: #{gpt_neo_self_attention.3} parent=27 // pred_fallthru
          _
      $region28: #{gpt_neo_self_attention.3} parent=5 // pred_fallthru
        _
      %p1680 = scmp.le.s32.totalorder 2, %s14
      // Predicated region
      $region68: #{gpt_neo_self_attention.3} parent=5 // pred_check
        %p1681 = pneg %p1680
      $region69: #{gpt_neo_self_attention.3} parent=5 // pred_check_branch
        %1683 = sbr.rel (%p1681) target = $region71
      $region70: #{gpt_neo_self_attention.3} parent=5 // pred_region
        %s1684 = ssub.s32 %s14, 2
        // Predicated region
        $region72: #{gpt_neo_self_attention.3} parent=70 // pred_check
          %p1685 = pneg %p120
        $region73: #{gpt_neo_self_attention.3} parent=70 // pred_check_branch
          %1687 = sbr.rel (%p1685) target = $region75
        $region74: #{gpt_neo_self_attention.3} parent=70 // pred_region
          %s1688 = sand.u32 %s105, 1
          %s1689 = sand.u32 %s105, 1
          %s1690 = smul.addr %s1689, 768
          %s1691 = scalar_lea.vmem [#allocation7], %s1690
        $region75: #{gpt_neo_self_attention.3} parent=70 // pred_fallthru
          _
      $region71: #{gpt_neo_self_attention.3} parent=5 // pred_fallthru
        _
    $region6: #{gpt_neo_self_attention.3} parent=1 // loop_footer
      %s18 = sadd.s32 1, %s14
    $region7: #{gpt_neo_self_attention.3} parent=1 // loop_footer_branch
      %13 = sbr.rel target = $region3
    $region8: #{gpt_neo_self_attention.3} parent=1 // loop_exit
      _
    %1692 = vsyncpa [#allocation4], 1
    %s1693 = scalar_lea.sflag [#allocation4], 1
    %1694 = vsyncpa %s1693, 1
    %1695 = vsyncpa [#allocation6], 1
    %s1696 = scalar_lea.sflag [#allocation6], 1
    %1697 = vsyncpa %s1696, 1

</llo_original>
